<compile_context>
chip_gen: v5e
topology: v5e:2x2
jax: 0.10.0
libtpu: 0.0.40
codegen_flags: <defaults>
</compile_context>

<pallas_src>
import functools

import jax
import jax.numpy as jnp
from jax.experimental import pallas as pl
from jax.experimental.pallas import tpu as pltpu


def _round_up(x, m):
    return (x + m - 1) // m * m


def gru_encoder_kernel(num_layers, TCH, BT, HP, x_ref, len_ref, full_ref, *refs):
    # refs = [Wih_T_l, Whh_T_l, bih_fold_l, bhh_n_l] * num_layers
    #        + [Wlin_T, blin, out_ref, gi_scratch, seq_scratch, h_scratch]
    n_w = 4 * num_layers
    layer_w = refs[:n_w]
    wlin_ref = refs[n_w]
    blin_ref = refs[n_w + 1]
    out_ref = refs[n_w + 2]
    gi_ref = refs[n_w + 3]        # (TCH, BT, 3*HP) bf16  — hoisted input proj
    seq_ref = refs[n_w + 4]       # (TCH, BT, HP)   bf16  — next layer's input
    h_ref = refs[n_w + 5]         # (num_layers, BT, HP) f32 — carried states

    tc = pl.program_id(1)
    n_tc = pl.num_programs(1)

    @pl.when(tc == 0)
    def _():
        h_ref[...] = jnp.zeros_like(h_ref)     # PyTorch default h0 = 0

    lengths = len_ref[...]                     # (BT, 1) int32
    t_base = tc * TCH

    for l in range(num_layers):                # static unroll over layers
        wih_ref = layer_w[4 * l]               # (D_in_p, 3*HP) bf16
        whh_ref = layer_w[4 * l + 1]           # (HP, 3*HP)     bf16 (VMEM-resident)
        bih_ref = layer_w[4 * l + 2]           # (1, 3*HP) f32  (b_ih + [b_hr|b_hz|0])
        bhh_n_ref = layer_w[4 * l + 3]         # (1, HP)   f32  (b_hn)

        # ---- hoisted input projection: one lane-dense bf16 MXU matmul ----
        if l == 0:
            inp = x_ref[...]                   # (TCH, BT, DP) bf16
        else:
            inp = seq_ref[...]                 # (TCH, BT, HP) bf16
        d_in = inp.shape[-1]
        inp2d = inp.reshape(TCH * BT, d_in)
        gi_all = (jnp.dot(inp2d, wih_ref[...], preferred_element_type=jnp.float32)
                  + bih_ref[...])
        gi_ref[...] = gi_all.reshape(TCH, BT, 3 * HP).astype(jnp.bfloat16)

        # ---- serial recurrence: only h_prev @ Whh_T per step ----
        def step(ti, h_prev):
            gi = gi_ref[ti].astype(jnp.float32)                    # (BT, 3*HP)
            gh = jnp.dot(h_prev.astype(jnp.bfloat16), whh_ref[...],
                         preferred_element_type=jnp.float32)       # (BT, 3*HP)
            r = jax.nn.sigmoid(gi[:, 0:HP] + gh[:, 0:HP])
            z = jax.nn.sigmoid(gi[:, HP:2 * HP] + gh[:, HP:2 * HP])
            n = jnp.tanh(gi[:, 2 * HP:3 * HP]
                         + r * (gh[:, 2 * HP:3 * HP] + bhh_n_ref[...]))
            h_new = (1.0 - z) * n + z * h_prev
            # packed-sequence semantics: freeze state past lengths[b]
            t = t_base + ti
            h_upd = jnp.where(t < lengths, h_new, h_prev)
            if l < num_layers - 1:             # static: skip store on top layer
                seq_ref[ti] = h_upd.astype(jnp.bfloat16)
            return h_upd

        unroll = True if TCH <= 32 else 4
        h_fin = jax.lax.fori_loop(0, TCH, step, h_ref[l], unroll=unroll)
        h_ref[l] = h_fin

    # pad_packed_sequence(...)[:, -1, :] == top-layer hidden at
    # t = max(lengths)-1 for rows with length == max(lengths), zero otherwise.
    @pl.when(tc == n_tc - 1)
    def _():
        last = h_ref[num_layers - 1] * full_ref[...]      # (BT, HP) f32
        out_ref[...] = (
            jnp.dot(last.astype(jnp.bfloat16), wlin_ref[...],
                    preferred_element_type=jnp.float32)
            + blin_ref[...]
        )


def init_params(key, input_size, hidden_size, latent_dim, num_layers):
    """Deterministic uniform(-1/sqrt(H), 1/sqrt(H)) init, like PyTorch."""
    bound = 1.0 / jnp.sqrt(jnp.float32(hidden_size))
    keys = jax.random.split(key, num_layers + 2)
    layers = []
    for l in range(num_layers):
        d_in = input_size if l == 0 else hidden_size
        k0, k1, k2, k3 = jax.random.split(keys[l], 4)
        wih = jax.random.uniform(k0, (3 * hidden_size, d_in), jnp.float32, -bound, bound)
        whh = jax.random.uniform(k1, (3 * hidden_size, hidden_size), jnp.float32, -bound, bound)
        bih = jax.random.uniform(k2, (3 * hidden_size,), jnp.float32, -bound, bound)
        bhh = jax.random.uniform(k3, (3 * hidden_size,), jnp.float32, -bound, bound)
        layers.append((wih, whh, bih, bhh))
    w_lin = jax.random.uniform(keys[-2], (latent_dim, hidden_size), jnp.float32, -bound, bound)
    b_lin = jax.random.uniform(keys[-1], (latent_dim,), jnp.float32, -bound, bound)
    return {"layers": layers, "w_lin": w_lin, "b_lin": b_lin}


def gru_encoder(x, lengths, params, *, hidden_size, latent_dim, num_layers,
                batch_tile=64, time_chunk=32):
    B, T, D = x.shape
    H = hidden_size
    HP = _round_up(H, 128)            # lane-dense gates (r/z/n at 0/HP/2HP)
    LP = _round_up(latent_dim, 128)   # lane-dense output
    DP = _round_up(D, 128)            # lane-dense layer-0 input
    BT = min(_round_up(B, 8), _round_up(batch_tile, 8))   # sublane-aligned batch tile
    BP = _round_up(B, BT)
    TCH = min(time_chunk, T)          # time-chunk length
    TP = _round_up(T, TCH)

    # (B, T, D) -> (TP, BP, DP) bf16, zero-padded (padded steps masked by length).
    x_tm = jnp.transpose(x, (1, 0, 2)).astype(jnp.float32)
    x_tm = jnp.pad(x_tm, ((0, TP - T), (0, BP - B), (0, DP - D)))
    x_tm = x_tm.astype(jnp.bfloat16)

    len_i32 = lengths.astype(jnp.int32)
    len2d = jnp.pad(len_i32.reshape(B, 1), ((0, BP - B), (0, 0)))          # (BP, 1)
    # rows with length == max(lengths) get the last hidden, others get 0
    # (padded rows have length 0 -> mask 0).
    full2d = (len2d == jnp.max(len_i32)).astype(jnp.float32)               # (BP, 1)

    def pad_gates_cols(w):
        """(rows, 3H) torch gate order -> (rows, 3*HP), gate g at cols [g*HP, g*HP+H)."""
        rows = w.shape[0]
        out = jnp.zeros((rows, 3 * HP), jnp.float32)
        for g in range(3):
            out = out.at[:, g * HP: g * HP + H].set(w[:, g * H:(g + 1) * H])
        return out

    flat = []
    for l in range(num_layers):
        wih, whh, bih, bhh = params["layers"][l]        # torch layout
        d_in = wih.shape[1]
        d_in_p = DP if l == 0 else HP
        wih_t = pad_gates_cols(wih.T)                                   # (d_in, 3HP)
        wih_t = jnp.pad(wih_t, ((0, d_in_p - d_in), (0, 0))).astype(jnp.bfloat16)
        whh_t = pad_gates_cols(whh.T)                                   # (H, 3HP)
        whh_t = jnp.pad(whh_t, ((0, HP - H), (0, 0))).astype(jnp.bfloat16)
        bih_p = pad_gates_cols(bih.reshape(1, 3 * H))                   # (1, 3HP)
        bhh_p = pad_gates_cols(bhh.reshape(1, 3 * H))                   # (1, 3HP)
        # fold b_hr / b_hz into bih (r and z gates); keep b_hn separate — it must
        # stay inside the r*(...) term to match PyTorch exactly.
        bih_fold = bih_p.at[:, :2 * HP].add(bhh_p[:, :2 * HP])          # (1, 3HP) f32
        bhh_n = bhh_p[:, 2 * HP:3 * HP]                                 # (1, HP)  f32
        flat += [wih_t, whh_t, bih_fold, bhh_n]

    wlin_t = (jnp.zeros((HP, LP), jnp.float32)
              .at[:H, :latent_dim].set(params["w_lin"].T)).astype(jnp.bfloat16)
    blin_p = jnp.zeros((1, LP), jnp.float32).at[:, :latent_dim].set(params["b_lin"])
    flat += [wlin_t, blin_p]

    # --- VMEM budget (weights + streamed x block + scratch + output), with headroom.
    bytes_w = 0
    for l in range(num_layers):
        d_in_p = DP if l == 0 else HP
        bytes_w += d_in_p * 3 * HP * 2 + HP * 3 * HP * 2 + 3 * HP * 4 + HP * 4
    bytes_w += HP * LP * 2 + LP * 4
    bytes_stream = 2 * (TCH * BT * DP * 2)                       # double-buffered x chunk
    bytes_scratch = (TCH * BT * 3 * HP * 2 + TCH * BT * HP * 2
                     + num_layers * BT * HP * 4)
    bytes_out = 2 * BT * LP * 4 + 4 * BT * 4
    footprint = bytes_w + bytes_stream + bytes_scratch + bytes_out
    vmem_limit = int(min(100 * 2**20, max(32 * 2**20, int(footprint * 1.5))))

    kernel = functools.partial(gru_encoder_kernel, num_layers, TCH, BT, HP)

    in_specs = (
        [pl.BlockSpec((TCH, BT, DP), lambda bi, tc: (tc, bi, 0)),    # x chunk (streamed)
         pl.BlockSpec((BT, 1), lambda bi, tc: (bi, 0)),              # lengths tile
         pl.BlockSpec((BT, 1), lambda bi, tc: (bi, 0))]              # "has max length" mask
        + [pl.BlockSpec(memory_space=pltpu.MemorySpace.VMEM)] * len(flat)  # weights, resident
    )

    out_pad = pl.pallas_call(
        kernel,
        out_shape=jax.ShapeDtypeStruct((BP, LP), jnp.float32),
        grid=(BP // BT, TP // TCH),
        in_specs=in_specs,
        out_specs=pl.BlockSpec((BT, LP), lambda bi, tc: (bi, 0)),
        scratch_shapes=[
            pltpu.VMEM((TCH, BT, 3 * HP), jnp.bfloat16),   # gi (hoisted input proj)
            pltpu.VMEM((TCH, BT, HP), jnp.bfloat16),       # per-layer output sequence
            pltpu.VMEM((num_layers, BT, HP), jnp.float32), # carried hidden states
        ],
        compiler_params=pltpu.CompilerParams(
            dimension_semantics=("parallel", "arbitrary"),
            vmem_limit_bytes=vmem_limit),
    )(x_tm, len2d, full2d, *flat)

    return out_pad[:B, :latent_dim]


def gru_encoder_ref(x, lengths, params, *, hidden_size, num_layers):
    """Pure-JAX f32 reference of the same semantics (for a correctness check)."""
    B, T, D = x.shape
    H = hidden_size
    h = jnp.zeros((num_layers, B, H), jnp.float32)
    for t in range(T):
        inp = x[:, t, :]
        mask = (t < lengths).reshape(B, 1)
        for l in range(num_layers):
            wih, whh, bih, bhh = params["layers"][l]
            gi = inp @ wih.T + bih
            gh = h[l] @ whh.T + bhh
            r = jax.nn.sigmoid(gi[:, :H] + gh[:, :H])
            z = jax.nn.sigmoid(gi[:, H:2 * H] + gh[:, H:2 * H])
            n = jnp.tanh(gi[:, 2 * H:] + r * gh[:, 2 * H:])
            h_new = (1.0 - z) * n + z * h[l]
            h_upd = jnp.where(mask, h_new, h[l])
            h = h.at[l].set(h_upd)
            inp = h_upd
    full = (lengths == jnp.max(lengths)).reshape(B, 1)
    last = jnp.where(full, h[-1], 0.0)
    return last @ params["w_lin"].T + params["b_lin"]


if __name__ == "__main__":
    input_size = 8
    hidden_size = 32
    latent_dim = 16
    num_layers = 2
    B, T = 4, 8

    key = jax.random.PRNGKey(0)
    kx, kp = jax.random.split(key)
    x = jax.random.normal(kx, (B, T, input_size), jnp.float32)
    lengths = jnp.array([8, 5, 8, 3], dtype=jnp.int32)   # max == T

    params = init_params(kp, input_size, hidden_size, latent_dim, num_layers)

    z = gru_encoder(x, lengths, params,
                    hidden_size=hidden_size, latent_dim=latent_dim,
                    num_layers=num_layers)
    z = jax.block_until_ready(z)

    z_ref = gru_encoder_ref(x, lengths, params,
                            hidden_size=hidden_size, num_layers=num_layers)
    assert z.shape == (B, latent_dim)
    # bf16 MXU operands + bf16 gi/seq scratch vs a pure-f32 reference.
    assert jnp.allclose(z, z_ref, atol=3e-2, rtol=3e-2), "mismatch vs JAX reference"

    print("KERNEL_OK")
</pallas_src>

<mosaic_0001>
module attributes {stable_mosaic.version = 11 : i64} {
  func.func @gru_encoder_kernel(%arg0: i32, %arg1: i32, %arg2: memref<8x8x128xbf16, #tpu.memory_space<vmem>>, %arg3: memref<8x1xi32, #tpu.memory_space<vmem>>, %arg4: memref<8x1xf32, #tpu.memory_space<vmem>>, %arg5: memref<128x384xbf16, #tpu.memory_space<vmem>>, %arg6: memref<128x384xbf16, #tpu.memory_space<vmem>>, %arg7: memref<1x384xf32, #tpu.memory_space<vmem>>, %arg8: memref<1x128xf32, #tpu.memory_space<vmem>>, %arg9: memref<128x384xbf16, #tpu.memory_space<vmem>>, %arg10: memref<128x384xbf16, #tpu.memory_space<vmem>>, %arg11: memref<1x384xf32, #tpu.memory_space<vmem>>, %arg12: memref<1x128xf32, #tpu.memory_space<vmem>>, %arg13: memref<128x128xbf16, #tpu.memory_space<vmem>>, %arg14: memref<1x128xf32, #tpu.memory_space<vmem>>, %arg15: memref<8x128xf32, #tpu.memory_space<vmem>>, %arg16: memref<8x8x384xbf16, #tpu.memory_space<vmem>>, %arg17: memref<8x8x128xbf16, #tpu.memory_space<vmem>>, %arg18: memref<2x8x128xf32, #tpu.memory_space<vmem>>) attributes {dimension_semantics = [#tpu.dimension_semantics<parallel>, #tpu.dimension_semantics<arbitrary>], iteration_bounds = array<i64: 1, 1>, scalar_prefetch = 0 : i64, scratch_operands = 3 : i64, tpu.core_type = #tpu.core_type<tc>, window_params = [{transform_indices = @transform_0, window_bounds = array<i64: 8, 8, 128>}, {transform_indices = @transform_1, window_bounds = array<i64: 8, 1>}, {transform_indices = @transform_2, window_bounds = array<i64: 8, 1>}, {pipeline_mode = #tpu.pipeline_mode<synchronous>, transform_indices = @transform_3, window_bounds = array<i64: 128, 384>}, {pipeline_mode = #tpu.pipeline_mode<synchronous>, transform_indices = @transform_4, window_bounds = array<i64: 128, 384>}, {pipeline_mode = #tpu.pipeline_mode<synchronous>, transform_indices = @transform_5, window_bounds = array<i64: 1, 384>}, {pipeline_mode = #tpu.pipeline_mode<synchronous>, transform_indices = @transform_6, window_bounds = array<i64: 1, 128>}, {pipeline_mode = #tpu.pipeline_mode<synchronous>, transform_indices = @transform_7, window_bounds = array<i64: 128, 384>}, {pipeline_mode = #tpu.pipeline_mode<synchronous>, transform_indices = @transform_8, window_bounds = array<i64: 128, 384>}, {pipeline_mode = #tpu.pipeline_mode<synchronous>, transform_indices = @transform_9, window_bounds = array<i64: 1, 384>}, {pipeline_mode = #tpu.pipeline_mode<synchronous>, transform_indices = @transform_10, window_bounds = array<i64: 1, 128>}, {pipeline_mode = #tpu.pipeline_mode<synchronous>, transform_indices = @transform_11, window_bounds = array<i64: 128, 128>}, {pipeline_mode = #tpu.pipeline_mode<synchronous>, transform_indices = @transform_12, window_bounds = array<i64: 1, 128>}, {transform_indices = @transform_13, window_bounds = array<i64: 8, 128>}]} {
    %c0_i32 = arith.constant 0 : i32
    %0 = arith.cmpi eq, %arg1, %c0_i32 : i32
    %1 = arith.extui %0 : i1 to i32
    %c0_i32_0 = arith.constant 0 : i32
    %2 = arith.cmpi ne, %1, %c0_i32_0 : i32
    scf.if %2 {
      %cst_223 = arith.constant 0.000000e+00 : f32
      %750 = vector.broadcast %cst_223 : f32 to vector<2x8x128xf32>
      %c0_224 = arith.constant 0 : index
      %c0_225 = arith.constant 0 : index
      %c0_226 = arith.constant 0 : index
      %751 = vector.load %arg18[%c0_224, %c0_225, %c0_226] : memref<2x8x128xf32, #tpu.memory_space<vmem>>, vector<2x8x128xf32>
      tpu.vector_store %arg18[%c0_224, %c0_225, %c0_226], %750 {strides = array<i32>} : memref<2x8x128xf32, #tpu.memory_space<vmem>>, vector<2x8x128xf32>,
    } else {
    }
    %c0 = arith.constant 0 : index
    %c0_1 = arith.constant 0 : index
    %3 = vector.load %arg3[%c0, %c0_1] : memref<8x1xi32, #tpu.memory_space<vmem>>, vector<8x1xi32>
    %c8_i32 = arith.constant 8 : i32
    %4 = arith.muli %arg1, %c8_i32 : i32
    %c0_2 = arith.constant 0 : index
    %c0_3 = arith.constant 0 : index
    %c0_4 = arith.constant 0 : index
    %5 = vector.load %arg2[%c0_2, %c0_3, %c0_4] : memref<8x8x128xbf16, #tpu.memory_space<vmem>>, vector<8x8x128xbf16>
    %6 = vector.shape_cast %5 : vector<8x8x128xbf16> to vector<64x128xbf16>
    %c0_5 = arith.constant 0 : index
    %c0_6 = arith.constant 0 : index
    %7 = vector.load %arg5[%c0_5, %c0_6] : memref<128x384xbf16, #tpu.memory_space<vmem>>, vector<128x384xbf16>
    %cst = arith.constant dense<0.000000e+00> : vector<64x384xf32>
    %8 = tpu.matmul %6, %7, %cst {dimension_numbers = #tpu.dot_dimension_numbers<[1], [0], [0], [1], [0, 0, 1, 1], [], []>} : vector<64x128xbf16>, vector<128x384xbf16>, vector<64x384xf32> -> vector<64x384xf32>
    %c0_7 = arith.constant 0 : index
    %c0_8 = arith.constant 0 : index
    %9 = vector.load %arg7[%c0_7, %c0_8] : memref<1x384xf32, #tpu.memory_space<vmem>>, vector<1x384xf32>
    %10 = vector.broadcast %9 : vector<1x384xf32> to vector<64x384xf32>
    %11 = arith.addf %8, %10 : vector<64x384xf32>
    %12 = vector.shape_cast %11 : vector<64x384xf32> to vector<8x8x384xf32>
    %13 = arith.truncf %12 : vector<8x8x384xf32> to vector<8x8x384xbf16>
    %c0_9 = arith.constant 0 : index
    %c0_10 = arith.constant 0 : index
    %c0_11 = arith.constant 0 : index
    %14 = vector.load %arg16[%c0_9, %c0_10, %c0_11] : memref<8x8x384xbf16, #tpu.memory_space<vmem>>, vector<8x8x384xbf16>
    tpu.vector_store %arg16[%c0_9, %c0_10, %c0_11], %13 {strides = array<i32>} : memref<8x8x384xbf16, #tpu.memory_space<vmem>>, vector<8x8x384xbf16>,
    %c0_12 = arith.constant 0 : index
    %c0_13 = arith.constant 0 : index
    %c0_14 = arith.constant 0 : index
    %15 = vector.load %arg18[%c0_12, %c0_13, %c0_14] : memref<2x8x128xf32, #tpu.memory_space<vmem>>, vector<1x8x128xf32>
    %16 = vector.shape_cast %15 : vector<1x8x128xf32> to vector<8x128xf32>
    %c0_i32_15 = arith.constant 0 : i32
    %17 = arith.index_cast %c0_i32_15 : i32 to index
    %c0_16 = arith.constant 0 : index
    %c0_17 = arith.constant 0 : index
    %18 = vector.load %arg16[%17, %c0_16, %c0_17] : memref<8x8x384xbf16, #tpu.memory_space<vmem>>, vector<1x8x384xbf16>
    %19 = vector.shape_cast %18 : vector<1x8x384xbf16> to vector<8x384xbf16>
    %20 = arith.extf %19 : vector<8x384xbf16> to vector<8x384xf32>
    %21 = arith.truncf %16 : vector<8x128xf32> to vector<8x128xbf16>
    %c0_18 = arith.constant 0 : index
    %c0_19 = arith.constant 0 : index
    %22 = vector.load %arg6[%c0_18, %c0_19] : memref<128x384xbf16, #tpu.memory_space<vmem>>, vector<128x384xbf16>
    %cst_20 = arith.constant dense<0.000000e+00> : vector<8x384xf32>
    %23 = tpu.matmul %21, %22, %cst_20 {dimension_numbers = #tpu.dot_dimension_numbers<[1], [0], [0], [1], [0, 0, 1, 1], [], []>} : vector<8x128xbf16>, vector<128x384xbf16>, vector<8x384xf32> -> vector<8x384xf32>
    %24 = vector.extract_strided_slice %20 {offsets = [0, 0], sizes = [8, 128], strides = [1, 1]} : vector<8x384xf32> to vector<8x128xf32>
    %25 = vector.extract_strided_slice %23 {offsets = [0, 0], sizes = [8, 128], strides = [1, 1]} : vector<8x384xf32> to vector<8x128xf32>
    %26 = arith.addf %24, %25 : vector<8x128xf32>
    %27 = arith.negf %26 : vector<8x128xf32>
    %28 = math.exp %27 : vector<8x128xf32>
    %cst_21 = arith.constant 1.000000e+00 : f32
    %29 = vector.broadcast %cst_21 : f32 to vector<8x128xf32>
    %30 = arith.addf %29, %28 : vector<8x128xf32>
    %31 = arith.divf %29, %30 : vector<8x128xf32>
    %32 = vector.extract_strided_slice %20 {offsets = [0, 128], sizes = [8, 128], strides = [1, 1]} : vector<8x384xf32> to vector<8x128xf32>
    %33 = vector.extract_strided_slice %23 {offsets = [0, 128], sizes = [8, 128], strides = [1, 1]} : vector<8x384xf32> to vector<8x128xf32>
    %34 = arith.addf %32, %33 : vector<8x128xf32>
    %35 = arith.negf %34 : vector<8x128xf32>
    %36 = math.exp %35 : vector<8x128xf32>
    %cst_22 = arith.constant 1.000000e+00 : f32
    %37 = vector.broadcast %cst_22 : f32 to vector<8x128xf32>
    %38 = arith.addf %37, %36 : vector<8x128xf32>
    %39 = arith.divf %37, %38 : vector<8x128xf32>
    %40 = vector.extract_strided_slice %20 {offsets = [0, 256], sizes = [8, 128], strides = [1, 1]} : vector<8x384xf32> to vector<8x128xf32>
    %41 = vector.extract_strided_slice %23 {offsets = [0, 256], sizes = [8, 128], strides = [1, 1]} : vector<8x384xf32> to vector<8x128xf32>
    %c0_23 = arith.constant 0 : index
    %c0_24 = arith.constant 0 : index
    %42 = vector.load %arg8[%c0_23, %c0_24] : memref<1x128xf32, #tpu.memory_space<vmem>>, vector<1x128xf32>
    %43 = vector.broadcast %42 : vector<1x128xf32> to vector<8x128xf32>
    %44 = arith.addf %41, %43 : vector<8x128xf32>
    %45 = arith.mulf %31, %44 : vector<8x128xf32>
    %46 = arith.addf %40, %45 : vector<8x128xf32>
    %47 = math.tanh %46 : vector<8x128xf32>
    %cst_25 = arith.constant 1.000000e+00 : f32
    %48 = vector.broadcast %cst_25 : f32 to vector<8x128xf32>
    %49 = arith.subf %48, %39 : vector<8x128xf32>
    %50 = arith.mulf %49, %47 : vector<8x128xf32>
    %51 = arith.mulf %39, %16 : vector<8x128xf32>
    %52 = arith.addf %50, %51 : vector<8x128xf32>
    %53 = arith.addi %4, %c0_i32_15 : i32
    %54 = vector.broadcast %53 : i32 to vector<8x1xi32>
    %55 = arith.cmpi slt, %54, %3 : vector<8x1xi32>
    %56 = vector.shape_cast %55 : vector<8x1xi1> to vector<8x1xi1>
    %57 = vector.broadcast %56 : vector<8x1xi1> to vector<8x128xi1>
    %58 = arith.select %57, %52, %16 : vector<8x128xi1>, vector<8x128xf32>
    %59 = arith.truncf %58 : vector<8x128xf32> to vector<8x128xbf16>
    %60 = arith.index_cast %c0_i32_15 : i32 to index
    %c0_26 = arith.constant 0 : index
    %c0_27 = arith.constant 0 : index
    %61 = vector.load %arg17[%60, %c0_26, %c0_27] : memref<8x8x128xbf16, #tpu.memory_space<vmem>>, vector<1x8x128xbf16>
    %62 = vector.shape_cast %61 : vector<1x8x128xbf16> to vector<8x128xbf16>
    %63 = vector.shape_cast %59 : vector<8x128xbf16> to vector<1x8x128xbf16>
    tpu.vector_store %arg17[%60, %c0_26, %c0_27], %63 {strides = array<i32>} : memref<8x8x128xbf16, #tpu.memory_space<vmem>>, vector<1x8x128xbf16>,
    %c1_i32 = arith.constant 1 : i32
    %64 = arith.index_cast %c1_i32 : i32 to index
    %c0_28 = arith.constant 0 : index
    %c0_29 = arith.constant 0 : index
    %65 = vector.load %arg16[%64, %c0_28, %c0_29] : memref<8x8x384xbf16, #tpu.memory_space<vmem>>, vector<1x8x384xbf16>
    %66 = vector.shape_cast %65 : vector<1x8x384xbf16> to vector<8x384xbf16>
    %67 = arith.extf %66 : vector<8x384xbf16> to vector<8x384xf32>
    %68 = arith.truncf %58 : vector<8x128xf32> to vector<8x128xbf16>
    %c0_30 = arith.constant 0 : index
    %c0_31 = arith.constant 0 : index
    %69 = vector.load %arg6[%c0_30, %c0_31] : memref<128x384xbf16, #tpu.memory_space<vmem>>, vector<128x384xbf16>
    %cst_32 = arith.constant dense<0.000000e+00> : vector<8x384xf32>
    %70 = tpu.matmul %68, %69, %cst_32 {dimension_numbers = #tpu.dot_dimension_numbers<[1], [0], [0], [1], [0, 0, 1, 1], [], []>} : vector<8x128xbf16>, vector<128x384xbf16>, vector<8x384xf32> -> vector<8x384xf32>
    %71 = vector.extract_strided_slice %67 {offsets = [0, 0], sizes = [8, 128], strides = [1, 1]} : vector<8x384xf32> to vector<8x128xf32>
    %72 = vector.extract_strided_slice %70 {offsets = [0, 0], sizes = [8, 128], strides = [1, 1]} : vector<8x384xf32> to vector<8x128xf32>
    %73 = arith.addf %71, %72 : vector<8x128xf32>
    %74 = arith.negf %73 : vector<8x128xf32>
    %75 = math.exp %74 : vector<8x128xf32>
    %cst_33 = arith.constant 1.000000e+00 : f32
    %76 = vector.broadcast %cst_33 : f32 to vector<8x128xf32>
    %77 = arith.addf %76, %75 : vector<8x128xf32>
    %78 = arith.divf %76, %77 : vector<8x128xf32>
    %79 = vector.extract_strided_slice %67 {offsets = [0, 128], sizes = [8, 128], strides = [1, 1]} : vector<8x384xf32> to vector<8x128xf32>
    %80 = vector.extract_strided_slice %70 {offsets = [0, 128], sizes = [8, 128], strides = [1, 1]} : vector<8x384xf32> to vector<8x128xf32>
    %81 = arith.addf %79, %80 : vector<8x128xf32>
    %82 = arith.negf %81 : vector<8x128xf32>
    %83 = math.exp %82 : vector<8x128xf32>
    %cst_34 = arith.constant 1.000000e+00 : f32
    %84 = vector.broadcast %cst_34 : f32 to vector<8x128xf32>
    %85 = arith.addf %84, %83 : vector<8x128xf32>
    %86 = arith.divf %84, %85 : vector<8x128xf32>
    %87 = vector.extract_strided_slice %67 {offsets = [0, 256], sizes = [8, 128], strides = [1, 1]} : vector<8x384xf32> to vector<8x128xf32>
    %88 = vector.extract_strided_slice %70 {offsets = [0, 256], sizes = [8, 128], strides = [1, 1]} : vector<8x384xf32> to vector<8x128xf32>
    %c0_35 = arith.constant 0 : index
    %c0_36 = arith.constant 0 : index
    %89 = vector.load %arg8[%c0_35, %c0_36] : memref<1x128xf32, #tpu.memory_space<vmem>>, vector<1x128xf32>
    %90 = vector.broadcast %89 : vector<1x128xf32> to vector<8x128xf32>
    %91 = arith.addf %88, %90 : vector<8x128xf32>
    %92 = arith.mulf %78, %91 : vector<8x128xf32>
    %93 = arith.addf %87, %92 : vector<8x128xf32>
    %94 = math.tanh %93 : vector<8x128xf32>
    %cst_37 = arith.constant 1.000000e+00 : f32
    %95 = vector.broadcast %cst_37 : f32 to vector<8x128xf32>
    %96 = arith.subf %95, %86 : vector<8x128xf32>
    %97 = arith.mulf %96, %94 : vector<8x128xf32>
    %98 = arith.mulf %86, %58 : vector<8x128xf32>
    %99 = arith.addf %97, %98 : vector<8x128xf32>
    %100 = arith.addi %4, %c1_i32 : i32
    %101 = vector.broadcast %100 : i32 to vector<8x1xi32>
    %102 = arith.cmpi slt, %101, %3 : vector<8x1xi32>
    %103 = vector.shape_cast %102 : vector<8x1xi1> to vector<8x1xi1>
    %104 = vector.broadcast %103 : vector<8x1xi1> to vector<8x128xi1>
    %105 = arith.select %104, %99, %58 : vector<8x128xi1>, vector<8x128xf32>
    %106 = arith.truncf %105 : vector<8x128xf32> to vector<8x128xbf16>
    %107 = arith.index_cast %c1_i32 : i32 to index
    %c0_38 = arith.constant 0 : index
    %c0_39 = arith.constant 0 : index
    %108 = vector.load %arg17[%107, %c0_38, %c0_39] : memref<8x8x128xbf16, #tpu.memory_space<vmem>>, vector<1x8x128xbf16>
    %109 = vector.shape_cast %108 : vector<1x8x128xbf16> to vector<8x128xbf16>
    %110 = vector.shape_cast %106 : vector<8x128xbf16> to vector<1x8x128xbf16>
    tpu.vector_store %arg17[%107, %c0_38, %c0_39], %110 {strides = array<i32>} : memref<8x8x128xbf16, #tpu.memory_space<vmem>>, vector<1x8x128xbf16>,
    %c2_i32 = arith.constant 2 : i32
    %111 = arith.index_cast %c2_i32 : i32 to index
    %c0_40 = arith.constant 0 : index
    %c0_41 = arith.constant 0 : index
    %112 = vector.load %arg16[%111, %c0_40, %c0_41] : memref<8x8x384xbf16, #tpu.memory_space<vmem>>, vector<1x8x384xbf16>
    %113 = vector.shape_cast %112 : vector<1x8x384xbf16> to vector<8x384xbf16>
    %114 = arith.extf %113 : vector<8x384xbf16> to vector<8x384xf32>
    %115 = arith.truncf %105 : vector<8x128xf32> to vector<8x128xbf16>
    %c0_42 = arith.constant 0 : index
    %c0_43 = arith.constant 0 : index
    %116 = vector.load %arg6[%c0_42, %c0_43] : memref<128x384xbf16, #tpu.memory_space<vmem>>, vector<128x384xbf16>
    %cst_44 = arith.constant dense<0.000000e+00> : vector<8x384xf32>
    %117 = tpu.matmul %115, %116, %cst_44 {dimension_numbers = #tpu.dot_dimension_numbers<[1], [0], [0], [1], [0, 0, 1, 1], [], []>} : vector<8x128xbf16>, vector<128x384xbf16>, vector<8x384xf32> -> vector<8x384xf32>
    %118 = vector.extract_strided_slice %114 {offsets = [0, 0], sizes = [8, 128], strides = [1, 1]} : vector<8x384xf32> to vector<8x128xf32>
    %119 = vector.extract_strided_slice %117 {offsets = [0, 0], sizes = [8, 128], strides = [1, 1]} : vector<8x384xf32> to vector<8x128xf32>
    %120 = arith.addf %118, %119 : vector<8x128xf32>
    %121 = arith.negf %120 : vector<8x128xf32>
    %122 = math.exp %121 : vector<8x128xf32>
    %cst_45 = arith.constant 1.000000e+00 : f32
    %123 = vector.broadcast %cst_45 : f32 to vector<8x128xf32>
    %124 = arith.addf %123, %122 : vector<8x128xf32>
    %125 = arith.divf %123, %124 : vector<8x128xf32>
    %126 = vector.extract_strided_slice %114 {offsets = [0, 128], sizes = [8, 128], strides = [1, 1]} : vector<8x384xf32> to vector<8x128xf32>
    %127 = vector.extract_strided_slice %117 {offsets = [0, 128], sizes = [8, 128], strides = [1, 1]} : vector<8x384xf32> to vector<8x128xf32>
    %128 = arith.addf %126, %127 : vector<8x128xf32>
    %129 = arith.negf %128 : vector<8x128xf32>
    %130 = math.exp %129 : vector<8x128xf32>
    %cst_46 = arith.constant 1.000000e+00 : f32
    %131 = vector.broadcast %cst_46 : f32 to vector<8x128xf32>
    %132 = arith.addf %131, %130 : vector<8x128xf32>
    %133 = arith.divf %131, %132 : vector<8x128xf32>
    %134 = vector.extract_strided_slice %114 {offsets = [0, 256], sizes = [8, 128], strides = [1, 1]} : vector<8x384xf32> to vector<8x128xf32>
    %135 = vector.extract_strided_slice %117 {offsets = [0, 256], sizes = [8, 128], strides = [1, 1]} : vector<8x384xf32> to vector<8x128xf32>
    %c0_47 = arith.constant 0 : index
    %c0_48 = arith.constant 0 : index
    %136 = vector.load %arg8[%c0_47, %c0_48] : memref<1x128xf32, #tpu.memory_space<vmem>>, vector<1x128xf32>
    %137 = vector.broadcast %136 : vector<1x128xf32> to vector<8x128xf32>
    %138 = arith.addf %135, %137 : vector<8x128xf32>
    %139 = arith.mulf %125, %138 : vector<8x128xf32>
    %140 = arith.addf %134, %139 : vector<8x128xf32>
    %141 = math.tanh %140 : vector<8x128xf32>
    %cst_49 = arith.constant 1.000000e+00 : f32
    %142 = vector.broadcast %cst_49 : f32 to vector<8x128xf32>
    %143 = arith.subf %142, %133 : vector<8x128xf32>
    %144 = arith.mulf %143, %141 : vector<8x128xf32>
    %145 = arith.mulf %133, %105 : vector<8x128xf32>
    %146 = arith.addf %144, %145 : vector<8x128xf32>
    %147 = arith.addi %4, %c2_i32 : i32
    %148 = vector.broadcast %147 : i32 to vector<8x1xi32>
    %149 = arith.cmpi slt, %148, %3 : vector<8x1xi32>
    %150 = vector.shape_cast %149 : vector<8x1xi1> to vector<8x1xi1>
    %151 = vector.broadcast %150 : vector<8x1xi1> to vector<8x128xi1>
    %152 = arith.select %151, %146, %105 : vector<8x128xi1>, vector<8x128xf32>
    %153 = arith.truncf %152 : vector<8x128xf32> to vector<8x128xbf16>
    %154 = arith.index_cast %c2_i32 : i32 to index
    %c0_50 = arith.constant 0 : index
    %c0_51 = arith.constant 0 : index
    %155 = vector.load %arg17[%154, %c0_50, %c0_51] : memref<8x8x128xbf16, #tpu.memory_space<vmem>>, vector<1x8x128xbf16>
    %156 = vector.shape_cast %155 : vector<1x8x128xbf16> to vector<8x128xbf16>
    %157 = vector.shape_cast %153 : vector<8x128xbf16> to vector<1x8x128xbf16>
    tpu.vector_store %arg17[%154, %c0_50, %c0_51], %157 {strides = array<i32>} : memref<8x8x128xbf16, #tpu.memory_space<vmem>>, vector<1x8x128xbf16>,
    %c3_i32 = arith.constant 3 : i32
    %158 = arith.index_cast %c3_i32 : i32 to index
    %c0_52 = arith.constant 0 : index
    %c0_53 = arith.constant 0 : index
    %159 = vector.load %arg16[%158, %c0_52, %c0_53] : memref<8x8x384xbf16, #tpu.memory_space<vmem>>, vector<1x8x384xbf16>
    %160 = vector.shape_cast %159 : vector<1x8x384xbf16> to vector<8x384xbf16>
    %161 = arith.extf %160 : vector<8x384xbf16> to vector<8x384xf32>
    %162 = arith.truncf %152 : vector<8x128xf32> to vector<8x128xbf16>
    %c0_54 = arith.constant 0 : index
    %c0_55 = arith.constant 0 : index
    %163 = vector.load %arg6[%c0_54, %c0_55] : memref<128x384xbf16, #tpu.memory_space<vmem>>, vector<128x384xbf16>
    %cst_56 = arith.constant dense<0.000000e+00> : vector<8x384xf32>
    %164 = tpu.matmul %162, %163, %cst_56 {dimension_numbers = #tpu.dot_dimension_numbers<[1], [0], [0], [1], [0, 0, 1, 1], [], []>} : vector<8x128xbf16>, vector<128x384xbf16>, vector<8x384xf32> -> vector<8x384xf32>
    %165 = vector.extract_strided_slice %161 {offsets = [0, 0], sizes = [8, 128], strides = [1, 1]} : vector<8x384xf32> to vector<8x128xf32>
    %166 = vector.extract_strided_slice %164 {offsets = [0, 0], sizes = [8, 128], strides = [1, 1]} : vector<8x384xf32> to vector<8x128xf32>
    %167 = arith.addf %165, %166 : vector<8x128xf32>
    %168 = arith.negf %167 : vector<8x128xf32>
    %169 = math.exp %168 : vector<8x128xf32>
    %cst_57 = arith.constant 1.000000e+00 : f32
    %170 = vector.broadcast %cst_57 : f32 to vector<8x128xf32>
    %171 = arith.addf %170, %169 : vector<8x128xf32>
    %172 = arith.divf %170, %171 : vector<8x128xf32>
    %173 = vector.extract_strided_slice %161 {offsets = [0, 128], sizes = [8, 128], strides = [1, 1]} : vector<8x384xf32> to vector<8x128xf32>
    %174 = vector.extract_strided_slice %164 {offsets = [0, 128], sizes = [8, 128], strides = [1, 1]} : vector<8x384xf32> to vector<8x128xf32>
    %175 = arith.addf %173, %174 : vector<8x128xf32>
    %176 = arith.negf %175 : vector<8x128xf32>
    %177 = math.exp %176 : vector<8x128xf32>
    %cst_58 = arith.constant 1.000000e+00 : f32
    %178 = vector.broadcast %cst_58 : f32 to vector<8x128xf32>
    %179 = arith.addf %178, %177 : vector<8x128xf32>
    %180 = arith.divf %178, %179 : vector<8x128xf32>
    %181 = vector.extract_strided_slice %161 {offsets = [0, 256], sizes = [8, 128], strides = [1, 1]} : vector<8x384xf32> to vector<8x128xf32>
    %182 = vector.extract_strided_slice %164 {offsets = [0, 256], sizes = [8, 128], strides = [1, 1]} : vector<8x384xf32> to vector<8x128xf32>
    %c0_59 = arith.constant 0 : index
    %c0_60 = arith.constant 0 : index
    %183 = vector.load %arg8[%c0_59, %c0_60] : memref<1x128xf32, #tpu.memory_space<vmem>>, vector<1x128xf32>
    %184 = vector.broadcast %183 : vector<1x128xf32> to vector<8x128xf32>
    %185 = arith.addf %182, %184 : vector<8x128xf32>
    %186 = arith.mulf %172, %185 : vector<8x128xf32>
    %187 = arith.addf %181, %186 : vector<8x128xf32>
    %188 = math.tanh %187 : vector<8x128xf32>
    %cst_61 = arith.constant 1.000000e+00 : f32
    %189 = vector.broadcast %cst_61 : f32 to vector<8x128xf32>
    %190 = arith.subf %189, %180 : vector<8x128xf32>
    %191 = arith.mulf %190, %188 : vector<8x128xf32>
    %192 = arith.mulf %180, %152 : vector<8x128xf32>
    %193 = arith.addf %191, %192 : vector<8x128xf32>
    %194 = arith.addi %4, %c3_i32 : i32
    %195 = vector.broadcast %194 : i32 to vector<8x1xi32>
    %196 = arith.cmpi slt, %195, %3 : vector<8x1xi32>
    %197 = vector.shape_cast %196 : vector<8x1xi1> to vector<8x1xi1>
    %198 = vector.broadcast %197 : vector<8x1xi1> to vector<8x128xi1>
    %199 = arith.select %198, %193, %152 : vector<8x128xi1>, vector<8x128xf32>
    %200 = arith.truncf %199 : vector<8x128xf32> to vector<8x128xbf16>
    %201 = arith.index_cast %c3_i32 : i32 to index
    %c0_62 = arith.constant 0 : index
    %c0_63 = arith.constant 0 : index
    %202 = vector.load %arg17[%201, %c0_62, %c0_63] : memref<8x8x128xbf16, #tpu.memory_space<vmem>>, vector<1x8x128xbf16>
    %203 = vector.shape_cast %202 : vector<1x8x128xbf16> to vector<8x128xbf16>
    %204 = vector.shape_cast %200 : vector<8x128xbf16> to vector<1x8x128xbf16>
    tpu.vector_store %arg17[%201, %c0_62, %c0_63], %204 {strides = array<i32>} : memref<8x8x128xbf16, #tpu.memory_space<vmem>>, vector<1x8x128xbf16>,
    %c4_i32 = arith.constant 4 : i32
    %205 = arith.index_cast %c4_i32 : i32 to index
    %c0_64 = arith.constant 0 : index
    %c0_65 = arith.constant 0 : index
    %206 = vector.load %arg16[%205, %c0_64, %c0_65] : memref<8x8x384xbf16, #tpu.memory_space<vmem>>, vector<1x8x384xbf16>
    %207 = vector.shape_cast %206 : vector<1x8x384xbf16> to vector<8x384xbf16>
    %208 = arith.extf %207 : vector<8x384xbf16> to vector<8x384xf32>
    %209 = arith.truncf %199 : vector<8x128xf32> to vector<8x128xbf16>
    %c0_66 = arith.constant 0 : index
    %c0_67 = arith.constant 0 : index
    %210 = vector.load %arg6[%c0_66, %c0_67] : memref<128x384xbf16, #tpu.memory_space<vmem>>, vector<128x384xbf16>
    %cst_68 = arith.constant dense<0.000000e+00> : vector<8x384xf32>
    %211 = tpu.matmul %209, %210, %cst_68 {dimension_numbers = #tpu.dot_dimension_numbers<[1], [0], [0], [1], [0, 0, 1, 1], [], []>} : vector<8x128xbf16>, vector<128x384xbf16>, vector<8x384xf32> -> vector<8x384xf32>
    %212 = vector.extract_strided_slice %208 {offsets = [0, 0], sizes = [8, 128], strides = [1, 1]} : vector<8x384xf32> to vector<8x128xf32>
    %213 = vector.extract_strided_slice %211 {offsets = [0, 0], sizes = [8, 128], strides = [1, 1]} : vector<8x384xf32> to vector<8x128xf32>
    %214 = arith.addf %212, %213 : vector<8x128xf32>
    %215 = arith.negf %214 : vector<8x128xf32>
    %216 = math.exp %215 : vector<8x128xf32>
    %cst_69 = arith.constant 1.000000e+00 : f32
    %217 = vector.broadcast %cst_69 : f32 to vector<8x128xf32>
    %218 = arith.addf %217, %216 : vector<8x128xf32>
    %219 = arith.divf %217, %218 : vector<8x128xf32>
    %220 = vector.extract_strided_slice %208 {offsets = [0, 128], sizes = [8, 128], strides = [1, 1]} : vector<8x384xf32> to vector<8x128xf32>
    %221 = vector.extract_strided_slice %211 {offsets = [0, 128], sizes = [8, 128], strides = [1, 1]} : vector<8x384xf32> to vector<8x128xf32>
    %222 = arith.addf %220, %221 : vector<8x128xf32>
    %223 = arith.negf %222 : vector<8x128xf32>
    %224 = math.exp %223 : vector<8x128xf32>
    %cst_70 = arith.constant 1.000000e+00 : f32
    %225 = vector.broadcast %cst_70 : f32 to vector<8x128xf32>
    %226 = arith.addf %225, %224 : vector<8x128xf32>
    %227 = arith.divf %225, %226 : vector<8x128xf32>
    %228 = vector.extract_strided_slice %208 {offsets = [0, 256], sizes = [8, 128], strides = [1, 1]} : vector<8x384xf32> to vector<8x128xf32>
    %229 = vector.extract_strided_slice %211 {offsets = [0, 256], sizes = [8, 128], strides = [1, 1]} : vector<8x384xf32> to vector<8x128xf32>
    %c0_71 = arith.constant 0 : index
    %c0_72 = arith.constant 0 : index
    %230 = vector.load %arg8[%c0_71, %c0_72] : memref<1x128xf32, #tpu.memory_space<vmem>>, vector<1x128xf32>
    %231 = vector.broadcast %230 : vector<1x128xf32> to vector<8x128xf32>
    %232 = arith.addf %229, %231 : vector<8x128xf32>
    %233 = arith.mulf %219, %232 : vector<8x128xf32>
    %234 = arith.addf %228, %233 : vector<8x128xf32>
    %235 = math.tanh %234 : vector<8x128xf32>
    %cst_73 = arith.constant 1.000000e+00 : f32
    %236 = vector.broadcast %cst_73 : f32 to vector<8x128xf32>
    %237 = arith.subf %236, %227 : vector<8x128xf32>
    %238 = arith.mulf %237, %235 : vector<8x128xf32>
    %239 = arith.mulf %227, %199 : vector<8x128xf32>
    %240 = arith.addf %238, %239 : vector<8x128xf32>
    %241 = arith.addi %4, %c4_i32 : i32
    %242 = vector.broadcast %241 : i32 to vector<8x1xi32>
    %243 = arith.cmpi slt, %242, %3 : vector<8x1xi32>
    %244 = vector.shape_cast %243 : vector<8x1xi1> to vector<8x1xi1>
    %245 = vector.broadcast %244 : vector<8x1xi1> to vector<8x128xi1>
    %246 = arith.select %245, %240, %199 : vector<8x128xi1>, vector<8x128xf32>
    %247 = arith.truncf %246 : vector<8x128xf32> to vector<8x128xbf16>
    %248 = arith.index_cast %c4_i32 : i32 to index
    %c0_74 = arith.constant 0 : index
    %c0_75 = arith.constant 0 : index
    %249 = vector.load %arg17[%248, %c0_74, %c0_75] : memref<8x8x128xbf16, #tpu.memory_space<vmem>>, vector<1x8x128xbf16>
    %250 = vector.shape_cast %249 : vector<1x8x128xbf16> to vector<8x128xbf16>
    %251 = vector.shape_cast %247 : vector<8x128xbf16> to vector<1x8x128xbf16>
    tpu.vector_store %arg17[%248, %c0_74, %c0_75], %251 {strides = array<i32>} : memref<8x8x128xbf16, #tpu.memory_space<vmem>>, vector<1x8x128xbf16>,
    %c5_i32 = arith.constant 5 : i32
    %252 = arith.index_cast %c5_i32 : i32 to index
    %c0_76 = arith.constant 0 : index
    %c0_77 = arith.constant 0 : index
    %253 = vector.load %arg16[%252, %c0_76, %c0_77] : memref<8x8x384xbf16, #tpu.memory_space<vmem>>, vector<1x8x384xbf16>
    %254 = vector.shape_cast %253 : vector<1x8x384xbf16> to vector<8x384xbf16>
    %255 = arith.extf %254 : vector<8x384xbf16> to vector<8x384xf32>
    %256 = arith.truncf %246 : vector<8x128xf32> to vector<8x128xbf16>
    %c0_78 = arith.constant 0 : index
    %c0_79 = arith.constant 0 : index
    %257 = vector.load %arg6[%c0_78, %c0_79] : memref<128x384xbf16, #tpu.memory_space<vmem>>, vector<128x384xbf16>
    %cst_80 = arith.constant dense<0.000000e+00> : vector<8x384xf32>
    %258 = tpu.matmul %256, %257, %cst_80 {dimension_numbers = #tpu.dot_dimension_numbers<[1], [0], [0], [1], [0, 0, 1, 1], [], []>} : vector<8x128xbf16>, vector<128x384xbf16>, vector<8x384xf32> -> vector<8x384xf32>
    %259 = vector.extract_strided_slice %255 {offsets = [0, 0], sizes = [8, 128], strides = [1, 1]} : vector<8x384xf32> to vector<8x128xf32>
    %260 = vector.extract_strided_slice %258 {offsets = [0, 0], sizes = [8, 128], strides = [1, 1]} : vector<8x384xf32> to vector<8x128xf32>
    %261 = arith.addf %259, %260 : vector<8x128xf32>
    %262 = arith.negf %261 : vector<8x128xf32>
    %263 = math.exp %262 : vector<8x128xf32>
    %cst_81 = arith.constant 1.000000e+00 : f32
    %264 = vector.broadcast %cst_81 : f32 to vector<8x128xf32>
    %265 = arith.addf %264, %263 : vector<8x128xf32>
    %266 = arith.divf %264, %265 : vector<8x128xf32>
    %267 = vector.extract_strided_slice %255 {offsets = [0, 128], sizes = [8, 128], strides = [1, 1]} : vector<8x384xf32> to vector<8x128xf32>
    %268 = vector.extract_strided_slice %258 {offsets = [0, 128], sizes = [8, 128], strides = [1, 1]} : vector<8x384xf32> to vector<8x128xf32>
    %269 = arith.addf %267, %268 : vector<8x128xf32>
    %270 = arith.negf %269 : vector<8x128xf32>
    %271 = math.exp %270 : vector<8x128xf32>
    %cst_82 = arith.constant 1.000000e+00 : f32
    %272 = vector.broadcast %cst_82 : f32 to vector<8x128xf32>
    %273 = arith.addf %272, %271 : vector<8x128xf32>
    %274 = arith.divf %272, %273 : vector<8x128xf32>
    %275 = vector.extract_strided_slice %255 {offsets = [0, 256], sizes = [8, 128], strides = [1, 1]} : vector<8x384xf32> to vector<8x128xf32>
    %276 = vector.extract_strided_slice %258 {offsets = [0, 256], sizes = [8, 128], strides = [1, 1]} : vector<8x384xf32> to vector<8x128xf32>
    %c0_83 = arith.constant 0 : index
    %c0_84 = arith.constant 0 : index
    %277 = vector.load %arg8[%c0_83, %c0_84] : memref<1x128xf32, #tpu.memory_space<vmem>>, vector<1x128xf32>
    %278 = vector.broadcast %277 : vector<1x128xf32> to vector<8x128xf32>
    %279 = arith.addf %276, %278 : vector<8x128xf32>
    %280 = arith.mulf %266, %279 : vector<8x128xf32>
    %281 = arith.addf %275, %280 : vector<8x128xf32>
    %282 = math.tanh %281 : vector<8x128xf32>
    %cst_85 = arith.constant 1.000000e+00 : f32
    %283 = vector.broadcast %cst_85 : f32 to vector<8x128xf32>
    %284 = arith.subf %283, %274 : vector<8x128xf32>
    %285 = arith.mulf %284, %282 : vector<8x128xf32>
    %286 = arith.mulf %274, %246 : vector<8x128xf32>
    %287 = arith.addf %285, %286 : vector<8x128xf32>
    %288 = arith.addi %4, %c5_i32 : i32
    %289 = vector.broadcast %288 : i32 to vector<8x1xi32>
    %290 = arith.cmpi slt, %289, %3 : vector<8x1xi32>
    %291 = vector.shape_cast %290 : vector<8x1xi1> to vector<8x1xi1>
    %292 = vector.broadcast %291 : vector<8x1xi1> to vector<8x128xi1>
    %293 = arith.select %292, %287, %246 : vector<8x128xi1>, vector<8x128xf32>
    %294 = arith.truncf %293 : vector<8x128xf32> to vector<8x128xbf16>
    %295 = arith.index_cast %c5_i32 : i32 to index
    %c0_86 = arith.constant 0 : index
    %c0_87 = arith.constant 0 : index
    %296 = vector.load %arg17[%295, %c0_86, %c0_87] : memref<8x8x128xbf16, #tpu.memory_space<vmem>>, vector<1x8x128xbf16>
    %297 = vector.shape_cast %296 : vector<1x8x128xbf16> to vector<8x128xbf16>
    %298 = vector.shape_cast %294 : vector<8x128xbf16> to vector<1x8x128xbf16>
    tpu.vector_store %arg17[%295, %c0_86, %c0_87], %298 {strides = array<i32>} : memref<8x8x128xbf16, #tpu.memory_space<vmem>>, vector<1x8x128xbf16>,
    %c6_i32 = arith.constant 6 : i32
    %299 = arith.index_cast %c6_i32 : i32 to index
    %c0_88 = arith.constant 0 : index
    %c0_89 = arith.constant 0 : index
    %300 = vector.load %arg16[%299, %c0_88, %c0_89] : memref<8x8x384xbf16, #tpu.memory_space<vmem>>, vector<1x8x384xbf16>
    %301 = vector.shape_cast %300 : vector<1x8x384xbf16> to vector<8x384xbf16>
    %302 = arith.extf %301 : vector<8x384xbf16> to vector<8x384xf32>
    %303 = arith.truncf %293 : vector<8x128xf32> to vector<8x128xbf16>
    %c0_90 = arith.constant 0 : index
    %c0_91 = arith.constant 0 : index
    %304 = vector.load %arg6[%c0_90, %c0_91] : memref<128x384xbf16, #tpu.memory_space<vmem>>, vector<128x384xbf16>
    %cst_92 = arith.constant dense<0.000000e+00> : vector<8x384xf32>
    %305 = tpu.matmul %303, %304, %cst_92 {dimension_numbers = #tpu.dot_dimension_numbers<[1], [0], [0], [1], [0, 0, 1, 1], [], []>} : vector<8x128xbf16>, vector<128x384xbf16>, vector<8x384xf32> -> vector<8x384xf32>
    %306 = vector.extract_strided_slice %302 {offsets = [0, 0], sizes = [8, 128], strides = [1, 1]} : vector<8x384xf32> to vector<8x128xf32>
    %307 = vector.extract_strided_slice %305 {offsets = [0, 0], sizes = [8, 128], strides = [1, 1]} : vector<8x384xf32> to vector<8x128xf32>
    %308 = arith.addf %306, %307 : vector<8x128xf32>
    %309 = arith.negf %308 : vector<8x128xf32>
    %310 = math.exp %309 : vector<8x128xf32>
    %cst_93 = arith.constant 1.000000e+00 : f32
    %311 = vector.broadcast %cst_93 : f32 to vector<8x128xf32>
    %312 = arith.addf %311, %310 : vector<8x128xf32>
    %313 = arith.divf %311, %312 : vector<8x128xf32>
    %314 = vector.extract_strided_slice %302 {offsets = [0, 128], sizes = [8, 128], strides = [1, 1]} : vector<8x384xf32> to vector<8x128xf32>
    %315 = vector.extract_strided_slice %305 {offsets = [0, 128], sizes = [8, 128], strides = [1, 1]} : vector<8x384xf32> to vector<8x128xf32>
    %316 = arith.addf %314, %315 : vector<8x128xf32>
    %317 = arith.negf %316 : vector<8x128xf32>
    %318 = math.exp %317 : vector<8x128xf32>
    %cst_94 = arith.constant 1.000000e+00 : f32
    %319 = vector.broadcast %cst_94 : f32 to vector<8x128xf32>
    %320 = arith.addf %319, %318 : vector<8x128xf32>
    %321 = arith.divf %319, %320 : vector<8x128xf32>
    %322 = vector.extract_strided_slice %302 {offsets = [0, 256], sizes = [8, 128], strides = [1, 1]} : vector<8x384xf32> to vector<8x128xf32>
    %323 = vector.extract_strided_slice %305 {offsets = [0, 256], sizes = [8, 128], strides = [1, 1]} : vector<8x384xf32> to vector<8x128xf32>
    %c0_95 = arith.constant 0 : index
    %c0_96 = arith.constant 0 : index
    %324 = vector.load %arg8[%c0_95, %c0_96] : memref<1x128xf32, #tpu.memory_space<vmem>>, vector<1x128xf32>
    %325 = vector.broadcast %324 : vector<1x128xf32> to vector<8x128xf32>
    %326 = arith.addf %323, %325 : vector<8x128xf32>
    %327 = arith.mulf %313, %326 : vector<8x128xf32>
    %328 = arith.addf %322, %327 : vector<8x128xf32>
    %329 = math.tanh %328 : vector<8x128xf32>
    %cst_97 = arith.constant 1.000000e+00 : f32
    %330 = vector.broadcast %cst_97 : f32 to vector<8x128xf32>
    %331 = arith.subf %330, %321 : vector<8x128xf32>
    %332 = arith.mulf %331, %329 : vector<8x128xf32>
    %333 = arith.mulf %321, %293 : vector<8x128xf32>
    %334 = arith.addf %332, %333 : vector<8x128xf32>
    %335 = arith.addi %4, %c6_i32 : i32
    %336 = vector.broadcast %335 : i32 to vector<8x1xi32>
    %337 = arith.cmpi slt, %336, %3 : vector<8x1xi32>
    %338 = vector.shape_cast %337 : vector<8x1xi1> to vector<8x1xi1>
    %339 = vector.broadcast %338 : vector<8x1xi1> to vector<8x128xi1>
    %340 = arith.select %339, %334, %293 : vector<8x128xi1>, vector<8x128xf32>
    %341 = arith.truncf %340 : vector<8x128xf32> to vector<8x128xbf16>
    %342 = arith.index_cast %c6_i32 : i32 to index
    %c0_98 = arith.constant 0 : index
    %c0_99 = arith.constant 0 : index
    %343 = vector.load %arg17[%342, %c0_98, %c0_99] : memref<8x8x128xbf16, #tpu.memory_space<vmem>>, vector<1x8x128xbf16>
    %344 = vector.shape_cast %343 : vector<1x8x128xbf16> to vector<8x128xbf16>
    %345 = vector.shape_cast %341 : vector<8x128xbf16> to vector<1x8x128xbf16>
    tpu.vector_store %arg17[%342, %c0_98, %c0_99], %345 {strides = array<i32>} : memref<8x8x128xbf16, #tpu.memory_space<vmem>>, vector<1x8x128xbf16>,
    %c7_i32 = arith.constant 7 : i32
    %346 = arith.index_cast %c7_i32 : i32 to index
    %c0_100 = arith.constant 0 : index
    %c0_101 = arith.constant 0 : index
    %347 = vector.load %arg16[%346, %c0_100, %c0_101] : memref<8x8x384xbf16, #tpu.memory_space<vmem>>, vector<1x8x384xbf16>
    %348 = vector.shape_cast %347 : vector<1x8x384xbf16> to vector<8x384xbf16>
    %349 = arith.extf %348 : vector<8x384xbf16> to vector<8x384xf32>
    %350 = arith.truncf %340 : vector<8x128xf32> to vector<8x128xbf16>
    %c0_102 = arith.constant 0 : index
    %c0_103 = arith.constant 0 : index
    %351 = vector.load %arg6[%c0_102, %c0_103] : memref<128x384xbf16, #tpu.memory_space<vmem>>, vector<128x384xbf16>
    %cst_104 = arith.constant dense<0.000000e+00> : vector<8x384xf32>
    %352 = tpu.matmul %350, %351, %cst_104 {dimension_numbers = #tpu.dot_dimension_numbers<[1], [0], [0], [1], [0, 0, 1, 1], [], []>} : vector<8x128xbf16>, vector<128x384xbf16>, vector<8x384xf32> -> vector<8x384xf32>
    %353 = vector.extract_strided_slice %349 {offsets = [0, 0], sizes = [8, 128], strides = [1, 1]} : vector<8x384xf32> to vector<8x128xf32>
    %354 = vector.extract_strided_slice %352 {offsets = [0, 0], sizes = [8, 128], strides = [1, 1]} : vector<8x384xf32> to vector<8x128xf32>
    %355 = arith.addf %353, %354 : vector<8x128xf32>
    %356 = arith.negf %355 : vector<8x128xf32>
    %357 = math.exp %356 : vector<8x128xf32>
    %cst_105 = arith.constant 1.000000e+00 : f32
    %358 = vector.broadcast %cst_105 : f32 to vector<8x128xf32>
    %359 = arith.addf %358, %357 : vector<8x128xf32>
    %360 = arith.divf %358, %359 : vector<8x128xf32>
    %361 = vector.extract_strided_slice %349 {offsets = [0, 128], sizes = [8, 128], strides = [1, 1]} : vector<8x384xf32> to vector<8x128xf32>
    %362 = vector.extract_strided_slice %352 {offsets = [0, 128], sizes = [8, 128], strides = [1, 1]} : vector<8x384xf32> to vector<8x128xf32>
    %363 = arith.addf %361, %362 : vector<8x128xf32>
    %364 = arith.negf %363 : vector<8x128xf32>
    %365 = math.exp %364 : vector<8x128xf32>
    %cst_106 = arith.constant 1.000000e+00 : f32
    %366 = vector.broadcast %cst_106 : f32 to vector<8x128xf32>
    %367 = arith.addf %366, %365 : vector<8x128xf32>
    %368 = arith.divf %366, %367 : vector<8x128xf32>
    %369 = vector.extract_strided_slice %349 {offsets = [0, 256], sizes = [8, 128], strides = [1, 1]} : vector<8x384xf32> to vector<8x128xf32>
    %370 = vector.extract_strided_slice %352 {offsets = [0, 256], sizes = [8, 128], strides = [1, 1]} : vector<8x384xf32> to vector<8x128xf32>
    %c0_107 = arith.constant 0 : index
    %c0_108 = arith.constant 0 : index
    %371 = vector.load %arg8[%c0_107, %c0_108] : memref<1x128xf32, #tpu.memory_space<vmem>>, vector<1x128xf32>
    %372 = vector.broadcast %371 : vector<1x128xf32> to vector<8x128xf32>
    %373 = arith.addf %370, %372 : vector<8x128xf32>
    %374 = arith.mulf %360, %373 : vector<8x128xf32>
    %375 = arith.addf %369, %374 : vector<8x128xf32>
    %376 = math.tanh %375 : vector<8x128xf32>
    %cst_109 = arith.constant 1.000000e+00 : f32
    %377 = vector.broadcast %cst_109 : f32 to vector<8x128xf32>
    %378 = arith.subf %377, %368 : vector<8x128xf32>
    %379 = arith.mulf %378, %376 : vector<8x128xf32>
    %380 = arith.mulf %368, %340 : vector<8x128xf32>
    %381 = arith.addf %379, %380 : vector<8x128xf32>
    %382 = arith.addi %4, %c7_i32 : i32
    %383 = vector.broadcast %382 : i32 to vector<8x1xi32>
    %384 = arith.cmpi slt, %383, %3 : vector<8x1xi32>
    %385 = vector.shape_cast %384 : vector<8x1xi1> to vector<8x1xi1>
    %386 = vector.broadcast %385 : vector<8x1xi1> to vector<8x128xi1>
    %387 = arith.select %386, %381, %340 : vector<8x128xi1>, vector<8x128xf32>
    %388 = arith.truncf %387 : vector<8x128xf32> to vector<8x128xbf16>
    %389 = arith.index_cast %c7_i32 : i32 to index
    %c0_110 = arith.constant 0 : index
    %c0_111 = arith.constant 0 : index
    %390 = vector.load %arg17[%389, %c0_110, %c0_111] : memref<8x8x128xbf16, #tpu.memory_space<vmem>>, vector<1x8x128xbf16>
    %391 = vector.shape_cast %390 : vector<1x8x128xbf16> to vector<8x128xbf16>
    %392 = vector.shape_cast %388 : vector<8x128xbf16> to vector<1x8x128xbf16>
    tpu.vector_store %arg17[%389, %c0_110, %c0_111], %392 {strides = array<i32>} : memref<8x8x128xbf16, #tpu.memory_space<vmem>>, vector<1x8x128xbf16>,
    %c8_i32_112 = arith.constant 8 : i32
    %c0_113 = arith.constant 0 : index
    %c0_114 = arith.constant 0 : index
    %c0_115 = arith.constant 0 : index
    %393 = vector.load %arg18[%c0_113, %c0_114, %c0_115] : memref<2x8x128xf32, #tpu.memory_space<vmem>>, vector<1x8x128xf32>
    %394 = vector.shape_cast %393 : vector<1x8x128xf32> to vector<8x128xf32>
    %395 = vector.shape_cast %387 : vector<8x128xf32> to vector<1x8x128xf32>
    tpu.vector_store %arg18[%c0_113, %c0_114, %c0_115], %395 {strides = array<i32>} : memref<2x8x128xf32, #tpu.memory_space<vmem>>, vector<1x8x128xf32>,
    %c0_116 = arith.constant 0 : index
    %c0_117 = arith.constant 0 : index
    %c0_118 = arith.constant 0 : index
    %396 = vector.load %arg17[%c0_116, %c0_117, %c0_118] : memref<8x8x128xbf16, #tpu.memory_space<vmem>>, vector<8x8x128xbf16>
    %397 = vector.shape_cast %396 : vector<8x8x128xbf16> to vector<64x128xbf16>
    %c0_119 = arith.constant 0 : index
    %c0_120 = arith.constant 0 : index
    %398 = vector.load %arg9[%c0_119, %c0_120] : memref<128x384xbf16, #tpu.memory_space<vmem>>, vector<128x384xbf16>
    %cst_121 = arith.constant dense<0.000000e+00> : vector<64x384xf32>
    %399 = tpu.matmul %397, %398, %cst_121 {dimension_numbers = #tpu.dot_dimension_numbers<[1], [0], [0], [1], [0, 0, 1, 1], [], []>} : vector<64x128xbf16>, vector<128x384xbf16>, vector<64x384xf32> -> vector<64x384xf32>
    %c0_122 = arith.constant 0 : index
    %c0_123 = arith.constant 0 : index
    %400 = vector.load %arg11[%c0_122, %c0_123] : memref<1x384xf32, #tpu.memory_space<vmem>>, vector<1x384xf32>
    %401 = vector.broadcast %400 : vector<1x384xf32> to vector<64x384xf32>
    %402 = arith.addf %399, %401 : vector<64x384xf32>
    %403 = vector.shape_cast %402 : vector<64x384xf32> to vector<8x8x384xf32>
    %404 = arith.truncf %403 : vector<8x8x384xf32> to vector<8x8x384xbf16>
    %c0_124 = arith.constant 0 : index
    %c0_125 = arith.constant 0 : index
    %c0_126 = arith.constant 0 : index
    %405 = vector.load %arg16[%c0_124, %c0_125, %c0_126] : memref<8x8x384xbf16, #tpu.memory_space<vmem>>, vector<8x8x384xbf16>
    tpu.vector_store %arg16[%c0_124, %c0_125, %c0_126], %404 {strides = array<i32>} : memref<8x8x384xbf16, #tpu.memory_space<vmem>>, vector<8x8x384xbf16>,
    %c1 = arith.constant 1 : index
    %c0_127 = arith.constant 0 : index
    %c0_128 = arith.constant 0 : index
    %406 = vector.load %arg18[%c1, %c0_127, %c0_128] : memref<2x8x128xf32, #tpu.memory_space<vmem>>, vector<1x8x128xf32>
    %407 = vector.shape_cast %406 : vector<1x8x128xf32> to vector<8x128xf32>
    %c0_i32_129 = arith.constant 0 : i32
    %408 = arith.index_cast %c0_i32_129 : i32 to index
    %c0_130 = arith.constant 0 : index
    %c0_131 = arith.constant 0 : index
    %409 = vector.load %arg16[%408, %c0_130, %c0_131] : memref<8x8x384xbf16, #tpu.memory_space<vmem>>, vector<1x8x384xbf16>
    %410 = vector.shape_cast %409 : vector<1x8x384xbf16> to vector<8x384xbf16>
    %411 = arith.extf %410 : vector<8x384xbf16> to vector<8x384xf32>
    %412 = arith.truncf %407 : vector<8x128xf32> to vector<8x128xbf16>
    %c0_132 = arith.constant 0 : index
    %c0_133 = arith.constant 0 : index
    %413 = vector.load %arg10[%c0_132, %c0_133] : memref<128x384xbf16, #tpu.memory_space<vmem>>, vector<128x384xbf16>
    %cst_134 = arith.constant dense<0.000000e+00> : vector<8x384xf32>
    %414 = tpu.matmul %412, %413, %cst_134 {dimension_numbers = #tpu.dot_dimension_numbers<[1], [0], [0], [1], [0, 0, 1, 1], [], []>} : vector<8x128xbf16>, vector<128x384xbf16>, vector<8x384xf32> -> vector<8x384xf32>
    %415 = vector.extract_strided_slice %411 {offsets = [0, 0], sizes = [8, 128], strides = [1, 1]} : vector<8x384xf32> to vector<8x128xf32>
    %416 = vector.extract_strided_slice %414 {offsets = [0, 0], sizes = [8, 128], strides = [1, 1]} : vector<8x384xf32> to vector<8x128xf32>
    %417 = arith.addf %415, %416 : vector<8x128xf32>
    %418 = arith.negf %417 : vector<8x128xf32>
    %419 = math.exp %418 : vector<8x128xf32>
    %cst_135 = arith.constant 1.000000e+00 : f32
    %420 = vector.broadcast %cst_135 : f32 to vector<8x128xf32>
    %421 = arith.addf %420, %419 : vector<8x128xf32>
    %422 = arith.divf %420, %421 : vector<8x128xf32>
    %423 = vector.extract_strided_slice %411 {offsets = [0, 128], sizes = [8, 128], strides = [1, 1]} : vector<8x384xf32> to vector<8x128xf32>
    %424 = vector.extract_strided_slice %414 {offsets = [0, 128], sizes = [8, 128], strides = [1, 1]} : vector<8x384xf32> to vector<8x128xf32>
    %425 = arith.addf %423, %424 : vector<8x128xf32>
    %426 = arith.negf %425 : vector<8x128xf32>
    %427 = math.exp %426 : vector<8x128xf32>
    %cst_136 = arith.constant 1.000000e+00 : f32
    %428 = vector.broadcast %cst_136 : f32 to vector<8x128xf32>
    %429 = arith.addf %428, %427 : vector<8x128xf32>
    %430 = arith.divf %428, %429 : vector<8x128xf32>
    %431 = vector.extract_strided_slice %411 {offsets = [0, 256], sizes = [8, 128], strides = [1, 1]} : vector<8x384xf32> to vector<8x128xf32>
    %432 = vector.extract_strided_slice %414 {offsets = [0, 256], sizes = [8, 128], strides = [1, 1]} : vector<8x384xf32> to vector<8x128xf32>
    %c0_137 = arith.constant 0 : index
    %c0_138 = arith.constant 0 : index
    %433 = vector.load %arg12[%c0_137, %c0_138] : memref<1x128xf32, #tpu.memory_space<vmem>>, vector<1x128xf32>
    %434 = vector.broadcast %433 : vector<1x128xf32> to vector<8x128xf32>
    %435 = arith.addf %432, %434 : vector<8x128xf32>
    %436 = arith.mulf %422, %435 : vector<8x128xf32>
    %437 = arith.addf %431, %436 : vector<8x128xf32>
    %438 = math.tanh %437 : vector<8x128xf32>
    %cst_139 = arith.constant 1.000000e+00 : f32
    %439 = vector.broadcast %cst_139 : f32 to vector<8x128xf32>
    %440 = arith.subf %439, %430 : vector<8x128xf32>
    %441 = arith.mulf %440, %438 : vector<8x128xf32>
    %442 = arith.mulf %430, %407 : vector<8x128xf32>
    %443 = arith.addf %441, %442 : vector<8x128xf32>
    %444 = arith.addi %4, %c0_i32_129 : i32
    %445 = vector.broadcast %444 : i32 to vector<8x1xi32>
    %446 = arith.cmpi slt, %445, %3 : vector<8x1xi32>
    %447 = vector.shape_cast %446 : vector<8x1xi1> to vector<8x1xi1>
    %448 = vector.broadcast %447 : vector<8x1xi1> to vector<8x128xi1>
    %449 = arith.select %448, %443, %407 : vector<8x128xi1>, vector<8x128xf32>
    %c1_i32_140 = arith.constant 1 : i32
    %450 = arith.index_cast %c1_i32_140 : i32 to index
    %c0_141 = arith.constant 0 : index
    %c0_142 = arith.constant 0 : index
    %451 = vector.load %arg16[%450, %c0_141, %c0_142] : memref<8x8x384xbf16, #tpu.memory_space<vmem>>, vector<1x8x384xbf16>
    %452 = vector.shape_cast %451 : vector<1x8x384xbf16> to vector<8x384xbf16>
    %453 = arith.extf %452 : vector<8x384xbf16> to vector<8x384xf32>
    %454 = arith.truncf %449 : vector<8x128xf32> to vector<8x128xbf16>
    %c0_143 = arith.constant 0 : index
    %c0_144 = arith.constant 0 : index
    %455 = vector.load %arg10[%c0_143, %c0_144] : memref<128x384xbf16, #tpu.memory_space<vmem>>, vector<128x384xbf16>
    %cst_145 = arith.constant dense<0.000000e+00> : vector<8x384xf32>
    %456 = tpu.matmul %454, %455, %cst_145 {dimension_numbers = #tpu.dot_dimension_numbers<[1], [0], [0], [1], [0, 0, 1, 1], [], []>} : vector<8x128xbf16>, vector<128x384xbf16>, vector<8x384xf32> -> vector<8x384xf32>
    %457 = vector.extract_strided_slice %453 {offsets = [0, 0], sizes = [8, 128], strides = [1, 1]} : vector<8x384xf32> to vector<8x128xf32>
    %458 = vector.extract_strided_slice %456 {offsets = [0, 0], sizes = [8, 128], strides = [1, 1]} : vector<8x384xf32> to vector<8x128xf32>
    %459 = arith.addf %457, %458 : vector<8x128xf32>
    %460 = arith.negf %459 : vector<8x128xf32>
    %461 = math.exp %460 : vector<8x128xf32>
    %cst_146 = arith.constant 1.000000e+00 : f32
    %462 = vector.broadcast %cst_146 : f32 to vector<8x128xf32>
    %463 = arith.addf %462, %461 : vector<8x128xf32>
    %464 = arith.divf %462, %463 : vector<8x128xf32>
    %465 = vector.extract_strided_slice %453 {offsets = [0, 128], sizes = [8, 128], strides = [1, 1]} : vector<8x384xf32> to vector<8x128xf32>
    %466 = vector.extract_strided_slice %456 {offsets = [0, 128], sizes = [8, 128], strides = [1, 1]} : vector<8x384xf32> to vector<8x128xf32>
    %467 = arith.addf %465, %466 : vector<8x128xf32>
    %468 = arith.negf %467 : vector<8x128xf32>
    %469 = math.exp %468 : vector<8x128xf32>
    %cst_147 = arith.constant 1.000000e+00 : f32
    %470 = vector.broadcast %cst_147 : f32 to vector<8x128xf32>
    %471 = arith.addf %470, %469 : vector<8x128xf32>
    %472 = arith.divf %470, %471 : vector<8x128xf32>
    %473 = vector.extract_strided_slice %453 {offsets = [0, 256], sizes = [8, 128], strides = [1, 1]} : vector<8x384xf32> to vector<8x128xf32>
    %474 = vector.extract_strided_slice %456 {offsets = [0, 256], sizes = [8, 128], strides = [1, 1]} : vector<8x384xf32> to vector<8x128xf32>
    %c0_148 = arith.constant 0 : index
    %c0_149 = arith.constant 0 : index
    %475 = vector.load %arg12[%c0_148, %c0_149] : memref<1x128xf32, #tpu.memory_space<vmem>>, vector<1x128xf32>
    %476 = vector.broadcast %475 : vector<1x128xf32> to vector<8x128xf32>
    %477 = arith.addf %474, %476 : vector<8x128xf32>
    %478 = arith.mulf %464, %477 : vector<8x128xf32>
    %479 = arith.addf %473, %478 : vector<8x128xf32>
    %480 = math.tanh %479 : vector<8x128xf32>
    %cst_150 = arith.constant 1.000000e+00 : f32
    %481 = vector.broadcast %cst_150 : f32 to vector<8x128xf32>
    %482 = arith.subf %481, %472 : vector<8x128xf32>
    %483 = arith.mulf %482, %480 : vector<8x128xf32>
    %484 = arith.mulf %472, %449 : vector<8x128xf32>
    %485 = arith.addf %483, %484 : vector<8x128xf32>
    %486 = arith.addi %4, %c1_i32_140 : i32
    %487 = vector.broadcast %486 : i32 to vector<8x1xi32>
    %488 = arith.cmpi slt, %487, %3 : vector<8x1xi32>
    %489 = vector.shape_cast %488 : vector<8x1xi1> to vector<8x1xi1>
    %490 = vector.broadcast %489 : vector<8x1xi1> to vector<8x128xi1>
    %491 = arith.select %490, %485, %449 : vector<8x128xi1>, vector<8x128xf32>
    %c2_i32_151 = arith.constant 2 : i32
    %492 = arith.index_cast %c2_i32_151 : i32 to index
    %c0_152 = arith.constant 0 : index
    %c0_153 = arith.constant 0 : index
    %493 = vector.load %arg16[%492, %c0_152, %c0_153] : memref<8x8x384xbf16, #tpu.memory_space<vmem>>, vector<1x8x384xbf16>
    %494 = vector.shape_cast %493 : vector<1x8x384xbf16> to vector<8x384xbf16>
    %495 = arith.extf %494 : vector<8x384xbf16> to vector<8x384xf32>
    %496 = arith.truncf %491 : vector<8x128xf32> to vector<8x128xbf16>
    %c0_154 = arith.constant 0 : index
    %c0_155 = arith.constant 0 : index
    %497 = vector.load %arg10[%c0_154, %c0_155] : memref<128x384xbf16, #tpu.memory_space<vmem>>, vector<128x384xbf16>
    %cst_156 = arith.constant dense<0.000000e+00> : vector<8x384xf32>
    %498 = tpu.matmul %496, %497, %cst_156 {dimension_numbers = #tpu.dot_dimension_numbers<[1], [0], [0], [1], [0, 0, 1, 1], [], []>} : vector<8x128xbf16>, vector<128x384xbf16>, vector<8x384xf32> -> vector<8x384xf32>
    %499 = vector.extract_strided_slice %495 {offsets = [0, 0], sizes = [8, 128], strides = [1, 1]} : vector<8x384xf32> to vector<8x128xf32>
    %500 = vector.extract_strided_slice %498 {offsets = [0, 0], sizes = [8, 128], strides = [1, 1]} : vector<8x384xf32> to vector<8x128xf32>
    %501 = arith.addf %499, %500 : vector<8x128xf32>
    %502 = arith.negf %501 : vector<8x128xf32>
    %503 = math.exp %502 : vector<8x128xf32>
    %cst_157 = arith.constant 1.000000e+00 : f32
    %504 = vector.broadcast %cst_157 : f32 to vector<8x128xf32>
    %505 = arith.addf %504, %503 : vector<8x128xf32>
    %506 = arith.divf %504, %505 : vector<8x128xf32>
    %507 = vector.extract_strided_slice %495 {offsets = [0, 128], sizes = [8, 128], strides = [1, 1]} : vector<8x384xf32> to vector<8x128xf32>
    %508 = vector.extract_strided_slice %498 {offsets = [0, 128], sizes = [8, 128], strides = [1, 1]} : vector<8x384xf32> to vector<8x128xf32>
    %509 = arith.addf %507, %508 : vector<8x128xf32>
    %510 = arith.negf %509 : vector<8x128xf32>
    %511 = math.exp %510 : vector<8x128xf32>
    %cst_158 = arith.constant 1.000000e+00 : f32
    %512 = vector.broadcast %cst_158 : f32 to vector<8x128xf32>
    %513 = arith.addf %512, %511 : vector<8x128xf32>
    %514 = arith.divf %512, %513 : vector<8x128xf32>
    %515 = vector.extract_strided_slice %495 {offsets = [0, 256], sizes = [8, 128], strides = [1, 1]} : vector<8x384xf32> to vector<8x128xf32>
    %516 = vector.extract_strided_slice %498 {offsets = [0, 256], sizes = [8, 128], strides = [1, 1]} : vector<8x384xf32> to vector<8x128xf32>
    %c0_159 = arith.constant 0 : index
    %c0_160 = arith.constant 0 : index
    %517 = vector.load %arg12[%c0_159, %c0_160] : memref<1x128xf32, #tpu.memory_space<vmem>>, vector<1x128xf32>
    %518 = vector.broadcast %517 : vector<1x128xf32> to vector<8x128xf32>
    %519 = arith.addf %516, %518 : vector<8x128xf32>
    %520 = arith.mulf %506, %519 : vector<8x128xf32>
    %521 = arith.addf %515, %520 : vector<8x128xf32>
    %522 = math.tanh %521 : vector<8x128xf32>
    %cst_161 = arith.constant 1.000000e+00 : f32
    %523 = vector.broadcast %cst_161 : f32 to vector<8x128xf32>
    %524 = arith.subf %523, %514 : vector<8x128xf32>
    %525 = arith.mulf %524, %522 : vector<8x128xf32>
    %526 = arith.mulf %514, %491 : vector<8x128xf32>
    %527 = arith.addf %525, %526 : vector<8x128xf32>
    %528 = arith.addi %4, %c2_i32_151 : i32
    %529 = vector.broadcast %528 : i32 to vector<8x1xi32>
    %530 = arith.cmpi slt, %529, %3 : vector<8x1xi32>
    %531 = vector.shape_cast %530 : vector<8x1xi1> to vector<8x1xi1>
    %532 = vector.broadcast %531 : vector<8x1xi1> to vector<8x128xi1>
    %533 = arith.select %532, %527, %491 : vector<8x128xi1>, vector<8x128xf32>
    %c3_i32_162 = arith.constant 3 : i32
    %534 = arith.index_cast %c3_i32_162 : i32 to index
    %c0_163 = arith.constant 0 : index
    %c0_164 = arith.constant 0 : index
    %535 = vector.load %arg16[%534, %c0_163, %c0_164] : memref<8x8x384xbf16, #tpu.memory_space<vmem>>, vector<1x8x384xbf16>
    %536 = vector.shape_cast %535 : vector<1x8x384xbf16> to vector<8x384xbf16>
    %537 = arith.extf %536 : vector<8x384xbf16> to vector<8x384xf32>
    %538 = arith.truncf %533 : vector<8x128xf32> to vector<8x128xbf16>
    %c0_165 = arith.constant 0 : index
    %c0_166 = arith.constant 0 : index
    %539 = vector.load %arg10[%c0_165, %c0_166] : memref<128x384xbf16, #tpu.memory_space<vmem>>, vector<128x384xbf16>
    %cst_167 = arith.constant dense<0.000000e+00> : vector<8x384xf32>
    %540 = tpu.matmul %538, %539, %cst_167 {dimension_numbers = #tpu.dot_dimension_numbers<[1], [0], [0], [1], [0, 0, 1, 1], [], []>} : vector<8x128xbf16>, vector<128x384xbf16>, vector<8x384xf32> -> vector<8x384xf32>
    %541 = vector.extract_strided_slice %537 {offsets = [0, 0], sizes = [8, 128], strides = [1, 1]} : vector<8x384xf32> to vector<8x128xf32>
    %542 = vector.extract_strided_slice %540 {offsets = [0, 0], sizes = [8, 128], strides = [1, 1]} : vector<8x384xf32> to vector<8x128xf32>
    %543 = arith.addf %541, %542 : vector<8x128xf32>
    %544 = arith.negf %543 : vector<8x128xf32>
    %545 = math.exp %544 : vector<8x128xf32>
    %cst_168 = arith.constant 1.000000e+00 : f32
    %546 = vector.broadcast %cst_168 : f32 to vector<8x128xf32>
    %547 = arith.addf %546, %545 : vector<8x128xf32>
    %548 = arith.divf %546, %547 : vector<8x128xf32>
    %549 = vector.extract_strided_slice %537 {offsets = [0, 128], sizes = [8, 128], strides = [1, 1]} : vector<8x384xf32> to vector<8x128xf32>
    %550 = vector.extract_strided_slice %540 {offsets = [0, 128], sizes = [8, 128], strides = [1, 1]} : vector<8x384xf32> to vector<8x128xf32>
    %551 = arith.addf %549, %550 : vector<8x128xf32>
    %552 = arith.negf %551 : vector<8x128xf32>
    %553 = math.exp %552 : vector<8x128xf32>
    %cst_169 = arith.constant 1.000000e+00 : f32
    %554 = vector.broadcast %cst_169 : f32 to vector<8x128xf32>
    %555 = arith.addf %554, %553 : vector<8x128xf32>
    %556 = arith.divf %554, %555 : vector<8x128xf32>
    %557 = vector.extract_strided_slice %537 {offsets = [0, 256], sizes = [8, 128], strides = [1, 1]} : vector<8x384xf32> to vector<8x128xf32>
    %558 = vector.extract_strided_slice %540 {offsets = [0, 256], sizes = [8, 128], strides = [1, 1]} : vector<8x384xf32> to vector<8x128xf32>
    %c0_170 = arith.constant 0 : index
    %c0_171 = arith.constant 0 : index
    %559 = vector.load %arg12[%c0_170, %c0_171] : memref<1x128xf32, #tpu.memory_space<vmem>>, vector<1x128xf32>
    %560 = vector.broadcast %559 : vector<1x128xf32> to vector<8x128xf32>
    %561 = arith.addf %558, %560 : vector<8x128xf32>
    %562 = arith.mulf %548, %561 : vector<8x128xf32>
    %563 = arith.addf %557, %562 : vector<8x128xf32>
    %564 = math.tanh %563 : vector<8x128xf32>
    %cst_172 = arith.constant 1.000000e+00 : f32
    %565 = vector.broadcast %cst_172 : f32 to vector<8x128xf32>
    %566 = arith.subf %565, %556 : vector<8x128xf32>
    %567 = arith.mulf %566, %564 : vector<8x128xf32>
    %568 = arith.mulf %556, %533 : vector<8x128xf32>
    %569 = arith.addf %567, %568 : vector<8x128xf32>
    %570 = arith.addi %4, %c3_i32_162 : i32
    %571 = vector.broadcast %570 : i32 to vector<8x1xi32>
    %572 = arith.cmpi slt, %571, %3 : vector<8x1xi32>
    %573 = vector.shape_cast %572 : vector<8x1xi1> to vector<8x1xi1>
    %574 = vector.broadcast %573 : vector<8x1xi1> to vector<8x128xi1>
    %575 = arith.select %574, %569, %533 : vector<8x128xi1>, vector<8x128xf32>
    %c4_i32_173 = arith.constant 4 : i32
    %576 = arith.index_cast %c4_i32_173 : i32 to index
    %c0_174 = arith.constant 0 : index
    %c0_175 = arith.constant 0 : index
    %577 = vector.load %arg16[%576, %c0_174, %c0_175] : memref<8x8x384xbf16, #tpu.memory_space<vmem>>, vector<1x8x384xbf16>
    %578 = vector.shape_cast %577 : vector<1x8x384xbf16> to vector<8x384xbf16>
    %579 = arith.extf %578 : vector<8x384xbf16> to vector<8x384xf32>
    %580 = arith.truncf %575 : vector<8x128xf32> to vector<8x128xbf16>
    %c0_176 = arith.constant 0 : index
    %c0_177 = arith.constant 0 : index
    %581 = vector.load %arg10[%c0_176, %c0_177] : memref<128x384xbf16, #tpu.memory_space<vmem>>, vector<128x384xbf16>
    %cst_178 = arith.constant dense<0.000000e+00> : vector<8x384xf32>
    %582 = tpu.matmul %580, %581, %cst_178 {dimension_numbers = #tpu.dot_dimension_numbers<[1], [0], [0], [1], [0, 0, 1, 1], [], []>} : vector<8x128xbf16>, vector<128x384xbf16>, vector<8x384xf32> -> vector<8x384xf32>
    %583 = vector.extract_strided_slice %579 {offsets = [0, 0], sizes = [8, 128], strides = [1, 1]} : vector<8x384xf32> to vector<8x128xf32>
    %584 = vector.extract_strided_slice %582 {offsets = [0, 0], sizes = [8, 128], strides = [1, 1]} : vector<8x384xf32> to vector<8x128xf32>
    %585 = arith.addf %583, %584 : vector<8x128xf32>
    %586 = arith.negf %585 : vector<8x128xf32>
    %587 = math.exp %586 : vector<8x128xf32>
    %cst_179 = arith.constant 1.000000e+00 : f32
    %588 = vector.broadcast %cst_179 : f32 to vector<8x128xf32>
    %589 = arith.addf %588, %587 : vector<8x128xf32>
    %590 = arith.divf %588, %589 : vector<8x128xf32>
    %591 = vector.extract_strided_slice %579 {offsets = [0, 128], sizes = [8, 128], strides = [1, 1]} : vector<8x384xf32> to vector<8x128xf32>
    %592 = vector.extract_strided_slice %582 {offsets = [0, 128], sizes = [8, 128], strides = [1, 1]} : vector<8x384xf32> to vector<8x128xf32>
    %593 = arith.addf %591, %592 : vector<8x128xf32>
    %594 = arith.negf %593 : vector<8x128xf32>
    %595 = math.exp %594 : vector<8x128xf32>
    %cst_180 = arith.constant 1.000000e+00 : f32
    %596 = vector.broadcast %cst_180 : f32 to vector<8x128xf32>
    %597 = arith.addf %596, %595 : vector<8x128xf32>
    %598 = arith.divf %596, %597 : vector<8x128xf32>
    %599 = vector.extract_strided_slice %579 {offsets = [0, 256], sizes = [8, 128], strides = [1, 1]} : vector<8x384xf32> to vector<8x128xf32>
    %600 = vector.extract_strided_slice %582 {offsets = [0, 256], sizes = [8, 128], strides = [1, 1]} : vector<8x384xf32> to vector<8x128xf32>
    %c0_181 = arith.constant 0 : index
    %c0_182 = arith.constant 0 : index
    %601 = vector.load %arg12[%c0_181, %c0_182] : memref<1x128xf32, #tpu.memory_space<vmem>>, vector<1x128xf32>
    %602 = vector.broadcast %601 : vector<1x128xf32> to vector<8x128xf32>
    %603 = arith.addf %600, %602 : vector<8x128xf32>
    %604 = arith.mulf %590, %603 : vector<8x128xf32>
    %605 = arith.addf %599, %604 : vector<8x128xf32>
    %606 = math.tanh %605 : vector<8x128xf32>
    %cst_183 = arith.constant 1.000000e+00 : f32
    %607 = vector.broadcast %cst_183 : f32 to vector<8x128xf32>
    %608 = arith.subf %607, %598 : vector<8x128xf32>
    %609 = arith.mulf %608, %606 : vector<8x128xf32>
    %610 = arith.mulf %598, %575 : vector<8x128xf32>
    %611 = arith.addf %609, %610 : vector<8x128xf32>
    %612 = arith.addi %4, %c4_i32_173 : i32
    %613 = vector.broadcast %612 : i32 to vector<8x1xi32>
    %614 = arith.cmpi slt, %613, %3 : vector<8x1xi32>
    %615 = vector.shape_cast %614 : vector<8x1xi1> to vector<8x1xi1>
    %616 = vector.broadcast %615 : vector<8x1xi1> to vector<8x128xi1>
    %617 = arith.select %616, %611, %575 : vector<8x128xi1>, vector<8x128xf32>
    %c5_i32_184 = arith.constant 5 : i32
    %618 = arith.index_cast %c5_i32_184 : i32 to index
    %c0_185 = arith.constant 0 : index
    %c0_186 = arith.constant 0 : index
    %619 = vector.load %arg16[%618, %c0_185, %c0_186] : memref<8x8x384xbf16, #tpu.memory_space<vmem>>, vector<1x8x384xbf16>
    %620 = vector.shape_cast %619 : vector<1x8x384xbf16> to vector<8x384xbf16>
    %621 = arith.extf %620 : vector<8x384xbf16> to vector<8x384xf32>
    %622 = arith.truncf %617 : vector<8x128xf32> to vector<8x128xbf16>
    %c0_187 = arith.constant 0 : index
    %c0_188 = arith.constant 0 : index
    %623 = vector.load %arg10[%c0_187, %c0_188] : memref<128x384xbf16, #tpu.memory_space<vmem>>, vector<128x384xbf16>
    %cst_189 = arith.constant dense<0.000000e+00> : vector<8x384xf32>
    %624 = tpu.matmul %622, %623, %cst_189 {dimension_numbers = #tpu.dot_dimension_numbers<[1], [0], [0], [1], [0, 0, 1, 1], [], []>} : vector<8x128xbf16>, vector<128x384xbf16>, vector<8x384xf32> -> vector<8x384xf32>
    %625 = vector.extract_strided_slice %621 {offsets = [0, 0], sizes = [8, 128], strides = [1, 1]} : vector<8x384xf32> to vector<8x128xf32>
    %626 = vector.extract_strided_slice %624 {offsets = [0, 0], sizes = [8, 128], strides = [1, 1]} : vector<8x384xf32> to vector<8x128xf32>
    %627 = arith.addf %625, %626 : vector<8x128xf32>
    %628 = arith.negf %627 : vector<8x128xf32>
    %629 = math.exp %628 : vector<8x128xf32>
    %cst_190 = arith.constant 1.000000e+00 : f32
    %630 = vector.broadcast %cst_190 : f32 to vector<8x128xf32>
    %631 = arith.addf %630, %629 : vector<8x128xf32>
    %632 = arith.divf %630, %631 : vector<8x128xf32>
    %633 = vector.extract_strided_slice %621 {offsets = [0, 128], sizes = [8, 128], strides = [1, 1]} : vector<8x384xf32> to vector<8x128xf32>
    %634 = vector.extract_strided_slice %624 {offsets = [0, 128], sizes = [8, 128], strides = [1, 1]} : vector<8x384xf32> to vector<8x128xf32>
    %635 = arith.addf %633, %634 : vector<8x128xf32>
    %636 = arith.negf %635 : vector<8x128xf32>
    %637 = math.exp %636 : vector<8x128xf32>
    %cst_191 = arith.constant 1.000000e+00 : f32
    %638 = vector.broadcast %cst_191 : f32 to vector<8x128xf32>
    %639 = arith.addf %638, %637 : vector<8x128xf32>
    %640 = arith.divf %638, %639 : vector<8x128xf32>
    %641 = vector.extract_strided_slice %621 {offsets = [0, 256], sizes = [8, 128], strides = [1, 1]} : vector<8x384xf32> to vector<8x128xf32>
    %642 = vector.extract_strided_slice %624 {offsets = [0, 256], sizes = [8, 128], strides = [1, 1]} : vector<8x384xf32> to vector<8x128xf32>
    %c0_192 = arith.constant 0 : index
    %c0_193 = arith.constant 0 : index
    %643 = vector.load %arg12[%c0_192, %c0_193] : memref<1x128xf32, #tpu.memory_space<vmem>>, vector<1x128xf32>
    %644 = vector.broadcast %643 : vector<1x128xf32> to vector<8x128xf32>
    %645 = arith.addf %642, %644 : vector<8x128xf32>
    %646 = arith.mulf %632, %645 : vector<8x128xf32>
    %647 = arith.addf %641, %646 : vector<8x128xf32>
    %648 = math.tanh %647 : vector<8x128xf32>
    %cst_194 = arith.constant 1.000000e+00 : f32
    %649 = vector.broadcast %cst_194 : f32 to vector<8x128xf32>
    %650 = arith.subf %649, %640 : vector<8x128xf32>
    %651 = arith.mulf %650, %648 : vector<8x128xf32>
    %652 = arith.mulf %640, %617 : vector<8x128xf32>
    %653 = arith.addf %651, %652 : vector<8x128xf32>
    %654 = arith.addi %4, %c5_i32_184 : i32
    %655 = vector.broadcast %654 : i32 to vector<8x1xi32>
    %656 = arith.cmpi slt, %655, %3 : vector<8x1xi32>
    %657 = vector.shape_cast %656 : vector<8x1xi1> to vector<8x1xi1>
    %658 = vector.broadcast %657 : vector<8x1xi1> to vector<8x128xi1>
    %659 = arith.select %658, %653, %617 : vector<8x128xi1>, vector<8x128xf32>
    %c6_i32_195 = arith.constant 6 : i32
    %660 = arith.index_cast %c6_i32_195 : i32 to index
    %c0_196 = arith.constant 0 : index
    %c0_197 = arith.constant 0 : index
    %661 = vector.load %arg16[%660, %c0_196, %c0_197] : memref<8x8x384xbf16, #tpu.memory_space<vmem>>, vector<1x8x384xbf16>
    %662 = vector.shape_cast %661 : vector<1x8x384xbf16> to vector<8x384xbf16>
    %663 = arith.extf %662 : vector<8x384xbf16> to vector<8x384xf32>
    %664 = arith.truncf %659 : vector<8x128xf32> to vector<8x128xbf16>
    %c0_198 = arith.constant 0 : index
    %c0_199 = arith.constant 0 : index
    %665 = vector.load %arg10[%c0_198, %c0_199] : memref<128x384xbf16, #tpu.memory_space<vmem>>, vector<128x384xbf16>
    %cst_200 = arith.constant dense<0.000000e+00> : vector<8x384xf32>
    %666 = tpu.matmul %664, %665, %cst_200 {dimension_numbers = #tpu.dot_dimension_numbers<[1], [0], [0], [1], [0, 0, 1, 1], [], []>} : vector<8x128xbf16>, vector<128x384xbf16>, vector<8x384xf32> -> vector<8x384xf32>
    %667 = vector.extract_strided_slice %663 {offsets = [0, 0], sizes = [8, 128], strides = [1, 1]} : vector<8x384xf32> to vector<8x128xf32>
    %668 = vector.extract_strided_slice %666 {offsets = [0, 0], sizes = [8, 128], strides = [1, 1]} : vector<8x384xf32> to vector<8x128xf32>
    %669 = arith.addf %667, %668 : vector<8x128xf32>
    %670 = arith.negf %669 : vector<8x128xf32>
    %671 = math.exp %670 : vector<8x128xf32>
    %cst_201 = arith.constant 1.000000e+00 : f32
    %672 = vector.broadcast %cst_201 : f32 to vector<8x128xf32>
    %673 = arith.addf %672, %671 : vector<8x128xf32>
    %674 = arith.divf %672, %673 : vector<8x128xf32>
    %675 = vector.extract_strided_slice %663 {offsets = [0, 128], sizes = [8, 128], strides = [1, 1]} : vector<8x384xf32> to vector<8x128xf32>
    %676 = vector.extract_strided_slice %666 {offsets = [0, 128], sizes = [8, 128], strides = [1, 1]} : vector<8x384xf32> to vector<8x128xf32>
    %677 = arith.addf %675, %676 : vector<8x128xf32>
    %678 = arith.negf %677 : vector<8x128xf32>
    %679 = math.exp %678 : vector<8x128xf32>
    %cst_202 = arith.constant 1.000000e+00 : f32
    %680 = vector.broadcast %cst_202 : f32 to vector<8x128xf32>
    %681 = arith.addf %680, %679 : vector<8x128xf32>
    %682 = arith.divf %680, %681 : vector<8x128xf32>
    %683 = vector.extract_strided_slice %663 {offsets = [0, 256], sizes = [8, 128], strides = [1, 1]} : vector<8x384xf32> to vector<8x128xf32>
    %684 = vector.extract_strided_slice %666 {offsets = [0, 256], sizes = [8, 128], strides = [1, 1]} : vector<8x384xf32> to vector<8x128xf32>
    %c0_203 = arith.constant 0 : index
    %c0_204 = arith.constant 0 : index
    %685 = vector.load %arg12[%c0_203, %c0_204] : memref<1x128xf32, #tpu.memory_space<vmem>>, vector<1x128xf32>
    %686 = vector.broadcast %685 : vector<1x128xf32> to vector<8x128xf32>
    %687 = arith.addf %684, %686 : vector<8x128xf32>
    %688 = arith.mulf %674, %687 : vector<8x128xf32>
    %689 = arith.addf %683, %688 : vector<8x128xf32>
    %690 = math.tanh %689 : vector<8x128xf32>
    %cst_205 = arith.constant 1.000000e+00 : f32
    %691 = vector.broadcast %cst_205 : f32 to vector<8x128xf32>
    %692 = arith.subf %691, %682 : vector<8x128xf32>
    %693 = arith.mulf %692, %690 : vector<8x128xf32>
    %694 = arith.mulf %682, %659 : vector<8x128xf32>
    %695 = arith.addf %693, %694 : vector<8x128xf32>
    %696 = arith.addi %4, %c6_i32_195 : i32
    %697 = vector.broadcast %696 : i32 to vector<8x1xi32>
    %698 = arith.cmpi slt, %697, %3 : vector<8x1xi32>
    %699 = vector.shape_cast %698 : vector<8x1xi1> to vector<8x1xi1>
    %700 = vector.broadcast %699 : vector<8x1xi1> to vector<8x128xi1>
    %701 = arith.select %700, %695, %659 : vector<8x128xi1>, vector<8x128xf32>
    %c7_i32_206 = arith.constant 7 : i32
    %702 = arith.index_cast %c7_i32_206 : i32 to index
    %c0_207 = arith.constant 0 : index
    %c0_208 = arith.constant 0 : index
    %703 = vector.load %arg16[%702, %c0_207, %c0_208] : memref<8x8x384xbf16, #tpu.memory_space<vmem>>, vector<1x8x384xbf16>
    %704 = vector.shape_cast %703 : vector<1x8x384xbf16> to vector<8x384xbf16>
    %705 = arith.extf %704 : vector<8x384xbf16> to vector<8x384xf32>
    %706 = arith.truncf %701 : vector<8x128xf32> to vector<8x128xbf16>
    %c0_209 = arith.constant 0 : index
    %c0_210 = arith.constant 0 : index
    %707 = vector.load %arg10[%c0_209, %c0_210] : memref<128x384xbf16, #tpu.memory_space<vmem>>, vector<128x384xbf16>
    %cst_211 = arith.constant dense<0.000000e+00> : vector<8x384xf32>
    %708 = tpu.matmul %706, %707, %cst_211 {dimension_numbers = #tpu.dot_dimension_numbers<[1], [0], [0], [1], [0, 0, 1, 1], [], []>} : vector<8x128xbf16>, vector<128x384xbf16>, vector<8x384xf32> -> vector<8x384xf32>
    %709 = vector.extract_strided_slice %705 {offsets = [0, 0], sizes = [8, 128], strides = [1, 1]} : vector<8x384xf32> to vector<8x128xf32>
    %710 = vector.extract_strided_slice %708 {offsets = [0, 0], sizes = [8, 128], strides = [1, 1]} : vector<8x384xf32> to vector<8x128xf32>
    %711 = arith.addf %709, %710 : vector<8x128xf32>
    %712 = arith.negf %711 : vector<8x128xf32>
    %713 = math.exp %712 : vector<8x128xf32>
    %cst_212 = arith.constant 1.000000e+00 : f32
    %714 = vector.broadcast %cst_212 : f32 to vector<8x128xf32>
    %715 = arith.addf %714, %713 : vector<8x128xf32>
    %716 = arith.divf %714, %715 : vector<8x128xf32>
    %717 = vector.extract_strided_slice %705 {offsets = [0, 128], sizes = [8, 128], strides = [1, 1]} : vector<8x384xf32> to vector<8x128xf32>
    %718 = vector.extract_strided_slice %708 {offsets = [0, 128], sizes = [8, 128], strides = [1, 1]} : vector<8x384xf32> to vector<8x128xf32>
    %719 = arith.addf %717, %718 : vector<8x128xf32>
    %720 = arith.negf %719 : vector<8x128xf32>
    %721 = math.exp %720 : vector<8x128xf32>
    %cst_213 = arith.constant 1.000000e+00 : f32
    %722 = vector.broadcast %cst_213 : f32 to vector<8x128xf32>
    %723 = arith.addf %722, %721 : vector<8x128xf32>
    %724 = arith.divf %722, %723 : vector<8x128xf32>
    %725 = vector.extract_strided_slice %705 {offsets = [0, 256], sizes = [8, 128], strides = [1, 1]} : vector<8x384xf32> to vector<8x128xf32>
    %726 = vector.extract_strided_slice %708 {offsets = [0, 256], sizes = [8, 128], strides = [1, 1]} : vector<8x384xf32> to vector<8x128xf32>
    %c0_214 = arith.constant 0 : index
    %c0_215 = arith.constant 0 : index
    %727 = vector.load %arg12[%c0_214, %c0_215] : memref<1x128xf32, #tpu.memory_space<vmem>>, vector<1x128xf32>
    %728 = vector.broadcast %727 : vector<1x128xf32> to vector<8x128xf32>
    %729 = arith.addf %726, %728 : vector<8x128xf32>
    %730 = arith.mulf %716, %729 : vector<8x128xf32>
    %731 = arith.addf %725, %730 : vector<8x128xf32>
    %732 = math.tanh %731 : vector<8x128xf32>
    %cst_216 = arith.constant 1.000000e+00 : f32
    %733 = vector.broadcast %cst_216 : f32 to vector<8x128xf32>
    %734 = arith.subf %733, %724 : vector<8x128xf32>
    %735 = arith.mulf %734, %732 : vector<8x128xf32>
    %736 = arith.mulf %724, %701 : vector<8x128xf32>
    %737 = arith.addf %735, %736 : vector<8x128xf32>
    %738 = arith.addi %4, %c7_i32_206 : i32
    %739 = vector.broadcast %738 : i32 to vector<8x1xi32>
    %740 = arith.cmpi slt, %739, %3 : vector<8x1xi32>
    %741 = vector.shape_cast %740 : vector<8x1xi1> to vector<8x1xi1>
    %742 = vector.broadcast %741 : vector<8x1xi1> to vector<8x128xi1>
    %743 = arith.select %742, %737, %701 : vector<8x128xi1>, vector<8x128xf32>
    %c8_i32_217 = arith.constant 8 : i32
    %c1_218 = arith.constant 1 : index
    %c0_219 = arith.constant 0 : index
    %c0_220 = arith.constant 0 : index
    %744 = vector.load %arg18[%c1_218, %c0_219, %c0_220] : memref<2x8x128xf32, #tpu.memory_space<vmem>>, vector<1x8x128xf32>
    %745 = vector.shape_cast %744 : vector<1x8x128xf32> to vector<8x128xf32>
    %746 = vector.shape_cast %743 : vector<8x128xf32> to vector<1x8x128xf32>
    tpu.vector_store %arg18[%c1_218, %c0_219, %c0_220], %746 {strides = array<i32>} : memref<2x8x128xf32, #tpu.memory_space<vmem>>, vector<1x8x128xf32>,
    %c0_i32_221 = arith.constant 0 : i32
    %747 = arith.cmpi eq, %arg1, %c0_i32_221 : i32
    %748 = arith.extui %747 : i1 to i32
    %c0_i32_222 = arith.constant 0 : i32
    %749 = arith.cmpi ne, %748, %c0_i32_222 : i32
    scf.if %749 {
      %c1_223 = arith.constant 1 : index
      %c0_224 = arith.constant 0 : index
      %c0_225 = arith.constant 0 : index
      %750 = vector.load %arg18[%c1_223, %c0_224, %c0_225] : memref<2x8x128xf32, #tpu.memory_space<vmem>>, vector<1x8x128xf32>
      %751 = vector.shape_cast %750 : vector<1x8x128xf32> to vector<8x128xf32>
      %c0_226 = arith.constant 0 : index
      %c0_227 = arith.constant 0 : index
      %752 = vector.load %arg4[%c0_226, %c0_227] : memref<8x1xf32, #tpu.memory_space<vmem>>, vector<8x1xf32>
      %753 = vector.broadcast %752 : vector<8x1xf32> to vector<8x128xf32>
      %754 = arith.mulf %751, %753 : vector<8x128xf32>
      %755 = arith.truncf %754 : vector<8x128xf32> to vector<8x128xbf16>
      %c0_228 = arith.constant 0 : index
      %c0_229 = arith.constant 0 : index
      %756 = vector.load %arg13[%c0_228, %c0_229] : memref<128x128xbf16, #tpu.memory_space<vmem>>, vector<128x128xbf16>
      %cst_230 = arith.constant dense<0.000000e+00> : vector<8x128xf32>
      %757 = tpu.matmul %755, %756, %cst_230 {dimension_numbers = #tpu.dot_dimension_numbers<[1], [0], [0], [1], [0, 0, 1, 1], [], []>} : vector<8x128xbf16>, vector<128x128xbf16>, vector<8x128xf32> -> vector<8x128xf32>
      %c0_231 = arith.constant 0 : index
      %c0_232 = arith.constant 0 : index
      %758 = vector.load %arg14[%c0_231, %c0_232] : memref<1x128xf32, #tpu.memory_space<vmem>>, vector<1x128xf32>
      %759 = vector.broadcast %758 : vector<1x128xf32> to vector<8x128xf32>
      %760 = arith.addf %757, %759 : vector<8x128xf32>
      %c0_233 = arith.constant 0 : index
      %c0_234 = arith.constant 0 : index
      %761 = vector.load %arg15[%c0_233, %c0_234] : memref<8x128xf32, #tpu.memory_space<vmem>>, vector<8x128xf32>
      tpu.vector_store %arg15[%c0_233, %c0_234], %760 {strides = array<i32>} : memref<8x128xf32, #tpu.memory_space<vmem>>, vector<8x128xf32>,
    } else {
    }
    return
  }
  func.func @transform_0(%arg0: i32, %arg1: i32) -> (i32, i32, i32) {
    %c0_i32 = arith.constant 0 : i32
    %c0_i32_0 = arith.constant 0 : i32
    return %arg1, %arg0, %c0_i32 : i32, i32, i32
  }
  func.func @transform_1(%arg0: i32, %arg1: i32) -> (i32, i32) {
    %c0_i32 = arith.constant 0 : i32
    %c0_i32_0 = arith.constant 0 : i32
    return %arg0, %c0_i32 : i32, i32
  }
  func.func @transform_2(%arg0: i32, %arg1: i32) -> (i32, i32) {
    %c0_i32 = arith.constant 0 : i32
    %c0_i32_0 = arith.constant 0 : i32
    return %arg0, %c0_i32 : i32, i32
  }
  func.func @transform_3(%arg0: i32, %arg1: i32) -> (i32, i32) {
    %c0_i32 = arith.constant 0 : i32
    %c0_i32_0 = arith.constant 0 : i32
    %c0_i32_1 = arith.constant 0 : i32
    return %c0_i32, %c0_i32_0 : i32, i32
  }
  func.func @transform_4(%arg0: i32, %arg1: i32) -> (i32, i32) {
    %c0_i32 = arith.constant 0 : i32
    %c0_i32_0 = arith.constant 0 : i32
    %c0_i32_1 = arith.constant 0 : i32
    return %c0_i32, %c0_i32_0 : i32, i32
  }
  func.func @transform_5(%arg0: i32, %arg1: i32) -> (i32, i32) {
    %c0_i32 = arith.constant 0 : i32
    %c0_i32_0 = arith.constant 0 : i32
    %c0_i32_1 = arith.constant 0 : i32
    return %c0_i32, %c0_i32_0 : i32, i32
  }
  func.func @transform_6(%arg0: i32, %arg1: i32) -> (i32, i32) {
    %c0_i32 = arith.constant 0 : i32
    %c0_i32_0 = arith.constant 0 : i32
    %c0_i32_1 = arith.constant 0 : i32
    return %c0_i32, %c0_i32_0 : i32, i32
  }
  func.func @transform_7(%arg0: i32, %arg1: i32) -> (i32, i32) {
    %c0_i32 = arith.constant 0 : i32
    %c0_i32_0 = arith.constant 0 : i32
    %c0_i32_1 = arith.constant 0 : i32
    return %c0_i32, %c0_i32_0 : i32, i32
  }
  func.func @transform_8(%arg0: i32, %arg1: i32) -> (i32, i32) {
    %c0_i32 = arith.constant 0 : i32
    %c0_i32_0 = arith.constant 0 : i32
    %c0_i32_1 = arith.constant 0 : i32
    return %c0_i32, %c0_i32_0 : i32, i32
  }
  func.func @transform_9(%arg0: i32, %arg1: i32) -> (i32, i32) {
    %c0_i32 = arith.constant 0 : i32
    %c0_i32_0 = arith.constant 0 : i32
    %c0_i32_1 = arith.constant 0 : i32
    return %c0_i32, %c0_i32_0 : i32, i32
  }
  func.func @transform_10(%arg0: i32, %arg1: i32) -> (i32, i32) {
    %c0_i32 = arith.constant 0 : i32
    %c0_i32_0 = arith.constant 0 : i32
    %c0_i32_1 = arith.constant 0 : i32
    return %c0_i32, %c0_i32_0 : i32, i32
  }
  func.func @transform_11(%arg0: i32, %arg1: i32) -> (i32, i32) {
    %c0_i32 = arith.constant 0 : i32
    %c0_i32_0 = arith.constant 0 : i32
    %c0_i32_1 = arith.constant 0 : i32
    return %c0_i32, %c0_i32_0 : i32, i32
  }
  func.func @transform_12(%arg0: i32, %arg1: i32) -> (i32, i32) {
    %c0_i32 = arith.constant 0 : i32
    %c0_i32_0 = arith.constant 0 : i32
    %c0_i32_1 = arith.constant 0 : i32
    return %c0_i32, %c0_i32_0 : i32, i32
  }
  func.func @transform_13(%arg0: i32, %arg1: i32) -> (i32, i32) {
    %c0_i32 = arith.constant 0 : i32
    %c0_i32_0 = arith.constant 0 : i32
    return %arg0, %c0_i32 : i32, i32
  }
}

</mosaic_0001>

<llo_original>
// kernel: tpu_custom_call.1
$region0: #{tpu_custom_call.1}
  #allocation0 [shape = 'u32[]', space=smem, size = 0x4, offset = 0x4, fixed_abs, tag = 'smem constant byte address 0x4 - core index']
  #allocation1 [shape = 'u32[72,128]{1,0:T(1,128)}', space=vmem, size = 0x9000, scoped, tag = 'internal scratch']
  #allocation2 [shape = 'bf16[8,8,384]{2,1,0:T(8,128)(2,1)}', space=vmem, size = 0xc000, scoped, tag = 'scratch operand']
  #allocation3 [shape = 'bf16[8,8,128]{2,1,0:T(8,128)(2,1)}', space=vmem, size = 0x4000, scoped, tag = 'scratch operand']
  #allocation4 [shape = 'f32[2,8,128]{2,1,0:T(8,128)}', space=vmem, size = 0x2000, scoped, tag = 'scratch operand']
  %s0 = inlined_call_operand.hbm [shape: bf16[8,8,128], index: 0, kind: input, shape index: {}]
  %s1 = inlined_call_operand.vmem [shape: s32[8,1], index: 1, kind: input, shape index: {}]
  %s2 = inlined_call_operand.vmem [shape: f32[8,1], index: 2, kind: input, shape index: {}]
  %s3 = inlined_call_operand.hbm [shape: bf16[128,384], index: 3, kind: input, shape index: {}]
  %s4 = inlined_call_operand.hbm [shape: bf16[128,384], index: 4, kind: input, shape index: {}]
  %s5 = inlined_call_operand.vmem [shape: f32[1,384], index: 5, kind: input, shape index: {}]
  %s6 = inlined_call_operand.vmem [shape: f32[1,128], index: 6, kind: input, shape index: {}]
  %s7 = inlined_call_operand.hbm [shape: bf16[128,384], index: 7, kind: input, shape index: {}]
  %s8 = inlined_call_operand.hbm [shape: bf16[128,384], index: 8, kind: input, shape index: {}]
  %s9 = inlined_call_operand.vmem [shape: f32[1,384], index: 9, kind: input, shape index: {}]
  %s10 = inlined_call_operand.vmem [shape: f32[1,128], index: 10, kind: input, shape index: {}]
  %s11 = inlined_call_operand.hbm [shape: bf16[128,128], index: 11, kind: input, shape index: {}]
  %s12 = inlined_call_operand.vmem [shape: f32[1,128], index: 12, kind: input, shape index: {}]
  %s13 = inlined_call_operand.hbm [shape: f32[8,128], index: 13, kind: output, shape index: {}]
  %s14 = sld [smem:[#allocation0]]
  $region94: #{tpu_custom_call.1} parent=0
    _
  %s16 = ssub.s32 1, %s14
  %s17 = scalar_select 0, %s16, %s14
  $region1: #{tpu_custom_call.1} parent=0
    #allocation5 [shape = 'u8[16384]{0}', space=vmem, size = 0x4000, scoped, tag = 'input window, operand 0, single buffered']
    #allocation6 [shape = 's32[1]{0}', space=sflag, size = 0x4, scoped, tag = 'scoped memory for tpu_custom_call.1']
    #allocation7 [shape = 's32[1]{0}', space=sflag, size = 0x4, scoped, tag = 'scoped memory for tpu_custom_call.1']
    #allocation8 [shape = 'u8[98304]{0}', space=vmem, size = 0x18000, scoped, tag = 'input window, operand 3, single buffered']
    #allocation9 [shape = 's32[1]{0}', space=sflag, size = 0x4, scoped, tag = 'scoped memory for tpu_custom_call.1']
    #allocation10 [shape = 'u8[98304]{0}', space=vmem, size = 0x18000, scoped, tag = 'input window, operand 4, single buffered']
    #allocation11 [shape = 'u8[98304]{0}', space=vmem, size = 0x18000, scoped, tag = 'input window, operand 7, single buffered']
    #allocation12 [shape = 's32[1]{0}', space=sflag, size = 0x4, scoped, tag = 'scoped memory for tpu_custom_call.1']
    #allocation13 [shape = 'u8[98304]{0}', space=vmem, size = 0x18000, scoped, tag = 'input window, operand 8, single buffered']
    #allocation14 [shape = 'u8[32768]{0}', space=vmem, size = 0x8000, scoped, tag = 'input window, operand 11, single buffered']
    #allocation15 [shape = 's32[1]{0}', space=sflag, size = 0x4, scoped, tag = 'scoped memory for tpu_custom_call.1']
    #allocation16 [shape = 'u8[4096]{0}', space=vmem, size = 0x1000, scoped, tag = 'output window, operand 0, single buffered']
    %18 = vsyncpa [#allocation6], 0
    %19 = vsyncpa [#allocation9], 0
    %20 = vsyncpa [#allocation12], 0
    %21 = vsyncpa [#allocation15], 0
    %22 = vsyncpa [#allocation7], 0
    // Predicated region
    $region2: #{tpu_custom_call.1} parent=1 // pred_check
      _
    $region3: #{tpu_custom_call.1} parent=1 // pred_check_branch
      %24 = sbr.rel (0) target = $region5
    $region4: #{tpu_custom_call.1} parent=1 // pred_region
      %26 = vsyncadd [#allocation6], 0
      %s27 = sshll.u32 %s0, 4
      %s28 = int_to_ptr.hbm [resolvable:$true] %s27
      %s29 = sshll.u32 [#allocation5], 4
      %s30 = int_to_ptr.vmem [resolvable:$true] %s29
      %35 = dma.hbm_to_vmem [thread:$0]  %s28, 512, %s30, [#allocation6], 64, 64, 4
    $region5: #{tpu_custom_call.1} parent=1 // pred_fallthru
      _
    // Predicated region
    $region6: #{tpu_custom_call.1} parent=1 // pred_check
      _
    $region7: #{tpu_custom_call.1} parent=1 // pred_check_branch
      %37 = sbr.rel (0) target = $region9
    $region8: #{tpu_custom_call.1} parent=1 // pred_region
      _
    $region9: #{tpu_custom_call.1} parent=1 // pred_fallthru
      _
    // Predicated region
    $region10: #{tpu_custom_call.1} parent=1 // pred_check
      _
    $region11: #{tpu_custom_call.1} parent=1 // pred_check_branch
      %39 = sbr.rel (0) target = $region13
    $region12: #{tpu_custom_call.1} parent=1 // pred_region
      _
    $region13: #{tpu_custom_call.1} parent=1 // pred_fallthru
      _
    // Predicated region
    $region14: #{tpu_custom_call.1} parent=1 // pred_check
      _
    $region15: #{tpu_custom_call.1} parent=1 // pred_check_branch
      %41 = sbr.rel (0) target = $region17
    $region16: #{tpu_custom_call.1} parent=1 // pred_region
      %43 = vsyncadd [#allocation9], 0
      %s44 = sshll.u32 %s3, 4
      %s45 = int_to_ptr.hbm [resolvable:$true] %s44
      %s46 = sshll.u32 [#allocation8], 4
      %s47 = int_to_ptr.vmem [resolvable:$true] %s46
      %52 = dma.hbm_to_vmem [thread:$0]  %s45, 3072, %s47, [#allocation9], 192, 192, 12
    $region17: #{tpu_custom_call.1} parent=1 // pred_fallthru
      _
    // Predicated region
    $region18: #{tpu_custom_call.1} parent=1 // pred_check
      _
    $region19: #{tpu_custom_call.1} parent=1 // pred_check_branch
      %54 = sbr.rel (0) target = $region21
    $region20: #{tpu_custom_call.1} parent=1 // pred_region
      %56 = vsyncadd [#allocation9], 0
      %s57 = sshll.u32 %s4, 4
      %s58 = int_to_ptr.hbm [resolvable:$true] %s57
      %s59 = sshll.u32 [#allocation10], 4
      %s60 = int_to_ptr.vmem [resolvable:$true] %s59
      %65 = dma.hbm_to_vmem [thread:$0]  %s58, 3072, %s60, [#allocation9], 192, 192, 12
    $region21: #{tpu_custom_call.1} parent=1 // pred_fallthru
      _
    // Predicated region
    $region22: #{tpu_custom_call.1} parent=1 // pred_check
      _
    $region23: #{tpu_custom_call.1} parent=1 // pred_check_branch
      %67 = sbr.rel (0) target = $region25
    $region24: #{tpu_custom_call.1} parent=1 // pred_region
      _
    $region25: #{tpu_custom_call.1} parent=1 // pred_fallthru
      _
    // Predicated region
    $region26: #{tpu_custom_call.1} parent=1 // pred_check
      _
    $region27: #{tpu_custom_call.1} parent=1 // pred_check_branch
      %69 = sbr.rel (0) target = $region29
    $region28: #{tpu_custom_call.1} parent=1 // pred_region
      _
    $region29: #{tpu_custom_call.1} parent=1 // pred_fallthru
      _
    // Predicated region
    $region30: #{tpu_custom_call.1} parent=1 // pred_check
      _
    $region31: #{tpu_custom_call.1} parent=1 // pred_check_branch
      %71 = sbr.rel (0) target = $region33
    $region32: #{tpu_custom_call.1} parent=1 // pred_region
      %73 = vsyncadd [#allocation12], 0
      %s74 = sshll.u32 %s7, 4
      %s75 = int_to_ptr.hbm [resolvable:$true] %s74
      %s76 = sshll.u32 [#allocation11], 4
      %s77 = int_to_ptr.vmem [resolvable:$true] %s76
      %82 = dma.hbm_to_vmem [thread:$0]  %s75, 3072, %s77, [#allocation12], 192, 192, 12
    $region33: #{tpu_custom_call.1} parent=1 // pred_fallthru
      _
    // Predicated region
    $region34: #{tpu_custom_call.1} parent=1 // pred_check
      _
    $region35: #{tpu_custom_call.1} parent=1 // pred_check_branch
      %84 = sbr.rel (0) target = $region37
    $region36: #{tpu_custom_call.1} parent=1 // pred_region
      %86 = vsyncadd [#allocation12], 0
      %s87 = sshll.u32 %s8, 4
      %s88 = int_to_ptr.hbm [resolvable:$true] %s87
      %s89 = sshll.u32 [#allocation13], 4
      %s90 = int_to_ptr.vmem [resolvable:$true] %s89
      %95 = dma.hbm_to_vmem [thread:$0]  %s88, 3072, %s90, [#allocation12], 192, 192, 12
    $region37: #{tpu_custom_call.1} parent=1 // pred_fallthru
      _
    // Predicated region
    $region38: #{tpu_custom_call.1} parent=1 // pred_check
      _
    $region39: #{tpu_custom_call.1} parent=1 // pred_check_branch
      %97 = sbr.rel (0) target = $region41
    $region40: #{tpu_custom_call.1} parent=1 // pred_region
      _
    $region41: #{tpu_custom_call.1} parent=1 // pred_fallthru
      _
    // Predicated region
    $region42: #{tpu_custom_call.1} parent=1 // pred_check
      _
    $region43: #{tpu_custom_call.1} parent=1 // pred_check_branch
      %99 = sbr.rel (0) target = $region45
    $region44: #{tpu_custom_call.1} parent=1 // pred_region
      _
    $region45: #{tpu_custom_call.1} parent=1 // pred_fallthru
      _
    // Predicated region
    $region46: #{tpu_custom_call.1} parent=1 // pred_check
      _
    $region47: #{tpu_custom_call.1} parent=1 // pred_check_branch
      %101 = sbr.rel (0) target = $region49
    $region48: #{tpu_custom_call.1} parent=1 // pred_region
      %103 = vsyncadd [#allocation15], 0
      %s104 = sshll.u32 %s11, 4
      %s105 = int_to_ptr.hbm [resolvable:$true] %s104
      %s106 = sshll.u32 [#allocation14], 4
      %s107 = int_to_ptr.vmem [resolvable:$true] %s106
      %112 = dma.hbm_to_vmem [thread:$0]  %s105, 1024, %s107, [#allocation15], 64, 64, 4
    $region49: #{tpu_custom_call.1} parent=1 // pred_fallthru
      _
    // Predicated region
    $region50: #{tpu_custom_call.1} parent=1 // pred_check
      _
    $region51: #{tpu_custom_call.1} parent=1 // pred_check_branch
      %114 = sbr.rel (0) target = $region53
    $region52: #{tpu_custom_call.1} parent=1 // pred_region
      _
    $region53: #{tpu_custom_call.1} parent=1 // pred_fallthru
      _
    // Predicated region
    $region54: #{tpu_custom_call.1} parent=1 // pred_check
      _
    $region55: #{tpu_custom_call.1} parent=1 // pred_check_branch
      %116 = sbr.rel (0) target = $region57
    $region56: #{tpu_custom_call.1} parent=1 // pred_region
      %118 = dma.done [#allocation6], 512
    $region57: #{tpu_custom_call.1} parent=1 // pred_fallthru
      _
    // Predicated region
    $region58: #{tpu_custom_call.1} parent=1 // pred_check
      _
    $region59: #{tpu_custom_call.1} parent=1 // pred_check_branch
      %120 = sbr.rel (0) target = $region61
    $region60: #{tpu_custom_call.1} parent=1 // pred_region
      %122 = dma.done [#allocation9], 3072
    $region61: #{tpu_custom_call.1} parent=1 // pred_fallthru
      _
    // Predicated region
    $region62: #{tpu_custom_call.1} parent=1 // pred_check
      _
    $region63: #{tpu_custom_call.1} parent=1 // pred_check_branch
      %124 = sbr.rel (0) target = $region65
    $region64: #{tpu_custom_call.1} parent=1 // pred_region
      %126 = dma.done [#allocation9], 3072
    $region65: #{tpu_custom_call.1} parent=1 // pred_fallthru
      _
    // Predicated region
    $region66: #{tpu_custom_call.1} parent=1 // pred_check
      _
    $region67: #{tpu_custom_call.1} parent=1 // pred_check_branch
      %128 = sbr.rel (0) target = $region69
    $region68: #{tpu_custom_call.1} parent=1 // pred_region
      %130 = dma.done [#allocation12], 3072
    $region69: #{tpu_custom_call.1} parent=1 // pred_fallthru
      _
    // Predicated region
    $region70: #{tpu_custom_call.1} parent=1 // pred_check
      _
    $region71: #{tpu_custom_call.1} parent=1 // pred_check_branch
      %132 = sbr.rel (0) target = $region73
    $region72: #{tpu_custom_call.1} parent=1 // pred_region
      %134 = dma.done [#allocation12], 3072
    $region73: #{tpu_custom_call.1} parent=1 // pred_fallthru
      _
    // Predicated region
    $region74: #{tpu_custom_call.1} parent=1 // pred_check
      _
    $region75: #{tpu_custom_call.1} parent=1 // pred_check_branch
      %136 = sbr.rel (0) target = $region77
    $region76: #{tpu_custom_call.1} parent=1 // pred_region
      %138 = dma.done [#allocation15], 1024
    $region77: #{tpu_custom_call.1} parent=1 // pred_fallthru
      _
    %p139 = scmp.eq.s32.totalorder 0, 0
    // Predicated region
    $region78: #{tpu_custom_call.1} parent=1 // pred_check
      %p140 = pneg %p139
    $region79: #{tpu_custom_call.1} parent=1 // pred_check_branch
      %142 = sbr.rel (%p140) target = $region81
    $region80: #{tpu_custom_call.1} parent=1 // pred_region
      %143 = vst [vmem:[#allocation4] sm:$0xff] 0.0
      %144 = vst [vmem:[#allocation4 + $0x8] sm:$0xff] 0.0
    $region81: #{tpu_custom_call.1} parent=1 // pred_fallthru
      _
    %v145 = vld [vmem:[%s1] sm:$0xff]
    %s146 = smul.u32 0, 8
    %v147 = vld [vmem:[#allocation5] sm:$0xf]
    %v148 = vld [vmem:[#allocation5 + $0x4] sm:$0xf]
    %v149 = vld [vmem:[#allocation5 + $0x8] sm:$0xf]
    %v150 = vld [vmem:[#allocation5 + $0xc] sm:$0xf]
    %v151 = vld [vmem:[#allocation5 + $0x10] sm:$0xf]
    %v152 = vld [vmem:[#allocation5 + $0x14] sm:$0xf]
    %v153 = vld [vmem:[#allocation5 + $0x18] sm:$0xf]
    %v154 = vld [vmem:[#allocation5 + $0x1c] sm:$0xf]
    %v155 = vld [vmem:[#allocation8] sm:$0xff]
    %v156 = vld [vmem:[#allocation8 + $0x8] sm:$0xf]
    %v157 = vld [vmem:[#allocation8 + $0xc] sm:$0xff]
    %v158 = vld [vmem:[#allocation8 + $0x14] sm:$0xf]
    %v159 = vld [vmem:[#allocation8 + $0x18] sm:$0xff]
    %v160 = vld [vmem:[#allocation8 + $0x20] sm:$0xf]
    %v161 = vld [vmem:[#allocation8 + $0x24] sm:$0xff]
    %v162 = vld [vmem:[#allocation8 + $0x2c] sm:$0xf]
    %v163 = vld [vmem:[#allocation8 + $0x30] sm:$0xff]
    %v164 = vld [vmem:[#allocation8 + $0x38] sm:$0xf]
    %v165 = vld [vmem:[#allocation8 + $0x3c] sm:$0xff]
    %v166 = vld [vmem:[#allocation8 + $0x44] sm:$0xf]
    %v167 = vld [vmem:[#allocation8 + $0x48] sm:$0xff]
    %v168 = vld [vmem:[#allocation8 + $0x50] sm:$0xf]
    %v169 = vld [vmem:[#allocation8 + $0x54] sm:$0xff]
    %v170 = vld [vmem:[#allocation8 + $0x5c] sm:$0xf]
    %v171 = vld [vmem:[#allocation8 + $0x60] sm:$0xff]
    %v172 = vld [vmem:[#allocation8 + $0x68] sm:$0xf]
    %v173 = vld [vmem:[#allocation8 + $0x6c] sm:$0xff]
    %v174 = vld [vmem:[#allocation8 + $0x74] sm:$0xf]
    %v175 = vld [vmem:[#allocation8 + $0x78] sm:$0xff]
    %v176 = vld [vmem:[#allocation8 + $0x80] sm:$0xf]
    %v177 = vld [vmem:[#allocation8 + $0x84] sm:$0xff]
    %v178 = vld [vmem:[#allocation8 + $0x8c] sm:$0xf]
    %v179 = vld [vmem:[#allocation8 + $0x90] sm:$0xff]
    %v180 = vld [vmem:[#allocation8 + $0x98] sm:$0xf]
    %v181 = vld [vmem:[#allocation8 + $0x9c] sm:$0xff]
    %v182 = vld [vmem:[#allocation8 + $0xa4] sm:$0xf]
    %v183 = vld [vmem:[#allocation8 + $0xa8] sm:$0xff]
    %v184 = vld [vmem:[#allocation8 + $0xb0] sm:$0xf]
    %v185 = vld [vmem:[#allocation8 + $0xb4] sm:$0xff]
    %v186 = vld [vmem:[#allocation8 + $0xbc] sm:$0xf]
    %v187 = vld [vmem:[%s5] sm:$0x7]
    %v189 = vperm.slane %v187, 0
    %v190 = vperm.slane %v187, 1
    %v191 = vperm.slane %v187, 2
    %v203 = vunpack.c.l.b16 %v147
    %v204 = vunpack.c.l.b16 %v148
    %v205 = vunpack.c.l.b16 %v149
    %v206 = vunpack.c.l.b16 %v150
    %v207 = vunpack.c.l.b16 %v151
    %v208 = vunpack.c.l.b16 %v152
    %v209 = vunpack.c.l.b16 %v153
    %v210 = vunpack.c.l.b16 %v154
    %v211 = vpack.c.b16 %v204, %v203
    %v212 = vpack.c.b16 %v206, %v205
    %v213 = vpack.c.b16 %v208, %v207
    %v214 = vpack.c.b16 %v210, %v209
    %v251 = vunpack.c.l.b16 %v155
    %v252 = vunpack.c.h.b16 %v155
    %v253 = vunpack.c.l.b16 %v156
    %v254 = vunpack.c.l.b16 %v157
    %v255 = vunpack.c.h.b16 %v157
    %v256 = vunpack.c.l.b16 %v158
    %v257 = vunpack.c.l.b16 %v159
    %v258 = vunpack.c.h.b16 %v159
    %v259 = vunpack.c.l.b16 %v160
    %v260 = vunpack.c.l.b16 %v161
    %v261 = vunpack.c.h.b16 %v161
    %v262 = vunpack.c.l.b16 %v162
    %v263 = vunpack.c.l.b16 %v163
    %v264 = vunpack.c.h.b16 %v163
    %v265 = vunpack.c.l.b16 %v164
    %v266 = vunpack.c.l.b16 %v165
    %v267 = vunpack.c.h.b16 %v165
    %v268 = vunpack.c.l.b16 %v166
    %v269 = vunpack.c.l.b16 %v167
    %v270 = vunpack.c.h.b16 %v167
    %v271 = vunpack.c.l.b16 %v168
    %v272 = vunpack.c.l.b16 %v169
    %v273 = vunpack.c.h.b16 %v169
    %v274 = vunpack.c.l.b16 %v170
    %v275 = vunpack.c.l.b16 %v171
    %v276 = vunpack.c.h.b16 %v171
    %v277 = vunpack.c.l.b16 %v172
    %v278 = vunpack.c.l.b16 %v173
    %v279 = vunpack.c.h.b16 %v173
    %v280 = vunpack.c.l.b16 %v174
    %v281 = vunpack.c.l.b16 %v175
    %v282 = vunpack.c.h.b16 %v175
    %v283 = vunpack.c.l.b16 %v176
    %v284 = vunpack.c.l.b16 %v177
    %v285 = vunpack.c.h.b16 %v177
    %v286 = vunpack.c.l.b16 %v178
    %v287 = vunpack.c.l.b16 %v179
    %v288 = vunpack.c.h.b16 %v179
    %v289 = vunpack.c.l.b16 %v180
    %v290 = vunpack.c.l.b16 %v181
    %v291 = vunpack.c.h.b16 %v181
    %v292 = vunpack.c.l.b16 %v182
    %v293 = vunpack.c.l.b16 %v183
    %v294 = vunpack.c.h.b16 %v183
    %v295 = vunpack.c.l.b16 %v184
    %v296 = vunpack.c.l.b16 %v185
    %v297 = vunpack.c.h.b16 %v185
    %v298 = vunpack.c.l.b16 %v186
    %v299 = vpack.c.b16 %v254, %v251
    %v300 = vpack.c.b16 %v255, %v252
    %v301 = vpack.c.b16 %v256, %v253
    %v302 = vpack.c.b16 %v260, %v257
    %v303 = vpack.c.b16 %v261, %v258
    %v304 = vpack.c.b16 %v262, %v259
    %v305 = vpack.c.b16 %v266, %v263
    %v306 = vpack.c.b16 %v267, %v264
    %v307 = vpack.c.b16 %v268, %v265
    %v308 = vpack.c.b16 %v272, %v269
    %v309 = vpack.c.b16 %v273, %v270
    %v310 = vpack.c.b16 %v274, %v271
    %v311 = vpack.c.b16 %v278, %v275
    %v312 = vpack.c.b16 %v279, %v276
    %v313 = vpack.c.b16 %v280, %v277
    %v314 = vpack.c.b16 %v284, %v281
    %v315 = vpack.c.b16 %v285, %v282
    %v316 = vpack.c.b16 %v286, %v283
    %v317 = vpack.c.b16 %v290, %v287
    %v318 = vpack.c.b16 %v291, %v288
    %v319 = vpack.c.b16 %v292, %v289
    %v320 = vpack.c.b16 %v296, %v293
    %v321 = vpack.c.b16 %v297, %v294
    %v322 = vpack.c.b16 %v298, %v295
    %347 = vmatpush.bf16.msra.mxu0 %v320
    %348 = vmatpush.bf16.msra.mxu0 %v317
    %349 = vmatpush.bf16.msra.mxu0 %v314
    %350 = vmatpush.bf16.msra.mxu0 %v311
    %351 = vmatpush.bf16.msra.mxu0 %v308
    %352 = vmatpush.bf16.msra.mxu0 %v305
    %353 = vmatpush.bf16.msra.mxu0 %v302
    %354 = vmatpush.bf16.msra.mxu0 %v299
    %355 = vmatmul.bf16.gmra.mxu0 %v211
    %v356 = vpop.f32.mrf.mxu0
    %v357 = vadd.f32 %v189, %v356
    %v358 = vpop.f32.mrf.mxu0
    %v359 = vadd.f32 %v189, %v358
    %360 = vmatmul.bf16.gmra.mxu0 %v212
    %v361 = vpop.f32.mrf.mxu0
    %v362 = vadd.f32 %v189, %v361
    %v363 = vpop.f32.mrf.mxu0
    %v364 = vadd.f32 %v189, %v363
    %365 = vmatmul.bf16.gmra.mxu0 %v213
    %v366 = vpop.f32.mrf.mxu0
    %v367 = vadd.f32 %v189, %v366
    %v368 = vpop.f32.mrf.mxu0
    %v369 = vadd.f32 %v189, %v368
    %370 = vmatmul.bf16.gmra.mxu0 %v214
    %v371 = vpop.f32.mrf.mxu0
    %v372 = vadd.f32 %v189, %v371
    %v373 = vpop.f32.mrf.mxu0
    %v374 = vadd.f32 %v189, %v373
    %375 = vdwg.mxu0
    %376 = vmatpush.bf16.msra.mxu0 %v321
    %377 = vmatpush.bf16.msra.mxu0 %v318
    %378 = vmatpush.bf16.msra.mxu0 %v315
    %379 = vmatpush.bf16.msra.mxu0 %v312
    %380 = vmatpush.bf16.msra.mxu0 %v309
    %381 = vmatpush.bf16.msra.mxu0 %v306
    %382 = vmatpush.bf16.msra.mxu0 %v303
    %383 = vmatpush.bf16.msra.mxu0 %v300
    %384 = vmatmul.bf16.gmra.mxu0 %v211
    %v385 = vpop.f32.mrf.mxu0
    %v386 = vadd.f32 %v190, %v385
    %v387 = vpop.f32.mrf.mxu0
    %v388 = vadd.f32 %v190, %v387
    %389 = vmatmul.bf16.gmra.mxu0 %v212
    %v390 = vpop.f32.mrf.mxu0
    %v391 = vadd.f32 %v190, %v390
    %v392 = vpop.f32.mrf.mxu0
    %v393 = vadd.f32 %v190, %v392
    %394 = vmatmul.bf16.gmra.mxu0 %v213
    %v395 = vpop.f32.mrf.mxu0
    %v396 = vadd.f32 %v190, %v395
    %v397 = vpop.f32.mrf.mxu0
    %v398 = vadd.f32 %v190, %v397
    %399 = vmatmul.bf16.gmra.mxu0 %v214
    %v400 = vpop.f32.mrf.mxu0
    %v401 = vadd.f32 %v190, %v400
    %v402 = vpop.f32.mrf.mxu0
    %v403 = vadd.f32 %v190, %v402
    %404 = vdwg.mxu0
    %405 = vmatpush.bf16.msra.mxu0 %v322
    %406 = vmatpush.bf16.msra.mxu0 %v319
    %407 = vmatpush.bf16.msra.mxu0 %v316
    %408 = vmatpush.bf16.msra.mxu0 %v313
    %409 = vmatpush.bf16.msra.mxu0 %v310
    %410 = vmatpush.bf16.msra.mxu0 %v307
    %411 = vmatpush.bf16.msra.mxu0 %v304
    %412 = vmatpush.bf16.msra.mxu0 %v301
    %413 = vmatmul.bf16.gmra.mxu0 %v211
    %v414 = vpop.f32.mrf.mxu0
    %v415 = vadd.f32 %v191, %v414
    %v416 = vpop.f32.mrf.mxu0
    %v417 = vadd.f32 %v191, %v416
    %418 = vmatmul.bf16.gmra.mxu0 %v212
    %v419 = vpop.f32.mrf.mxu0
    %v420 = vadd.f32 %v191, %v419
    %v421 = vpop.f32.mrf.mxu0
    %v422 = vadd.f32 %v191, %v421
    %423 = vmatmul.bf16.gmra.mxu0 %v213
    %v424 = vpop.f32.mrf.mxu0
    %v425 = vadd.f32 %v191, %v424
    %v426 = vpop.f32.mrf.mxu0
    %v427 = vadd.f32 %v191, %v426
    %428 = vmatmul.bf16.gmra.mxu0 %v214
    %v429 = vpop.f32.mrf.mxu0
    %v430 = vadd.f32 %v191, %v429
    %v431 = vpop.f32.mrf.mxu0
    %v432 = vadd.f32 %v191, %v431
    %433 = vdwg.mxu0
    %v434 = vpack.c.bf16 %v386, %v357
    %v435 = vpack.c.bf16 %v415, %v415
    %v436 = vpack.c.bf16 %v388, %v359
    %v437 = vpack.c.bf16 %v417, %v417
    %v438 = vpack.c.bf16 %v391, %v362
    %v439 = vpack.c.bf16 %v420, %v420
    %v440 = vpack.c.bf16 %v393, %v364
    %v441 = vpack.c.bf16 %v422, %v422
    %v442 = vpack.c.bf16 %v396, %v367
    %v443 = vpack.c.bf16 %v425, %v425
    %v444 = vpack.c.bf16 %v398, %v369
    %v445 = vpack.c.bf16 %v427, %v427
    %v446 = vpack.c.bf16 %v401, %v372
    %v447 = vpack.c.bf16 %v430, %v430
    %v448 = vpack.c.bf16 %v403, %v374
    %v449 = vpack.c.bf16 %v432, %v432
    %450 = vst [vmem:[#allocation2] sm:$0xff] %v434
    %451 = vst [vmem:[#allocation2 + $0x8] sm:$0xf] %v435
    %452 = vst [vmem:[#allocation2 + $0xc] sm:$0xff] %v436
    %453 = vst [vmem:[#allocation2 + $0x14] sm:$0xf] %v437
    %454 = vst [vmem:[#allocation2 + $0x18] sm:$0xff] %v438
    %455 = vst [vmem:[#allocation2 + $0x20] sm:$0xf] %v439
    %456 = vst [vmem:[#allocation2 + $0x24] sm:$0xff] %v440
    %457 = vst [vmem:[#allocation2 + $0x2c] sm:$0xf] %v441
    %458 = vst [vmem:[#allocation2 + $0x30] sm:$0xff] %v442
    %459 = vst [vmem:[#allocation2 + $0x38] sm:$0xf] %v443
    %460 = vst [vmem:[#allocation2 + $0x3c] sm:$0xff] %v444
    %461 = vst [vmem:[#allocation2 + $0x44] sm:$0xf] %v445
    %462 = vst [vmem:[#allocation2 + $0x48] sm:$0xff] %v446
    %463 = vst [vmem:[#allocation2 + $0x50] sm:$0xf] %v447
    %464 = vst [vmem:[#allocation2 + $0x54] sm:$0xff] %v448
    %465 = vst [vmem:[#allocation2 + $0x5c] sm:$0xf] %v449
    %v466 = vld [vmem:[#allocation4] sm:$0xff]
    %v467 = vld [vmem:[#allocation2] sm:$0xff]
    %v468 = vld [vmem:[#allocation2 + $0x8] sm:$0xf]
    %v469 = vunpack.c.l.bf16 %v467
    %v470 = vunpack.c.h.bf16 %v467
    %v471 = vunpack.c.l.bf16 %v468
    %v472 = vpack.c.bf16 %v466, %v466
    %v473 = vld [vmem:[#allocation10] sm:$0xff]
    %v474 = vld [vmem:[#allocation10 + $0x8] sm:$0xf]
    %v475 = vld [vmem:[#allocation10 + $0xc] sm:$0xff]
    %v476 = vld [vmem:[#allocation10 + $0x14] sm:$0xf]
    %v477 = vld [vmem:[#allocation10 + $0x18] sm:$0xff]
    %v478 = vld [vmem:[#allocation10 + $0x20] sm:$0xf]
    %v479 = vld [vmem:[#allocation10 + $0x24] sm:$0xff]
    %v480 = vld [vmem:[#allocation10 + $0x2c] sm:$0xf]
    %v481 = vld [vmem:[#allocation10 + $0x30] sm:$0xff]
    %v482 = vld [vmem:[#allocation10 + $0x38] sm:$0xf]
    %v483 = vld [vmem:[#allocation10 + $0x3c] sm:$0xff]
    %v484 = vld [vmem:[#allocation10 + $0x44] sm:$0xf]
    %v485 = vld [vmem:[#allocation10 + $0x48] sm:$0xff]
    %v486 = vld [vmem:[#allocation10 + $0x50] sm:$0xf]
    %v487 = vld [vmem:[#allocation10 + $0x54] sm:$0xff]
    %v488 = vld [vmem:[#allocation10 + $0x5c] sm:$0xf]
    %v489 = vld [vmem:[#allocation10 + $0x60] sm:$0xff]
    %v490 = vld [vmem:[#allocation10 + $0x68] sm:$0xf]
    %v491 = vld [vmem:[#allocation10 + $0x6c] sm:$0xff]
    %v492 = vld [vmem:[#allocation10 + $0x74] sm:$0xf]
    %v493 = vld [vmem:[#allocation10 + $0x78] sm:$0xff]
    %v494 = vld [vmem:[#allocation10 + $0x80] sm:$0xf]
    %v495 = vld [vmem:[#allocation10 + $0x84] sm:$0xff]
    %v496 = vld [vmem:[#allocation10 + $0x8c] sm:$0xf]
    %v497 = vld [vmem:[#allocation10 + $0x90] sm:$0xff]
    %v498 = vld [vmem:[#allocation10 + $0x98] sm:$0xf]
    %v499 = vld [vmem:[#allocation10 + $0x9c] sm:$0xff]
    %v500 = vld [vmem:[#allocation10 + $0xa4] sm:$0xf]
    %v501 = vld [vmem:[#allocation10 + $0xa8] sm:$0xff]
    %v502 = vld [vmem:[#allocation10 + $0xb0] sm:$0xf]
    %v503 = vld [vmem:[#allocation10 + $0xb4] sm:$0xff]
    %v504 = vld [vmem:[#allocation10 + $0xbc] sm:$0xf]
    %v537 = vunpack.c.l.b16 %v473
    %v538 = vunpack.c.h.b16 %v473
    %v539 = vunpack.c.l.b16 %v474
    %v540 = vunpack.c.l.b16 %v475
    %v541 = vunpack.c.h.b16 %v475
    %v542 = vunpack.c.l.b16 %v476
    %v543 = vunpack.c.l.b16 %v477
    %v544 = vunpack.c.h.b16 %v477
    %v545 = vunpack.c.l.b16 %v478
    %v546 = vunpack.c.l.b16 %v479
    %v547 = vunpack.c.h.b16 %v479
    %v548 = vunpack.c.l.b16 %v480
    %v549 = vunpack.c.l.b16 %v481
    %v550 = vunpack.c.h.b16 %v481
    %v551 = vunpack.c.l.b16 %v482
    %v552 = vunpack.c.l.b16 %v483
    %v553 = vunpack.c.h.b16 %v483
    %v554 = vunpack.c.l.b16 %v484
    %v555 = vunpack.c.l.b16 %v485
    %v556 = vunpack.c.h.b16 %v485
    %v557 = vunpack.c.l.b16 %v486
    %v558 = vunpack.c.l.b16 %v487
    %v559 = vunpack.c.h.b16 %v487
    %v560 = vunpack.c.l.b16 %v488
    %v561 = vunpack.c.l.b16 %v489
    %v562 = vunpack.c.h.b16 %v489
    %v563 = vunpack.c.l.b16 %v490
    %v564 = vunpack.c.l.b16 %v491
    %v565 = vunpack.c.h.b16 %v491
    %v566 = vunpack.c.l.b16 %v492
    %v567 = vunpack.c.l.b16 %v493
    %v568 = vunpack.c.h.b16 %v493
    %v569 = vunpack.c.l.b16 %v494
    %v570 = vunpack.c.l.b16 %v495
    %v571 = vunpack.c.h.b16 %v495
    %v572 = vunpack.c.l.b16 %v496
    %v573 = vunpack.c.l.b16 %v497
    %v574 = vunpack.c.h.b16 %v497
    %v575 = vunpack.c.l.b16 %v498
    %v576 = vunpack.c.l.b16 %v499
    %v577 = vunpack.c.h.b16 %v499
    %v578 = vunpack.c.l.b16 %v500
    %v579 = vunpack.c.l.b16 %v501
    %v580 = vunpack.c.h.b16 %v501
    %v581 = vunpack.c.l.b16 %v502
    %v582 = vunpack.c.l.b16 %v503
    %v583 = vunpack.c.h.b16 %v503
    %v584 = vunpack.c.l.b16 %v504
    %v585 = vpack.c.b16 %v540, %v537
    %v586 = vpack.c.b16 %v541, %v538
    %v587 = vpack.c.b16 %v542, %v539
    %v588 = vpack.c.b16 %v546, %v543
    %v589 = vpack.c.b16 %v547, %v544
    %v590 = vpack.c.b16 %v548, %v545
    %v591 = vpack.c.b16 %v552, %v549
    %v592 = vpack.c.b16 %v553, %v550
    %v593 = vpack.c.b16 %v554, %v551
    %v594 = vpack.c.b16 %v558, %v555
    %v595 = vpack.c.b16 %v559, %v556
    %v596 = vpack.c.b16 %v560, %v557
    %v597 = vpack.c.b16 %v564, %v561
    %v598 = vpack.c.b16 %v565, %v562
    %v599 = vpack.c.b16 %v566, %v563
    %v600 = vpack.c.b16 %v570, %v567
    %v601 = vpack.c.b16 %v571, %v568
    %v602 = vpack.c.b16 %v572, %v569
    %v603 = vpack.c.b16 %v576, %v573
    %v604 = vpack.c.b16 %v577, %v574
    %v605 = vpack.c.b16 %v578, %v575
    %v606 = vpack.c.b16 %v582, %v579
    %v607 = vpack.c.b16 %v583, %v580
    %v608 = vpack.c.b16 %v584, %v581
    %633 = vmatpush.bf16.msra.mxu0 %v606
    %634 = vmatpush.bf16.msra.mxu0 %v603
    %635 = vmatpush.bf16.msra.mxu0 %v600
    %636 = vmatpush.bf16.msra.mxu0 %v597
    %637 = vmatpush.bf16.msra.mxu0 %v594
    %638 = vmatpush.bf16.msra.mxu0 %v591
    %639 = vmatpush.bf16.msra.mxu0 %v588
    %640 = vmatpush.bf16.msra.mxu0 %v585
    %641 = vmatmul.bf16.gmra.mxu0 %v472
    %v642 = vpop.f32.mrf.mxu0
    %v643 = vadd.f32 0.0, %v642
    %v644 = vpop.f32.mrf.mxu0
    %645 = vdwg.mxu0
    %646 = vmatpush.bf16.msra.mxu0 %v607
    %647 = vmatpush.bf16.msra.mxu0 %v604
    %648 = vmatpush.bf16.msra.mxu0 %v601
    %649 = vmatpush.bf16.msra.mxu0 %v598
    %650 = vmatpush.bf16.msra.mxu0 %v595
    %651 = vmatpush.bf16.msra.mxu0 %v592
    %652 = vmatpush.bf16.msra.mxu0 %v589
    %653 = vmatpush.bf16.msra.mxu0 %v586
    %654 = vmatmul.bf16.gmra.mxu0 %v472
    %v655 = vpop.f32.mrf.mxu0
    %v656 = vadd.f32 0.0, %v655
    %v657 = vpop.f32.mrf.mxu0
    %658 = vdwg.mxu0
    %659 = vmatpush.bf16.msra.mxu0 %v608
    %660 = vmatpush.bf16.msra.mxu0 %v605
    %661 = vmatpush.bf16.msra.mxu0 %v602
    %662 = vmatpush.bf16.msra.mxu0 %v599
    %663 = vmatpush.bf16.msra.mxu0 %v596
    %664 = vmatpush.bf16.msra.mxu0 %v593
    %665 = vmatpush.bf16.msra.mxu0 %v590
    %666 = vmatpush.bf16.msra.mxu0 %v587
    %667 = vmatmul.bf16.gmra.mxu0 %v472
    %v668 = vpop.f32.mrf.mxu0
    %v669 = vadd.f32 0.0, %v668
    %v670 = vpop.f32.mrf.mxu0
    %671 = vdwg.mxu0
    %v672 = vadd.f32 %v469, %v643
    %v673 = vxor.u32 %v672, 2147483648
    %v674 = vmul.f32 %v673, 1.442695
    %v675 = vpow.pop %v674
    %v676 = vadd.f32 %v675, 1.0
    %v677 = vrcp.pop %v676
    %v678 = vmul.f32 %v676, %v677
    %v679 = vsub.f32 1.0, %v678
    %v680 = vmul.f32 %v677, %v679
    %v681 = vadd.f32 %v677, %v680
    %vm682 = vweird.f32 %v676
    %vm683 = vweird.f32 %v677
    %vm684 = vmor %vm682, %vm683
    %v685 = vsel %vm684, %v677, %v681
    %v686 = vand.u32 2147483647, %v676
    %vm687 = vcmp.eq.f32.partialorder %v686, 8.507059e+37
    %v688 = vand.u32 %v676, 2147483648
    %v689 = vor.u32 1.1754944e-38, %v688
    %v690 = vsel %vm687, %v689, %v685
    %v691 = vmul.f32 1.0, %v690
    %v692 = vadd.f32 %v470, %v656
    %v693 = vxor.u32 %v692, 2147483648
    %v694 = vmul.f32 %v693, 1.442695
    %v695 = vpow.pop %v694
    %v696 = vadd.f32 %v695, 1.0
    %v697 = vrcp.pop %v696
    %v698 = vmul.f32 %v696, %v697
    %v699 = vsub.f32 1.0, %v698
    %v700 = vmul.f32 %v697, %v699
    %v701 = vadd.f32 %v697, %v700
    %vm702 = vweird.f32 %v696
    %vm703 = vweird.f32 %v697
    %vm704 = vmor %vm702, %vm703
    %v705 = vsel %vm704, %v697, %v701
    %v706 = vand.u32 2147483647, %v696
    %vm707 = vcmp.eq.f32.partialorder %v706, 8.507059e+37
    %v708 = vand.u32 %v696, 2147483648
    %v709 = vor.u32 1.1754944e-38, %v708
    %v710 = vsel %vm707, %v709, %v705
    %v711 = vmul.f32 1.0, %v710
    %v712 = vld [vmem:[%s6] sm:$0x1]
    %v714 = vperm.slane %v712, 0
    %v716 = vadd.f32 %v669, %v714
    %v717 = vmul.f32 %v691, %v716
    %v718 = vadd.f32 %v471, %v717
    %v719 = vtanh.pop %v718
    %v720 = vsub.f32 1.0, %v711
    %v721 = vmul.f32 %v720, %v719
    %v722 = vmul.f32 %v711, %v466
    %v723 = vadd.f32 %v721, %v722
    %v724 = vstv %s146
    %vm725 = vcmp.lt.s32.totalorder %v724, %v145
    %v726 = vsel %vm725, 1, 0
    %727 = vset.pattern.permute.xlu0 0
    %728 = vperm.xlu0 %727, %v726
    %v729 = vpop.permute.xlu0 %728
    %vm730 = vcmp.eq.s32.totalorder %v729, 1
    %v731 = vsel %vm730, %v723, %v466
    %v732 = vpack.c.bf16 %v731, %v731
    %733 = vst [vmem:[#allocation3] sm:$0xf] %v732
    %s734 = scalar_lea.vmem [#allocation2], 12
    %v735 = vld [vmem:[%s734] sm:$0xff]
    %v736 = vld [vmem:[%s734 + $0x8] sm:$0xf]
    %v737 = vunpack.c.l.bf16 %v735
    %v738 = vunpack.c.h.bf16 %v735
    %v739 = vunpack.c.l.bf16 %v736
    %v740 = vld [vmem:[#allocation10] sm:$0xff]
    %v741 = vld [vmem:[#allocation10 + $0x8] sm:$0xf]
    %v742 = vld [vmem:[#allocation10 + $0xc] sm:$0xff]
    %v743 = vld [vmem:[#allocation10 + $0x14] sm:$0xf]
    %v744 = vld [vmem:[#allocation10 + $0x18] sm:$0xff]
    %v745 = vld [vmem:[#allocation10 + $0x20] sm:$0xf]
    %v746 = vld [vmem:[#allocation10 + $0x24] sm:$0xff]
    %v747 = vld [vmem:[#allocation10 + $0x2c] sm:$0xf]
    %v748 = vld [vmem:[#allocation10 + $0x30] sm:$0xff]
    %v749 = vld [vmem:[#allocation10 + $0x38] sm:$0xf]
    %v750 = vld [vmem:[#allocation10 + $0x3c] sm:$0xff]
    %v751 = vld [vmem:[#allocation10 + $0x44] sm:$0xf]
    %v752 = vld [vmem:[#allocation10 + $0x48] sm:$0xff]
    %v753 = vld [vmem:[#allocation10 + $0x50] sm:$0xf]
    %v754 = vld [vmem:[#allocation10 + $0x54] sm:$0xff]
    %v755 = vld [vmem:[#allocation10 + $0x5c] sm:$0xf]
    %v756 = vld [vmem:[#allocation10 + $0x60] sm:$0xff]
    %v757 = vld [vmem:[#allocation10 + $0x68] sm:$0xf]
    %v758 = vld [vmem:[#allocation10 + $0x6c] sm:$0xff]
    %v759 = vld [vmem:[#allocation10 + $0x74] sm:$0xf]
    %v760 = vld [vmem:[#allocation10 + $0x78] sm:$0xff]
    %v761 = vld [vmem:[#allocation10 + $0x80] sm:$0xf]
    %v762 = vld [vmem:[#allocation10 + $0x84] sm:$0xff]
    %v763 = vld [vmem:[#allocation10 + $0x8c] sm:$0xf]
    %v764 = vld [vmem:[#allocation10 + $0x90] sm:$0xff]
    %v765 = vld [vmem:[#allocation10 + $0x98] sm:$0xf]
    %v766 = vld [vmem:[#allocation10 + $0x9c] sm:$0xff]
    %v767 = vld [vmem:[#allocation10 + $0xa4] sm:$0xf]
    %v768 = vld [vmem:[#allocation10 + $0xa8] sm:$0xff]
    %v769 = vld [vmem:[#allocation10 + $0xb0] sm:$0xf]
    %v770 = vld [vmem:[#allocation10 + $0xb4] sm:$0xff]
    %v771 = vld [vmem:[#allocation10 + $0xbc] sm:$0xf]
    %v804 = vunpack.c.l.b16 %v740
    %v805 = vunpack.c.h.b16 %v740
    %v806 = vunpack.c.l.b16 %v741
    %v807 = vunpack.c.l.b16 %v742
    %v808 = vunpack.c.h.b16 %v742
    %v809 = vunpack.c.l.b16 %v743
    %v810 = vunpack.c.l.b16 %v744
    %v811 = vunpack.c.h.b16 %v744
    %v812 = vunpack.c.l.b16 %v745
    %v813 = vunpack.c.l.b16 %v746
    %v814 = vunpack.c.h.b16 %v746
    %v815 = vunpack.c.l.b16 %v747
    %v816 = vunpack.c.l.b16 %v748
    %v817 = vunpack.c.h.b16 %v748
    %v818 = vunpack.c.l.b16 %v749
    %v819 = vunpack.c.l.b16 %v750
    %v820 = vunpack.c.h.b16 %v750
    %v821 = vunpack.c.l.b16 %v751
    %v822 = vunpack.c.l.b16 %v752
    %v823 = vunpack.c.h.b16 %v752
    %v824 = vunpack.c.l.b16 %v753
    %v825 = vunpack.c.l.b16 %v754
    %v826 = vunpack.c.h.b16 %v754
    %v827 = vunpack.c.l.b16 %v755
    %v828 = vunpack.c.l.b16 %v756
    %v829 = vunpack.c.h.b16 %v756
    %v830 = vunpack.c.l.b16 %v757
    %v831 = vunpack.c.l.b16 %v758
    %v832 = vunpack.c.h.b16 %v758
    %v833 = vunpack.c.l.b16 %v759
    %v834 = vunpack.c.l.b16 %v760
    %v835 = vunpack.c.h.b16 %v760
    %v836 = vunpack.c.l.b16 %v761
    %v837 = vunpack.c.l.b16 %v762
    %v838 = vunpack.c.h.b16 %v762
    %v839 = vunpack.c.l.b16 %v763
    %v840 = vunpack.c.l.b16 %v764
    %v841 = vunpack.c.h.b16 %v764
    %v842 = vunpack.c.l.b16 %v765
    %v843 = vunpack.c.l.b16 %v766
    %v844 = vunpack.c.h.b16 %v766
    %v845 = vunpack.c.l.b16 %v767
    %v846 = vunpack.c.l.b16 %v768
    %v847 = vunpack.c.h.b16 %v768
    %v848 = vunpack.c.l.b16 %v769
    %v849 = vunpack.c.l.b16 %v770
    %v850 = vunpack.c.h.b16 %v770
    %v851 = vunpack.c.l.b16 %v771
    %v852 = vpack.c.b16 %v807, %v804
    %v853 = vpack.c.b16 %v808, %v805
    %v854 = vpack.c.b16 %v809, %v806
    %v855 = vpack.c.b16 %v813, %v810
    %v856 = vpack.c.b16 %v814, %v811
    %v857 = vpack.c.b16 %v815, %v812
    %v858 = vpack.c.b16 %v819, %v816
    %v859 = vpack.c.b16 %v820, %v817
    %v860 = vpack.c.b16 %v821, %v818
    %v861 = vpack.c.b16 %v825, %v822
    %v862 = vpack.c.b16 %v826, %v823
    %v863 = vpack.c.b16 %v827, %v824
    %v864 = vpack.c.b16 %v831, %v828
    %v865 = vpack.c.b16 %v832, %v829
    %v866 = vpack.c.b16 %v833, %v830
    %v867 = vpack.c.b16 %v837, %v834
    %v868 = vpack.c.b16 %v838, %v835
    %v869 = vpack.c.b16 %v839, %v836
    %v870 = vpack.c.b16 %v843, %v840
    %v871 = vpack.c.b16 %v844, %v841
    %v872 = vpack.c.b16 %v845, %v842
    %v873 = vpack.c.b16 %v849, %v846
    %v874 = vpack.c.b16 %v850, %v847
    %v875 = vpack.c.b16 %v851, %v848
    %900 = vmatpush.bf16.msra.mxu0 %v873
    %901 = vmatpush.bf16.msra.mxu0 %v870
    %902 = vmatpush.bf16.msra.mxu0 %v867
    %903 = vmatpush.bf16.msra.mxu0 %v864
    %904 = vmatpush.bf16.msra.mxu0 %v861
    %905 = vmatpush.bf16.msra.mxu0 %v858
    %906 = vmatpush.bf16.msra.mxu0 %v855
    %907 = vmatpush.bf16.msra.mxu0 %v852
    %908 = vmatmul.bf16.gmra.mxu0 %v732
    %v909 = vpop.f32.mrf.mxu0
    %v910 = vadd.f32 0.0, %v909
    %v911 = vpop.f32.mrf.mxu0
    %912 = vdwg.mxu0
    %913 = vmatpush.bf16.msra.mxu0 %v874
    %914 = vmatpush.bf16.msra.mxu0 %v871
    %915 = vmatpush.bf16.msra.mxu0 %v868
    %916 = vmatpush.bf16.msra.mxu0 %v865
    %917 = vmatpush.bf16.msra.mxu0 %v862
    %918 = vmatpush.bf16.msra.mxu0 %v859
    %919 = vmatpush.bf16.msra.mxu0 %v856
    %920 = vmatpush.bf16.msra.mxu0 %v853
    %921 = vmatmul.bf16.gmra.mxu0 %v732
    %v922 = vpop.f32.mrf.mxu0
    %v923 = vadd.f32 0.0, %v922
    %v924 = vpop.f32.mrf.mxu0
    %925 = vdwg.mxu0
    %926 = vmatpush.bf16.msra.mxu0 %v875
    %927 = vmatpush.bf16.msra.mxu0 %v872
    %928 = vmatpush.bf16.msra.mxu0 %v869
    %929 = vmatpush.bf16.msra.mxu0 %v866
    %930 = vmatpush.bf16.msra.mxu0 %v863
    %931 = vmatpush.bf16.msra.mxu0 %v860
    %932 = vmatpush.bf16.msra.mxu0 %v857
    %933 = vmatpush.bf16.msra.mxu0 %v854
    %934 = vmatmul.bf16.gmra.mxu0 %v732
    %v935 = vpop.f32.mrf.mxu0
    %v936 = vadd.f32 0.0, %v935
    %v937 = vpop.f32.mrf.mxu0
    %938 = vdwg.mxu0
    %v939 = vadd.f32 %v737, %v910
    %v940 = vxor.u32 %v939, 2147483648
    %v941 = vmul.f32 %v940, 1.442695
    %v942 = vpow.pop %v941
    %v943 = vadd.f32 %v942, 1.0
    %v944 = vrcp.pop %v943
    %v945 = vmul.f32 %v943, %v944
    %v946 = vsub.f32 1.0, %v945
    %v947 = vmul.f32 %v944, %v946
    %v948 = vadd.f32 %v944, %v947
    %vm949 = vweird.f32 %v943
    %vm950 = vweird.f32 %v944
    %vm951 = vmor %vm949, %vm950
    %v952 = vsel %vm951, %v944, %v948
    %v953 = vand.u32 2147483647, %v943
    %vm954 = vcmp.eq.f32.partialorder %v953, 8.507059e+37
    %v955 = vand.u32 %v943, 2147483648
    %v956 = vor.u32 1.1754944e-38, %v955
    %v957 = vsel %vm954, %v956, %v952
    %v958 = vmul.f32 1.0, %v957
    %v959 = vadd.f32 %v738, %v923
    %v960 = vxor.u32 %v959, 2147483648
    %v961 = vmul.f32 %v960, 1.442695
    %v962 = vpow.pop %v961
    %v963 = vadd.f32 %v962, 1.0
    %v964 = vrcp.pop %v963
    %v965 = vmul.f32 %v963, %v964
    %v966 = vsub.f32 1.0, %v965
    %v967 = vmul.f32 %v964, %v966
    %v968 = vadd.f32 %v964, %v967
    %vm969 = vweird.f32 %v963
    %vm970 = vweird.f32 %v964
    %vm971 = vmor %vm969, %vm970
    %v972 = vsel %vm971, %v964, %v968
    %v973 = vand.u32 2147483647, %v963
    %vm974 = vcmp.eq.f32.partialorder %v973, 8.507059e+37
    %v975 = vand.u32 %v963, 2147483648
    %v976 = vor.u32 1.1754944e-38, %v975
    %v977 = vsel %vm974, %v976, %v972
    %v978 = vmul.f32 1.0, %v977
    %v979 = vld [vmem:[%s6] sm:$0x1]
    %v981 = vperm.slane %v979, 0
    %v983 = vadd.f32 %v936, %v981
    %v984 = vmul.f32 %v958, %v983
    %v985 = vadd.f32 %v739, %v984
    %v986 = vtanh.pop %v985
    %v987 = vsub.f32 1.0, %v978
    %v988 = vmul.f32 %v987, %v986
    %v989 = vmul.f32 %v978, %v731
    %v990 = vadd.f32 %v988, %v989
    %s991 = sadd.s32 %s146, 1
    %v992 = vstv %s991
    %vm993 = vcmp.lt.s32.totalorder %v992, %v145
    %v994 = vsel %vm993, 1, 0
    %995 = vset.pattern.permute.xlu0 0
    %996 = vperm.xlu0 %995, %v994
    %v997 = vpop.permute.xlu0 %996
    %vm998 = vcmp.eq.s32.totalorder %v997, 1
    %v999 = vsel %vm998, %v990, %v731
    %v1000 = vpack.c.bf16 %v999, %v999
    %s1001 = scalar_lea.vmem [#allocation3], 4
    %1002 = vst [vmem:[%s1001] sm:$0xf] %v1000
    %s1003 = scalar_lea.vmem [#allocation2], 24
    %v1004 = vld [vmem:[%s1003] sm:$0xff]
    %v1005 = vld [vmem:[%s1003 + $0x8] sm:$0xf]
    %v1006 = vunpack.c.l.bf16 %v1004
    %v1007 = vunpack.c.h.bf16 %v1004
    %v1008 = vunpack.c.l.bf16 %v1005
    %v1009 = vld [vmem:[#allocation10] sm:$0xff]
    %v1010 = vld [vmem:[#allocation10 + $0x8] sm:$0xf]
    %v1011 = vld [vmem:[#allocation10 + $0xc] sm:$0xff]
    %v1012 = vld [vmem:[#allocation10 + $0x14] sm:$0xf]
    %v1013 = vld [vmem:[#allocation10 + $0x18] sm:$0xff]
    %v1014 = vld [vmem:[#allocation10 + $0x20] sm:$0xf]
    %v1015 = vld [vmem:[#allocation10 + $0x24] sm:$0xff]
    %v1016 = vld [vmem:[#allocation10 + $0x2c] sm:$0xf]
    %v1017 = vld [vmem:[#allocation10 + $0x30] sm:$0xff]
    %v1018 = vld [vmem:[#allocation10 + $0x38] sm:$0xf]
    %v1019 = vld [vmem:[#allocation10 + $0x3c] sm:$0xff]
    %v1020 = vld [vmem:[#allocation10 + $0x44] sm:$0xf]
    %v1021 = vld [vmem:[#allocation10 + $0x48] sm:$0xff]
    %v1022 = vld [vmem:[#allocation10 + $0x50] sm:$0xf]
    %v1023 = vld [vmem:[#allocation10 + $0x54] sm:$0xff]
    %v1024 = vld [vmem:[#allocation10 + $0x5c] sm:$0xf]
    %v1025 = vld [vmem:[#allocation10 + $0x60] sm:$0xff]
    %v1026 = vld [vmem:[#allocation10 + $0x68] sm:$0xf]
    %v1027 = vld [vmem:[#allocation10 + $0x6c] sm:$0xff]
    %v1028 = vld [vmem:[#allocation10 + $0x74] sm:$0xf]
    %v1029 = vld [vmem:[#allocation10 + $0x78] sm:$0xff]
    %v1030 = vld [vmem:[#allocation10 + $0x80] sm:$0xf]
    %v1031 = vld [vmem:[#allocation10 + $0x84] sm:$0xff]
    %v1032 = vld [vmem:[#allocation10 + $0x8c] sm:$0xf]
    %v1033 = vld [vmem:[#allocation10 + $0x90] sm:$0xff]
    %v1034 = vld [vmem:[#allocation10 + $0x98] sm:$0xf]
    %v1035 = vld [vmem:[#allocation10 + $0x9c] sm:$0xff]
    %v1036 = vld [vmem:[#allocation10 + $0xa4] sm:$0xf]
    %v1037 = vld [vmem:[#allocation10 + $0xa8] sm:$0xff]
    %v1038 = vld [vmem:[#allocation10 + $0xb0] sm:$0xf]
    %v1039 = vld [vmem:[#allocation10 + $0xb4] sm:$0xff]
    %v1040 = vld [vmem:[#allocation10 + $0xbc] sm:$0xf]
    %v1073 = vunpack.c.l.b16 %v1009
    %v1074 = vunpack.c.h.b16 %v1009
    %v1075 = vunpack.c.l.b16 %v1010
    %v1076 = vunpack.c.l.b16 %v1011
    %v1077 = vunpack.c.h.b16 %v1011
    %v1078 = vunpack.c.l.b16 %v1012
    %v1079 = vunpack.c.l.b16 %v1013
    %v1080 = vunpack.c.h.b16 %v1013
    %v1081 = vunpack.c.l.b16 %v1014
    %v1082 = vunpack.c.l.b16 %v1015
    %v1083 = vunpack.c.h.b16 %v1015
    %v1084 = vunpack.c.l.b16 %v1016
    %v1085 = vunpack.c.l.b16 %v1017
    %v1086 = vunpack.c.h.b16 %v1017
    %v1087 = vunpack.c.l.b16 %v1018
    %v1088 = vunpack.c.l.b16 %v1019
    %v1089 = vunpack.c.h.b16 %v1019
    %v1090 = vunpack.c.l.b16 %v1020
    %v1091 = vunpack.c.l.b16 %v1021
    %v1092 = vunpack.c.h.b16 %v1021
    %v1093 = vunpack.c.l.b16 %v1022
    %v1094 = vunpack.c.l.b16 %v1023
    %v1095 = vunpack.c.h.b16 %v1023
    %v1096 = vunpack.c.l.b16 %v1024
    %v1097 = vunpack.c.l.b16 %v1025
    %v1098 = vunpack.c.h.b16 %v1025
    %v1099 = vunpack.c.l.b16 %v1026
    %v1100 = vunpack.c.l.b16 %v1027
    %v1101 = vunpack.c.h.b16 %v1027
    %v1102 = vunpack.c.l.b16 %v1028
    %v1103 = vunpack.c.l.b16 %v1029
    %v1104 = vunpack.c.h.b16 %v1029
    %v1105 = vunpack.c.l.b16 %v1030
    %v1106 = vunpack.c.l.b16 %v1031
    %v1107 = vunpack.c.h.b16 %v1031
    %v1108 = vunpack.c.l.b16 %v1032
    %v1109 = vunpack.c.l.b16 %v1033
    %v1110 = vunpack.c.h.b16 %v1033
    %v1111 = vunpack.c.l.b16 %v1034
    %v1112 = vunpack.c.l.b16 %v1035
    %v1113 = vunpack.c.h.b16 %v1035
    %v1114 = vunpack.c.l.b16 %v1036
    %v1115 = vunpack.c.l.b16 %v1037
    %v1116 = vunpack.c.h.b16 %v1037
    %v1117 = vunpack.c.l.b16 %v1038
    %v1118 = vunpack.c.l.b16 %v1039
    %v1119 = vunpack.c.h.b16 %v1039
    %v1120 = vunpack.c.l.b16 %v1040
    %v1121 = vpack.c.b16 %v1076, %v1073
    %v1122 = vpack.c.b16 %v1077, %v1074
    %v1123 = vpack.c.b16 %v1078, %v1075
    %v1124 = vpack.c.b16 %v1082, %v1079
    %v1125 = vpack.c.b16 %v1083, %v1080
    %v1126 = vpack.c.b16 %v1084, %v1081
    %v1127 = vpack.c.b16 %v1088, %v1085
    %v1128 = vpack.c.b16 %v1089, %v1086
    %v1129 = vpack.c.b16 %v1090, %v1087
    %v1130 = vpack.c.b16 %v1094, %v1091
    %v1131 = vpack.c.b16 %v1095, %v1092
    %v1132 = vpack.c.b16 %v1096, %v1093
    %v1133 = vpack.c.b16 %v1100, %v1097
    %v1134 = vpack.c.b16 %v1101, %v1098
    %v1135 = vpack.c.b16 %v1102, %v1099
    %v1136 = vpack.c.b16 %v1106, %v1103
    %v1137 = vpack.c.b16 %v1107, %v1104
    %v1138 = vpack.c.b16 %v1108, %v1105
    %v1139 = vpack.c.b16 %v1112, %v1109
    %v1140 = vpack.c.b16 %v1113, %v1110
    %v1141 = vpack.c.b16 %v1114, %v1111
    %v1142 = vpack.c.b16 %v1118, %v1115
    %v1143 = vpack.c.b16 %v1119, %v1116
    %v1144 = vpack.c.b16 %v1120, %v1117
    %1169 = vmatpush.bf16.msra.mxu0 %v1142
    %1170 = vmatpush.bf16.msra.mxu0 %v1139
    %1171 = vmatpush.bf16.msra.mxu0 %v1136
    %1172 = vmatpush.bf16.msra.mxu0 %v1133
    %1173 = vmatpush.bf16.msra.mxu0 %v1130
    %1174 = vmatpush.bf16.msra.mxu0 %v1127
    %1175 = vmatpush.bf16.msra.mxu0 %v1124
    %1176 = vmatpush.bf16.msra.mxu0 %v1121
    %1177 = vmatmul.bf16.gmra.mxu0 %v1000
    %v1178 = vpop.f32.mrf.mxu0
    %v1179 = vadd.f32 0.0, %v1178
    %v1180 = vpop.f32.mrf.mxu0
    %1181 = vdwg.mxu0
    %1182 = vmatpush.bf16.msra.mxu0 %v1143
    %1183 = vmatpush.bf16.msra.mxu0 %v1140
    %1184 = vmatpush.bf16.msra.mxu0 %v1137
    %1185 = vmatpush.bf16.msra.mxu0 %v1134
    %1186 = vmatpush.bf16.msra.mxu0 %v1131
    %1187 = vmatpush.bf16.msra.mxu0 %v1128
    %1188 = vmatpush.bf16.msra.mxu0 %v1125
    %1189 = vmatpush.bf16.msra.mxu0 %v1122
    %1190 = vmatmul.bf16.gmra.mxu0 %v1000
    %v1191 = vpop.f32.mrf.mxu0
    %v1192 = vadd.f32 0.0, %v1191
    %v1193 = vpop.f32.mrf.mxu0
    %1194 = vdwg.mxu0
    %1195 = vmatpush.bf16.msra.mxu0 %v1144
    %1196 = vmatpush.bf16.msra.mxu0 %v1141
    %1197 = vmatpush.bf16.msra.mxu0 %v1138
    %1198 = vmatpush.bf16.msra.mxu0 %v1135
    %1199 = vmatpush.bf16.msra.mxu0 %v1132
    %1200 = vmatpush.bf16.msra.mxu0 %v1129
    %1201 = vmatpush.bf16.msra.mxu0 %v1126
    %1202 = vmatpush.bf16.msra.mxu0 %v1123
    %1203 = vmatmul.bf16.gmra.mxu0 %v1000
    %v1204 = vpop.f32.mrf.mxu0
    %v1205 = vadd.f32 0.0, %v1204
    %v1206 = vpop.f32.mrf.mxu0
    %1207 = vdwg.mxu0
    %v1208 = vadd.f32 %v1006, %v1179
    %v1209 = vxor.u32 %v1208, 2147483648
    %v1210 = vmul.f32 %v1209, 1.442695
    %v1211 = vpow.pop %v1210
    %v1212 = vadd.f32 %v1211, 1.0
    %v1213 = vrcp.pop %v1212
    %v1214 = vmul.f32 %v1212, %v1213
    %v1215 = vsub.f32 1.0, %v1214
    %v1216 = vmul.f32 %v1213, %v1215
    %v1217 = vadd.f32 %v1213, %v1216
    %vm1218 = vweird.f32 %v1212
    %vm1219 = vweird.f32 %v1213
    %vm1220 = vmor %vm1218, %vm1219
    %v1221 = vsel %vm1220, %v1213, %v1217
    %v1222 = vand.u32 2147483647, %v1212
    %vm1223 = vcmp.eq.f32.partialorder %v1222, 8.507059e+37
    %v1224 = vand.u32 %v1212, 2147483648
    %v1225 = vor.u32 1.1754944e-38, %v1224
    %v1226 = vsel %vm1223, %v1225, %v1221
    %v1227 = vmul.f32 1.0, %v1226
    %v1228 = vadd.f32 %v1007, %v1192
    %v1229 = vxor.u32 %v1228, 2147483648
    %v1230 = vmul.f32 %v1229, 1.442695
    %v1231 = vpow.pop %v1230
    %v1232 = vadd.f32 %v1231, 1.0
    %v1233 = vrcp.pop %v1232
    %v1234 = vmul.f32 %v1232, %v1233
    %v1235 = vsub.f32 1.0, %v1234
    %v1236 = vmul.f32 %v1233, %v1235
    %v1237 = vadd.f32 %v1233, %v1236
    %vm1238 = vweird.f32 %v1232
    %vm1239 = vweird.f32 %v1233
    %vm1240 = vmor %vm1238, %vm1239
    %v1241 = vsel %vm1240, %v1233, %v1237
    %v1242 = vand.u32 2147483647, %v1232
    %vm1243 = vcmp.eq.f32.partialorder %v1242, 8.507059e+37
    %v1244 = vand.u32 %v1232, 2147483648
    %v1245 = vor.u32 1.1754944e-38, %v1244
    %v1246 = vsel %vm1243, %v1245, %v1241
    %v1247 = vmul.f32 1.0, %v1246
    %v1248 = vld [vmem:[%s6] sm:$0x1]
    %v1250 = vperm.slane %v1248, 0
    %v1252 = vadd.f32 %v1205, %v1250
    %v1253 = vmul.f32 %v1227, %v1252
    %v1254 = vadd.f32 %v1008, %v1253
    %v1255 = vtanh.pop %v1254
    %v1256 = vsub.f32 1.0, %v1247
    %v1257 = vmul.f32 %v1256, %v1255
    %v1258 = vmul.f32 %v1247, %v999
    %v1259 = vadd.f32 %v1257, %v1258
    %s1260 = sadd.s32 %s146, 2
    %v1261 = vstv %s1260
    %vm1262 = vcmp.lt.s32.totalorder %v1261, %v145
    %v1263 = vsel %vm1262, 1, 0
    %1264 = vset.pattern.permute.xlu0 0
    %1265 = vperm.xlu0 %1264, %v1263
    %v1266 = vpop.permute.xlu0 %1265
    %vm1267 = vcmp.eq.s32.totalorder %v1266, 1
    %v1268 = vsel %vm1267, %v1259, %v999
    %v1269 = vpack.c.bf16 %v1268, %v1268
    %s1270 = scalar_lea.vmem [#allocation3], 8
    %1271 = vst [vmem:[%s1270] sm:$0xf] %v1269
    %s1272 = scalar_lea.vmem [#allocation2], 36
    %v1273 = vld [vmem:[%s1272] sm:$0xff]
    %v1274 = vld [vmem:[%s1272 + $0x8] sm:$0xf]
    %v1275 = vunpack.c.l.bf16 %v1273
    %v1276 = vunpack.c.h.bf16 %v1273
    %v1277 = vunpack.c.l.bf16 %v1274
    %v1278 = vld [vmem:[#allocation10] sm:$0xff]
    %v1279 = vld [vmem:[#allocation10 + $0x8] sm:$0xf]
    %v1280 = vld [vmem:[#allocation10 + $0xc] sm:$0xff]
    %v1281 = vld [vmem:[#allocation10 + $0x14] sm:$0xf]
    %v1282 = vld [vmem:[#allocation10 + $0x18] sm:$0xff]
    %v1283 = vld [vmem:[#allocation10 + $0x20] sm:$0xf]
    %v1284 = vld [vmem:[#allocation10 + $0x24] sm:$0xff]
    %v1285 = vld [vmem:[#allocation10 + $0x2c] sm:$0xf]
    %v1286 = vld [vmem:[#allocation10 + $0x30] sm:$0xff]
    %v1287 = vld [vmem:[#allocation10 + $0x38] sm:$0xf]
    %v1288 = vld [vmem:[#allocation10 + $0x3c] sm:$0xff]
    %v1289 = vld [vmem:[#allocation10 + $0x44] sm:$0xf]
    %v1290 = vld [vmem:[#allocation10 + $0x48] sm:$0xff]
    %v1291 = vld [vmem:[#allocation10 + $0x50] sm:$0xf]
    %v1292 = vld [vmem:[#allocation10 + $0x54] sm:$0xff]
    %v1293 = vld [vmem:[#allocation10 + $0x5c] sm:$0xf]
    %v1294 = vld [vmem:[#allocation10 + $0x60] sm:$0xff]
    %v1295 = vld [vmem:[#allocation10 + $0x68] sm:$0xf]
    %v1296 = vld [vmem:[#allocation10 + $0x6c] sm:$0xff]
    %v1297 = vld [vmem:[#allocation10 + $0x74] sm:$0xf]
    %v1298 = vld [vmem:[#allocation10 + $0x78] sm:$0xff]
    %v1299 = vld [vmem:[#allocation10 + $0x80] sm:$0xf]
    %v1300 = vld [vmem:[#allocation10 + $0x84] sm:$0xff]
    %v1301 = vld [vmem:[#allocation10 + $0x8c] sm:$0xf]
    %v1302 = vld [vmem:[#allocation10 + $0x90] sm:$0xff]
    %v1303 = vld [vmem:[#allocation10 + $0x98] sm:$0xf]
    %v1304 = vld [vmem:[#allocation10 + $0x9c] sm:$0xff]
    %v1305 = vld [vmem:[#allocation10 + $0xa4] sm:$0xf]
    %v1306 = vld [vmem:[#allocation10 + $0xa8] sm:$0xff]
    %v1307 = vld [vmem:[#allocation10 + $0xb0] sm:$0xf]
    %v1308 = vld [vmem:[#allocation10 + $0xb4] sm:$0xff]
    %v1309 = vld [vmem:[#allocation10 + $0xbc] sm:$0xf]
    %v1342 = vunpack.c.l.b16 %v1278
    %v1343 = vunpack.c.h.b16 %v1278
    %v1344 = vunpack.c.l.b16 %v1279
    %v1345 = vunpack.c.l.b16 %v1280
    %v1346 = vunpack.c.h.b16 %v1280
    %v1347 = vunpack.c.l.b16 %v1281
    %v1348 = vunpack.c.l.b16 %v1282
    %v1349 = vunpack.c.h.b16 %v1282
    %v1350 = vunpack.c.l.b16 %v1283
    %v1351 = vunpack.c.l.b16 %v1284
    %v1352 = vunpack.c.h.b16 %v1284
    %v1353 = vunpack.c.l.b16 %v1285
    %v1354 = vunpack.c.l.b16 %v1286
    %v1355 = vunpack.c.h.b16 %v1286
    %v1356 = vunpack.c.l.b16 %v1287
    %v1357 = vunpack.c.l.b16 %v1288
    %v1358 = vunpack.c.h.b16 %v1288
    %v1359 = vunpack.c.l.b16 %v1289
    %v1360 = vunpack.c.l.b16 %v1290
    %v1361 = vunpack.c.h.b16 %v1290
    %v1362 = vunpack.c.l.b16 %v1291
    %v1363 = vunpack.c.l.b16 %v1292
    %v1364 = vunpack.c.h.b16 %v1292
    %v1365 = vunpack.c.l.b16 %v1293
    %v1366 = vunpack.c.l.b16 %v1294
    %v1367 = vunpack.c.h.b16 %v1294
    %v1368 = vunpack.c.l.b16 %v1295
    %v1369 = vunpack.c.l.b16 %v1296
    %v1370 = vunpack.c.h.b16 %v1296
    %v1371 = vunpack.c.l.b16 %v1297
    %v1372 = vunpack.c.l.b16 %v1298
    %v1373 = vunpack.c.h.b16 %v1298
    %v1374 = vunpack.c.l.b16 %v1299
    %v1375 = vunpack.c.l.b16 %v1300
    %v1376 = vunpack.c.h.b16 %v1300
    %v1377 = vunpack.c.l.b16 %v1301
    %v1378 = vunpack.c.l.b16 %v1302
    %v1379 = vunpack.c.h.b16 %v1302
    %v1380 = vunpack.c.l.b16 %v1303
    %v1381 = vunpack.c.l.b16 %v1304
    %v1382 = vunpack.c.h.b16 %v1304
    %v1383 = vunpack.c.l.b16 %v1305
    %v1384 = vunpack.c.l.b16 %v1306
    %v1385 = vunpack.c.h.b16 %v1306
    %v1386 = vunpack.c.l.b16 %v1307
    %v1387 = vunpack.c.l.b16 %v1308
    %v1388 = vunpack.c.h.b16 %v1308
    %v1389 = vunpack.c.l.b16 %v1309
    %v1390 = vpack.c.b16 %v1345, %v1342
    %v1391 = vpack.c.b16 %v1346, %v1343
    %v1392 = vpack.c.b16 %v1347, %v1344
    %v1393 = vpack.c.b16 %v1351, %v1348
    %v1394 = vpack.c.b16 %v1352, %v1349
    %v1395 = vpack.c.b16 %v1353, %v1350
    %v1396 = vpack.c.b16 %v1357, %v1354
    %v1397 = vpack.c.b16 %v1358, %v1355
    %v1398 = vpack.c.b16 %v1359, %v1356
    %v1399 = vpack.c.b16 %v1363, %v1360
    %v1400 = vpack.c.b16 %v1364, %v1361
    %v1401 = vpack.c.b16 %v1365, %v1362
    %v1402 = vpack.c.b16 %v1369, %v1366
    %v1403 = vpack.c.b16 %v1370, %v1367
    %v1404 = vpack.c.b16 %v1371, %v1368
    %v1405 = vpack.c.b16 %v1375, %v1372
    %v1406 = vpack.c.b16 %v1376, %v1373
    %v1407 = vpack.c.b16 %v1377, %v1374
    %v1408 = vpack.c.b16 %v1381, %v1378
    %v1409 = vpack.c.b16 %v1382, %v1379
    %v1410 = vpack.c.b16 %v1383, %v1380
    %v1411 = vpack.c.b16 %v1387, %v1384
    %v1412 = vpack.c.b16 %v1388, %v1385
    %v1413 = vpack.c.b16 %v1389, %v1386
    %1438 = vmatpush.bf16.msra.mxu0 %v1411
    %1439 = vmatpush.bf16.msra.mxu0 %v1408
    %1440 = vmatpush.bf16.msra.mxu0 %v1405
    %1441 = vmatpush.bf16.msra.mxu0 %v1402
    %1442 = vmatpush.bf16.msra.mxu0 %v1399
    %1443 = vmatpush.bf16.msra.mxu0 %v1396
    %1444 = vmatpush.bf16.msra.mxu0 %v1393
    %1445 = vmatpush.bf16.msra.mxu0 %v1390
    %1446 = vmatmul.bf16.gmra.mxu0 %v1269
    %v1447 = vpop.f32.mrf.mxu0
    %v1448 = vadd.f32 0.0, %v1447
    %v1449 = vpop.f32.mrf.mxu0
    %1450 = vdwg.mxu0
    %1451 = vmatpush.bf16.msra.mxu0 %v1412
    %1452 = vmatpush.bf16.msra.mxu0 %v1409
    %1453 = vmatpush.bf16.msra.mxu0 %v1406
    %1454 = vmatpush.bf16.msra.mxu0 %v1403
    %1455 = vmatpush.bf16.msra.mxu0 %v1400
    %1456 = vmatpush.bf16.msra.mxu0 %v1397
    %1457 = vmatpush.bf16.msra.mxu0 %v1394
    %1458 = vmatpush.bf16.msra.mxu0 %v1391
    %1459 = vmatmul.bf16.gmra.mxu0 %v1269
    %v1460 = vpop.f32.mrf.mxu0
    %v1461 = vadd.f32 0.0, %v1460
    %v1462 = vpop.f32.mrf.mxu0
    %1463 = vdwg.mxu0
    %1464 = vmatpush.bf16.msra.mxu0 %v1413
    %1465 = vmatpush.bf16.msra.mxu0 %v1410
    %1466 = vmatpush.bf16.msra.mxu0 %v1407
    %1467 = vmatpush.bf16.msra.mxu0 %v1404
    %1468 = vmatpush.bf16.msra.mxu0 %v1401
    %1469 = vmatpush.bf16.msra.mxu0 %v1398
    %1470 = vmatpush.bf16.msra.mxu0 %v1395
    %1471 = vmatpush.bf16.msra.mxu0 %v1392
    %1472 = vmatmul.bf16.gmra.mxu0 %v1269
    %v1473 = vpop.f32.mrf.mxu0
    %v1474 = vadd.f32 0.0, %v1473
    %v1475 = vpop.f32.mrf.mxu0
    %1476 = vdwg.mxu0
    %v1477 = vadd.f32 %v1275, %v1448
    %v1478 = vxor.u32 %v1477, 2147483648
    %v1479 = vmul.f32 %v1478, 1.442695
    %v1480 = vpow.pop %v1479
    %v1481 = vadd.f32 %v1480, 1.0
    %v1482 = vrcp.pop %v1481
    %v1483 = vmul.f32 %v1481, %v1482
    %v1484 = vsub.f32 1.0, %v1483
    %v1485 = vmul.f32 %v1482, %v1484
    %v1486 = vadd.f32 %v1482, %v1485
    %vm1487 = vweird.f32 %v1481
    %vm1488 = vweird.f32 %v1482
    %vm1489 = vmor %vm1487, %vm1488
    %v1490 = vsel %vm1489, %v1482, %v1486
    %v1491 = vand.u32 2147483647, %v1481
    %vm1492 = vcmp.eq.f32.partialorder %v1491, 8.507059e+37
    %v1493 = vand.u32 %v1481, 2147483648
    %v1494 = vor.u32 1.1754944e-38, %v1493
    %v1495 = vsel %vm1492, %v1494, %v1490
    %v1496 = vmul.f32 1.0, %v1495
    %v1497 = vadd.f32 %v1276, %v1461
    %v1498 = vxor.u32 %v1497, 2147483648
    %v1499 = vmul.f32 %v1498, 1.442695
    %v1500 = vpow.pop %v1499
    %v1501 = vadd.f32 %v1500, 1.0
    %v1502 = vrcp.pop %v1501
    %v1503 = vmul.f32 %v1501, %v1502
    %v1504 = vsub.f32 1.0, %v1503
    %v1505 = vmul.f32 %v1502, %v1504
    %v1506 = vadd.f32 %v1502, %v1505
    %vm1507 = vweird.f32 %v1501
    %vm1508 = vweird.f32 %v1502
    %vm1509 = vmor %vm1507, %vm1508
    %v1510 = vsel %vm1509, %v1502, %v1506
    %v1511 = vand.u32 2147483647, %v1501
    %vm1512 = vcmp.eq.f32.partialorder %v1511, 8.507059e+37
    %v1513 = vand.u32 %v1501, 2147483648
    %v1514 = vor.u32 1.1754944e-38, %v1513
    %v1515 = vsel %vm1512, %v1514, %v1510
    %v1516 = vmul.f32 1.0, %v1515
    %v1517 = vld [vmem:[%s6] sm:$0x1]
    %v1519 = vperm.slane %v1517, 0
    %v1521 = vadd.f32 %v1474, %v1519
    %v1522 = vmul.f32 %v1496, %v1521
    %v1523 = vadd.f32 %v1277, %v1522
    %v1524 = vtanh.pop %v1523
    %v1525 = vsub.f32 1.0, %v1516
    %v1526 = vmul.f32 %v1525, %v1524
    %v1527 = vmul.f32 %v1516, %v1268
    %v1528 = vadd.f32 %v1526, %v1527
    %s1529 = sadd.s32 %s146, 3
    %v1530 = vstv %s1529
    %vm1531 = vcmp.lt.s32.totalorder %v1530, %v145
    %v1532 = vsel %vm1531, 1, 0
    %1533 = vset.pattern.permute.xlu0 0
    %1534 = vperm.xlu0 %1533, %v1532
    %v1535 = vpop.permute.xlu0 %1534
    %vm1536 = vcmp.eq.s32.totalorder %v1535, 1
    %v1537 = vsel %vm1536, %v1528, %v1268
    %v1538 = vpack.c.bf16 %v1537, %v1537
    %s1539 = scalar_lea.vmem [#allocation3], 12
    %1540 = vst [vmem:[%s1539] sm:$0xf] %v1538
    %s1541 = scalar_lea.vmem [#allocation2], 48
    %v1542 = vld [vmem:[%s1541] sm:$0xff]
    %v1543 = vld [vmem:[%s1541 + $0x8] sm:$0xf]
    %v1544 = vunpack.c.l.bf16 %v1542
    %v1545 = vunpack.c.h.bf16 %v1542
    %v1546 = vunpack.c.l.bf16 %v1543
    %v1547 = vld [vmem:[#allocation10] sm:$0xff]
    %v1548 = vld [vmem:[#allocation10 + $0x8] sm:$0xf]
    %v1549 = vld [vmem:[#allocation10 + $0xc] sm:$0xff]
    %v1550 = vld [vmem:[#allocation10 + $0x14] sm:$0xf]
    %v1551 = vld [vmem:[#allocation10 + $0x18] sm:$0xff]
    %v1552 = vld [vmem:[#allocation10 + $0x20] sm:$0xf]
    %v1553 = vld [vmem:[#allocation10 + $0x24] sm:$0xff]
    %v1554 = vld [vmem:[#allocation10 + $0x2c] sm:$0xf]
    %v1555 = vld [vmem:[#allocation10 + $0x30] sm:$0xff]
    %v1556 = vld [vmem:[#allocation10 + $0x38] sm:$0xf]
    %v1557 = vld [vmem:[#allocation10 + $0x3c] sm:$0xff]
    %v1558 = vld [vmem:[#allocation10 + $0x44] sm:$0xf]
    %v1559 = vld [vmem:[#allocation10 + $0x48] sm:$0xff]
    %v1560 = vld [vmem:[#allocation10 + $0x50] sm:$0xf]
    %v1561 = vld [vmem:[#allocation10 + $0x54] sm:$0xff]
    %v1562 = vld [vmem:[#allocation10 + $0x5c] sm:$0xf]
    %v1563 = vld [vmem:[#allocation10 + $0x60] sm:$0xff]
    %v1564 = vld [vmem:[#allocation10 + $0x68] sm:$0xf]
    %v1565 = vld [vmem:[#allocation10 + $0x6c] sm:$0xff]
    %v1566 = vld [vmem:[#allocation10 + $0x74] sm:$0xf]
    %v1567 = vld [vmem:[#allocation10 + $0x78] sm:$0xff]
    %v1568 = vld [vmem:[#allocation10 + $0x80] sm:$0xf]
    %v1569 = vld [vmem:[#allocation10 + $0x84] sm:$0xff]
    %v1570 = vld [vmem:[#allocation10 + $0x8c] sm:$0xf]
    %v1571 = vld [vmem:[#allocation10 + $0x90] sm:$0xff]
    %v1572 = vld [vmem:[#allocation10 + $0x98] sm:$0xf]
    %v1573 = vld [vmem:[#allocation10 + $0x9c] sm:$0xff]
    %v1574 = vld [vmem:[#allocation10 + $0xa4] sm:$0xf]
    %v1575 = vld [vmem:[#allocation10 + $0xa8] sm:$0xff]
    %v1576 = vld [vmem:[#allocation10 + $0xb0] sm:$0xf]
    %v1577 = vld [vmem:[#allocation10 + $0xb4] sm:$0xff]
    %v1578 = vld [vmem:[#allocation10 + $0xbc] sm:$0xf]
    %v1611 = vunpack.c.l.b16 %v1547
    %v1612 = vunpack.c.h.b16 %v1547
    %v1613 = vunpack.c.l.b16 %v1548
    %v1614 = vunpack.c.l.b16 %v1549
    %v1615 = vunpack.c.h.b16 %v1549
    %v1616 = vunpack.c.l.b16 %v1550
    %v1617 = vunpack.c.l.b16 %v1551
    %v1618 = vunpack.c.h.b16 %v1551
    %v1619 = vunpack.c.l.b16 %v1552
    %v1620 = vunpack.c.l.b16 %v1553
    %v1621 = vunpack.c.h.b16 %v1553
    %v1622 = vunpack.c.l.b16 %v1554
    %v1623 = vunpack.c.l.b16 %v1555
    %v1624 = vunpack.c.h.b16 %v1555
    %v1625 = vunpack.c.l.b16 %v1556
    %v1626 = vunpack.c.l.b16 %v1557
    %v1627 = vunpack.c.h.b16 %v1557
    %v1628 = vunpack.c.l.b16 %v1558
    %v1629 = vunpack.c.l.b16 %v1559
    %v1630 = vunpack.c.h.b16 %v1559
    %v1631 = vunpack.c.l.b16 %v1560
    %v1632 = vunpack.c.l.b16 %v1561
    %v1633 = vunpack.c.h.b16 %v1561
    %v1634 = vunpack.c.l.b16 %v1562
    %v1635 = vunpack.c.l.b16 %v1563
    %v1636 = vunpack.c.h.b16 %v1563
    %v1637 = vunpack.c.l.b16 %v1564
    %v1638 = vunpack.c.l.b16 %v1565
    %v1639 = vunpack.c.h.b16 %v1565
    %v1640 = vunpack.c.l.b16 %v1566
    %v1641 = vunpack.c.l.b16 %v1567
    %v1642 = vunpack.c.h.b16 %v1567
    %v1643 = vunpack.c.l.b16 %v1568
    %v1644 = vunpack.c.l.b16 %v1569
    %v1645 = vunpack.c.h.b16 %v1569
    %v1646 = vunpack.c.l.b16 %v1570
    %v1647 = vunpack.c.l.b16 %v1571
    %v1648 = vunpack.c.h.b16 %v1571
    %v1649 = vunpack.c.l.b16 %v1572
    %v1650 = vunpack.c.l.b16 %v1573
    %v1651 = vunpack.c.h.b16 %v1573
    %v1652 = vunpack.c.l.b16 %v1574
    %v1653 = vunpack.c.l.b16 %v1575
    %v1654 = vunpack.c.h.b16 %v1575
    %v1655 = vunpack.c.l.b16 %v1576
    %v1656 = vunpack.c.l.b16 %v1577
    %v1657 = vunpack.c.h.b16 %v1577
    %v1658 = vunpack.c.l.b16 %v1578
    %v1659 = vpack.c.b16 %v1614, %v1611
    %v1660 = vpack.c.b16 %v1615, %v1612
    %v1661 = vpack.c.b16 %v1616, %v1613
    %v1662 = vpack.c.b16 %v1620, %v1617
    %v1663 = vpack.c.b16 %v1621, %v1618
    %v1664 = vpack.c.b16 %v1622, %v1619
    %v1665 = vpack.c.b16 %v1626, %v1623
    %v1666 = vpack.c.b16 %v1627, %v1624
    %v1667 = vpack.c.b16 %v1628, %v1625
    %v1668 = vpack.c.b16 %v1632, %v1629
    %v1669 = vpack.c.b16 %v1633, %v1630
    %v1670 = vpack.c.b16 %v1634, %v1631
    %v1671 = vpack.c.b16 %v1638, %v1635
    %v1672 = vpack.c.b16 %v1639, %v1636
    %v1673 = vpack.c.b16 %v1640, %v1637
    %v1674 = vpack.c.b16 %v1644, %v1641
    %v1675 = vpack.c.b16 %v1645, %v1642
    %v1676 = vpack.c.b16 %v1646, %v1643
    %v1677 = vpack.c.b16 %v1650, %v1647
    %v1678 = vpack.c.b16 %v1651, %v1648
    %v1679 = vpack.c.b16 %v1652, %v1649
    %v1680 = vpack.c.b16 %v1656, %v1653
    %v1681 = vpack.c.b16 %v1657, %v1654
    %v1682 = vpack.c.b16 %v1658, %v1655
    %1707 = vmatpush.bf16.msra.mxu0 %v1680
    %1708 = vmatpush.bf16.msra.mxu0 %v1677
    %1709 = vmatpush.bf16.msra.mxu0 %v1674
    %1710 = vmatpush.bf16.msra.mxu0 %v1671
    %1711 = vmatpush.bf16.msra.mxu0 %v1668
    %1712 = vmatpush.bf16.msra.mxu0 %v1665
    %1713 = vmatpush.bf16.msra.mxu0 %v1662
    %1714 = vmatpush.bf16.msra.mxu0 %v1659
    %1715 = vmatmul.bf16.gmra.mxu0 %v1538
    %v1716 = vpop.f32.mrf.mxu0
    %v1717 = vadd.f32 0.0, %v1716
    %v1718 = vpop.f32.mrf.mxu0
    %1719 = vdwg.mxu0
    %1720 = vmatpush.bf16.msra.mxu0 %v1681
    %1721 = vmatpush.bf16.msra.mxu0 %v1678
    %1722 = vmatpush.bf16.msra.mxu0 %v1675
    %1723 = vmatpush.bf16.msra.mxu0 %v1672
    %1724 = vmatpush.bf16.msra.mxu0 %v1669
    %1725 = vmatpush.bf16.msra.mxu0 %v1666
    %1726 = vmatpush.bf16.msra.mxu0 %v1663
    %1727 = vmatpush.bf16.msra.mxu0 %v1660
    %1728 = vmatmul.bf16.gmra.mxu0 %v1538
    %v1729 = vpop.f32.mrf.mxu0
    %v1730 = vadd.f32 0.0, %v1729
    %v1731 = vpop.f32.mrf.mxu0
    %1732 = vdwg.mxu0
    %1733 = vmatpush.bf16.msra.mxu0 %v1682
    %1734 = vmatpush.bf16.msra.mxu0 %v1679
    %1735 = vmatpush.bf16.msra.mxu0 %v1676
    %1736 = vmatpush.bf16.msra.mxu0 %v1673
    %1737 = vmatpush.bf16.msra.mxu0 %v1670
    %1738 = vmatpush.bf16.msra.mxu0 %v1667
    %1739 = vmatpush.bf16.msra.mxu0 %v1664
    %1740 = vmatpush.bf16.msra.mxu0 %v1661
    %1741 = vmatmul.bf16.gmra.mxu0 %v1538
    %v1742 = vpop.f32.mrf.mxu0
    %v1743 = vadd.f32 0.0, %v1742
    %v1744 = vpop.f32.mrf.mxu0
    %1745 = vdwg.mxu0
    %v1746 = vadd.f32 %v1544, %v1717
    %v1747 = vxor.u32 %v1746, 2147483648
    %v1748 = vmul.f32 %v1747, 1.442695
    %v1749 = vpow.pop %v1748
    %v1750 = vadd.f32 %v1749, 1.0
    %v1751 = vrcp.pop %v1750
    %v1752 = vmul.f32 %v1750, %v1751
    %v1753 = vsub.f32 1.0, %v1752
    %v1754 = vmul.f32 %v1751, %v1753
    %v1755 = vadd.f32 %v1751, %v1754
    %vm1756 = vweird.f32 %v1750
    %vm1757 = vweird.f32 %v1751
    %vm1758 = vmor %vm1756, %vm1757
    %v1759 = vsel %vm1758, %v1751, %v1755
    %v1760 = vand.u32 2147483647, %v1750
    %vm1761 = vcmp.eq.f32.partialorder %v1760, 8.507059e+37
    %v1762 = vand.u32 %v1750, 2147483648
    %v1763 = vor.u32 1.1754944e-38, %v1762
    %v1764 = vsel %vm1761, %v1763, %v1759
    %v1765 = vmul.f32 1.0, %v1764
    %v1766 = vadd.f32 %v1545, %v1730
    %v1767 = vxor.u32 %v1766, 2147483648
    %v1768 = vmul.f32 %v1767, 1.442695
    %v1769 = vpow.pop %v1768
    %v1770 = vadd.f32 %v1769, 1.0
    %v1771 = vrcp.pop %v1770
    %v1772 = vmul.f32 %v1770, %v1771
    %v1773 = vsub.f32 1.0, %v1772
    %v1774 = vmul.f32 %v1771, %v1773
    %v1775 = vadd.f32 %v1771, %v1774
    %vm1776 = vweird.f32 %v1770
    %vm1777 = vweird.f32 %v1771
    %vm1778 = vmor %vm1776, %vm1777
    %v1779 = vsel %vm1778, %v1771, %v1775
    %v1780 = vand.u32 2147483647, %v1770
    %vm1781 = vcmp.eq.f32.partialorder %v1780, 8.507059e+37
    %v1782 = vand.u32 %v1770, 2147483648
    %v1783 = vor.u32 1.1754944e-38, %v1782
    %v1784 = vsel %vm1781, %v1783, %v1779
    %v1785 = vmul.f32 1.0, %v1784
    %v1786 = vld [vmem:[%s6] sm:$0x1]
    %v1788 = vperm.slane %v1786, 0
    %v1790 = vadd.f32 %v1743, %v1788
    %v1791 = vmul.f32 %v1765, %v1790
    %v1792 = vadd.f32 %v1546, %v1791
    %v1793 = vtanh.pop %v1792
    %v1794 = vsub.f32 1.0, %v1785
    %v1795 = vmul.f32 %v1794, %v1793
    %v1796 = vmul.f32 %v1785, %v1537
    %v1797 = vadd.f32 %v1795, %v1796
    %s1798 = sadd.s32 %s146, 4
    %v1799 = vstv %s1798
    %vm1800 = vcmp.lt.s32.totalorder %v1799, %v145
    %v1801 = vsel %vm1800, 1, 0
    %1802 = vset.pattern.permute.xlu0 0
    %1803 = vperm.xlu0 %1802, %v1801
    %v1804 = vpop.permute.xlu0 %1803
    %vm1805 = vcmp.eq.s32.totalorder %v1804, 1
    %v1806 = vsel %vm1805, %v1797, %v1537
    %v1807 = vpack.c.bf16 %v1806, %v1806
    %s1808 = scalar_lea.vmem [#allocation3], 16
    %1809 = vst [vmem:[%s1808] sm:$0xf] %v1807
    %s1810 = scalar_lea.vmem [#allocation2], 60
    %v1811 = vld [vmem:[%s1810] sm:$0xff]
    %v1812 = vld [vmem:[%s1810 + $0x8] sm:$0xf]
    %v1813 = vunpack.c.l.bf16 %v1811
    %v1814 = vunpack.c.h.bf16 %v1811
    %v1815 = vunpack.c.l.bf16 %v1812
    %v1816 = vld [vmem:[#allocation10] sm:$0xff]
    %v1817 = vld [vmem:[#allocation10 + $0x8] sm:$0xf]
    %v1818 = vld [vmem:[#allocation10 + $0xc] sm:$0xff]
    %v1819 = vld [vmem:[#allocation10 + $0x14] sm:$0xf]
    %v1820 = vld [vmem:[#allocation10 + $0x18] sm:$0xff]
    %v1821 = vld [vmem:[#allocation10 + $0x20] sm:$0xf]
    %v1822 = vld [vmem:[#allocation10 + $0x24] sm:$0xff]
    %v1823 = vld [vmem:[#allocation10 + $0x2c] sm:$0xf]
    %v1824 = vld [vmem:[#allocation10 + $0x30] sm:$0xff]
    %v1825 = vld [vmem:[#allocation10 + $0x38] sm:$0xf]
    %v1826 = vld [vmem:[#allocation10 + $0x3c] sm:$0xff]
    %v1827 = vld [vmem:[#allocation10 + $0x44] sm:$0xf]
    %v1828 = vld [vmem:[#allocation10 + $0x48] sm:$0xff]
    %v1829 = vld [vmem:[#allocation10 + $0x50] sm:$0xf]
    %v1830 = vld [vmem:[#allocation10 + $0x54] sm:$0xff]
    %v1831 = vld [vmem:[#allocation10 + $0x5c] sm:$0xf]
    %v1832 = vld [vmem:[#allocation10 + $0x60] sm:$0xff]
    %v1833 = vld [vmem:[#allocation10 + $0x68] sm:$0xf]
    %v1834 = vld [vmem:[#allocation10 + $0x6c] sm:$0xff]
    %v1835 = vld [vmem:[#allocation10 + $0x74] sm:$0xf]
    %v1836 = vld [vmem:[#allocation10 + $0x78] sm:$0xff]
    %v1837 = vld [vmem:[#allocation10 + $0x80] sm:$0xf]
    %v1838 = vld [vmem:[#allocation10 + $0x84] sm:$0xff]
    %v1839 = vld [vmem:[#allocation10 + $0x8c] sm:$0xf]
    %v1840 = vld [vmem:[#allocation10 + $0x90] sm:$0xff]
    %v1841 = vld [vmem:[#allocation10 + $0x98] sm:$0xf]
    %v1842 = vld [vmem:[#allocation10 + $0x9c] sm:$0xff]
    %v1843 = vld [vmem:[#allocation10 + $0xa4] sm:$0xf]
    %v1844 = vld [vmem:[#allocation10 + $0xa8] sm:$0xff]
    %v1845 = vld [vmem:[#allocation10 + $0xb0] sm:$0xf]
    %v1846 = vld [vmem:[#allocation10 + $0xb4] sm:$0xff]
    %v1847 = vld [vmem:[#allocation10 + $0xbc] sm:$0xf]
    %v1880 = vunpack.c.l.b16 %v1816
    %v1881 = vunpack.c.h.b16 %v1816
    %v1882 = vunpack.c.l.b16 %v1817
    %v1883 = vunpack.c.l.b16 %v1818
    %v1884 = vunpack.c.h.b16 %v1818
    %v1885 = vunpack.c.l.b16 %v1819
    %v1886 = vunpack.c.l.b16 %v1820
    %v1887 = vunpack.c.h.b16 %v1820
    %v1888 = vunpack.c.l.b16 %v1821
    %v1889 = vunpack.c.l.b16 %v1822
    %v1890 = vunpack.c.h.b16 %v1822
    %v1891 = vunpack.c.l.b16 %v1823
    %v1892 = vunpack.c.l.b16 %v1824
    %v1893 = vunpack.c.h.b16 %v1824
    %v1894 = vunpack.c.l.b16 %v1825
    %v1895 = vunpack.c.l.b16 %v1826
    %v1896 = vunpack.c.h.b16 %v1826
    %v1897 = vunpack.c.l.b16 %v1827
    %v1898 = vunpack.c.l.b16 %v1828
    %v1899 = vunpack.c.h.b16 %v1828
    %v1900 = vunpack.c.l.b16 %v1829
    %v1901 = vunpack.c.l.b16 %v1830
    %v1902 = vunpack.c.h.b16 %v1830
    %v1903 = vunpack.c.l.b16 %v1831
    %v1904 = vunpack.c.l.b16 %v1832
    %v1905 = vunpack.c.h.b16 %v1832
    %v1906 = vunpack.c.l.b16 %v1833
    %v1907 = vunpack.c.l.b16 %v1834
    %v1908 = vunpack.c.h.b16 %v1834
    %v1909 = vunpack.c.l.b16 %v1835
    %v1910 = vunpack.c.l.b16 %v1836
    %v1911 = vunpack.c.h.b16 %v1836
    %v1912 = vunpack.c.l.b16 %v1837
    %v1913 = vunpack.c.l.b16 %v1838
    %v1914 = vunpack.c.h.b16 %v1838
    %v1915 = vunpack.c.l.b16 %v1839
    %v1916 = vunpack.c.l.b16 %v1840
    %v1917 = vunpack.c.h.b16 %v1840
    %v1918 = vunpack.c.l.b16 %v1841
    %v1919 = vunpack.c.l.b16 %v1842
    %v1920 = vunpack.c.h.b16 %v1842
    %v1921 = vunpack.c.l.b16 %v1843
    %v1922 = vunpack.c.l.b16 %v1844
    %v1923 = vunpack.c.h.b16 %v1844
    %v1924 = vunpack.c.l.b16 %v1845
    %v1925 = vunpack.c.l.b16 %v1846
    %v1926 = vunpack.c.h.b16 %v1846
    %v1927 = vunpack.c.l.b16 %v1847
    %v1928 = vpack.c.b16 %v1883, %v1880
    %v1929 = vpack.c.b16 %v1884, %v1881
    %v1930 = vpack.c.b16 %v1885, %v1882
    %v1931 = vpack.c.b16 %v1889, %v1886
    %v1932 = vpack.c.b16 %v1890, %v1887
    %v1933 = vpack.c.b16 %v1891, %v1888
    %v1934 = vpack.c.b16 %v1895, %v1892
    %v1935 = vpack.c.b16 %v1896, %v1893
    %v1936 = vpack.c.b16 %v1897, %v1894
    %v1937 = vpack.c.b16 %v1901, %v1898
    %v1938 = vpack.c.b16 %v1902, %v1899
    %v1939 = vpack.c.b16 %v1903, %v1900
    %v1940 = vpack.c.b16 %v1907, %v1904
    %v1941 = vpack.c.b16 %v1908, %v1905
    %v1942 = vpack.c.b16 %v1909, %v1906
    %v1943 = vpack.c.b16 %v1913, %v1910
    %v1944 = vpack.c.b16 %v1914, %v1911
    %v1945 = vpack.c.b16 %v1915, %v1912
    %v1946 = vpack.c.b16 %v1919, %v1916
    %v1947 = vpack.c.b16 %v1920, %v1917
    %v1948 = vpack.c.b16 %v1921, %v1918
    %v1949 = vpack.c.b16 %v1925, %v1922
    %v1950 = vpack.c.b16 %v1926, %v1923
    %v1951 = vpack.c.b16 %v1927, %v1924
    %1976 = vmatpush.bf16.msra.mxu0 %v1949
    %1977 = vmatpush.bf16.msra.mxu0 %v1946
    %1978 = vmatpush.bf16.msra.mxu0 %v1943
    %1979 = vmatpush.bf16.msra.mxu0 %v1940
    %1980 = vmatpush.bf16.msra.mxu0 %v1937
    %1981 = vmatpush.bf16.msra.mxu0 %v1934
    %1982 = vmatpush.bf16.msra.mxu0 %v1931
    %1983 = vmatpush.bf16.msra.mxu0 %v1928
    %1984 = vmatmul.bf16.gmra.mxu0 %v1807
    %v1985 = vpop.f32.mrf.mxu0
    %v1986 = vadd.f32 0.0, %v1985
    %v1987 = vpop.f32.mrf.mxu0
    %1988 = vdwg.mxu0
    %1989 = vmatpush.bf16.msra.mxu0 %v1950
    %1990 = vmatpush.bf16.msra.mxu0 %v1947
    %1991 = vmatpush.bf16.msra.mxu0 %v1944
    %1992 = vmatpush.bf16.msra.mxu0 %v1941
    %1993 = vmatpush.bf16.msra.mxu0 %v1938
    %1994 = vmatpush.bf16.msra.mxu0 %v1935
    %1995 = vmatpush.bf16.msra.mxu0 %v1932
    %1996 = vmatpush.bf16.msra.mxu0 %v1929
    %1997 = vmatmul.bf16.gmra.mxu0 %v1807
    %v1998 = vpop.f32.mrf.mxu0
    %v1999 = vadd.f32 0.0, %v1998
    %v2000 = vpop.f32.mrf.mxu0
    %2001 = vdwg.mxu0
    %2002 = vmatpush.bf16.msra.mxu0 %v1951
    %2003 = vmatpush.bf16.msra.mxu0 %v1948
    %2004 = vmatpush.bf16.msra.mxu0 %v1945
    %2005 = vmatpush.bf16.msra.mxu0 %v1942
    %2006 = vmatpush.bf16.msra.mxu0 %v1939
    %2007 = vmatpush.bf16.msra.mxu0 %v1936
    %2008 = vmatpush.bf16.msra.mxu0 %v1933
    %2009 = vmatpush.bf16.msra.mxu0 %v1930
    %2010 = vmatmul.bf16.gmra.mxu0 %v1807
    %v2011 = vpop.f32.mrf.mxu0
    %v2012 = vadd.f32 0.0, %v2011
    %v2013 = vpop.f32.mrf.mxu0
    %2014 = vdwg.mxu0
    %v2015 = vadd.f32 %v1813, %v1986
    %v2016 = vxor.u32 %v2015, 2147483648
    %v2017 = vmul.f32 %v2016, 1.442695
    %v2018 = vpow.pop %v2017
    %v2019 = vadd.f32 %v2018, 1.0
    %v2020 = vrcp.pop %v2019
    %v2021 = vmul.f32 %v2019, %v2020
    %v2022 = vsub.f32 1.0, %v2021
    %v2023 = vmul.f32 %v2020, %v2022
    %v2024 = vadd.f32 %v2020, %v2023
    %vm2025 = vweird.f32 %v2019
    %vm2026 = vweird.f32 %v2020
    %vm2027 = vmor %vm2025, %vm2026
    %v2028 = vsel %vm2027, %v2020, %v2024
    %v2029 = vand.u32 2147483647, %v2019
    %vm2030 = vcmp.eq.f32.partialorder %v2029, 8.507059e+37
    %v2031 = vand.u32 %v2019, 2147483648
    %v2032 = vor.u32 1.1754944e-38, %v2031
    %v2033 = vsel %vm2030, %v2032, %v2028
    %v2034 = vmul.f32 1.0, %v2033
    %v2035 = vadd.f32 %v1814, %v1999
    %v2036 = vxor.u32 %v2035, 2147483648
    %v2037 = vmul.f32 %v2036, 1.442695
    %v2038 = vpow.pop %v2037
    %v2039 = vadd.f32 %v2038, 1.0
    %v2040 = vrcp.pop %v2039
    %v2041 = vmul.f32 %v2039, %v2040
    %v2042 = vsub.f32 1.0, %v2041
    %v2043 = vmul.f32 %v2040, %v2042
    %v2044 = vadd.f32 %v2040, %v2043
    %vm2045 = vweird.f32 %v2039
    %vm2046 = vweird.f32 %v2040
    %vm2047 = vmor %vm2045, %vm2046
    %v2048 = vsel %vm2047, %v2040, %v2044
    %v2049 = vand.u32 2147483647, %v2039
    %vm2050 = vcmp.eq.f32.partialorder %v2049, 8.507059e+37
    %v2051 = vand.u32 %v2039, 2147483648
    %v2052 = vor.u32 1.1754944e-38, %v2051
    %v2053 = vsel %vm2050, %v2052, %v2048
    %v2054 = vmul.f32 1.0, %v2053
    %v2055 = vld [vmem:[%s6] sm:$0x1]
    %v2057 = vperm.slane %v2055, 0
    %v2059 = vadd.f32 %v2012, %v2057
    %v2060 = vmul.f32 %v2034, %v2059
    %v2061 = vadd.f32 %v1815, %v2060
    %v2062 = vtanh.pop %v2061
    %v2063 = vsub.f32 1.0, %v2054
    %v2064 = vmul.f32 %v2063, %v2062
    %v2065 = vmul.f32 %v2054, %v1806
    %v2066 = vadd.f32 %v2064, %v2065
    %s2067 = sadd.s32 %s146, 5
    %v2068 = vstv %s2067
    %vm2069 = vcmp.lt.s32.totalorder %v2068, %v145
    %v2070 = vsel %vm2069, 1, 0
    %2071 = vset.pattern.permute.xlu0 0
    %2072 = vperm.xlu0 %2071, %v2070
    %v2073 = vpop.permute.xlu0 %2072
    %vm2074 = vcmp.eq.s32.totalorder %v2073, 1
    %v2075 = vsel %vm2074, %v2066, %v1806
    %v2076 = vpack.c.bf16 %v2075, %v2075
    %s2077 = scalar_lea.vmem [#allocation3], 20
    %2078 = vst [vmem:[%s2077] sm:$0xf] %v2076
    %s2079 = scalar_lea.vmem [#allocation2], 72
    %v2080 = vld [vmem:[%s2079] sm:$0xff]
    %v2081 = vld [vmem:[%s2079 + $0x8] sm:$0xf]
    %v2082 = vunpack.c.l.bf16 %v2080
    %v2083 = vunpack.c.h.bf16 %v2080
    %v2084 = vunpack.c.l.bf16 %v2081
    %v2085 = vld [vmem:[#allocation10] sm:$0xff]
    %v2086 = vld [vmem:[#allocation10 + $0x8] sm:$0xf]
    %v2087 = vld [vmem:[#allocation10 + $0xc] sm:$0xff]
    %v2088 = vld [vmem:[#allocation10 + $0x14] sm:$0xf]
    %v2089 = vld [vmem:[#allocation10 + $0x18] sm:$0xff]
    %v2090 = vld [vmem:[#allocation10 + $0x20] sm:$0xf]
    %v2091 = vld [vmem:[#allocation10 + $0x24] sm:$0xff]
    %v2092 = vld [vmem:[#allocation10 + $0x2c] sm:$0xf]
    %v2093 = vld [vmem:[#allocation10 + $0x30] sm:$0xff]
    %v2094 = vld [vmem:[#allocation10 + $0x38] sm:$0xf]
    %v2095 = vld [vmem:[#allocation10 + $0x3c] sm:$0xff]
    %v2096 = vld [vmem:[#allocation10 + $0x44] sm:$0xf]
    %v2097 = vld [vmem:[#allocation10 + $0x48] sm:$0xff]
    %v2098 = vld [vmem:[#allocation10 + $0x50] sm:$0xf]
    %v2099 = vld [vmem:[#allocation10 + $0x54] sm:$0xff]
    %v2100 = vld [vmem:[#allocation10 + $0x5c] sm:$0xf]
    %v2101 = vld [vmem:[#allocation10 + $0x60] sm:$0xff]
    %v2102 = vld [vmem:[#allocation10 + $0x68] sm:$0xf]
    %v2103 = vld [vmem:[#allocation10 + $0x6c] sm:$0xff]
    %v2104 = vld [vmem:[#allocation10 + $0x74] sm:$0xf]
    %v2105 = vld [vmem:[#allocation10 + $0x78] sm:$0xff]
    %v2106 = vld [vmem:[#allocation10 + $0x80] sm:$0xf]
    %v2107 = vld [vmem:[#allocation10 + $0x84] sm:$0xff]
    %v2108 = vld [vmem:[#allocation10 + $0x8c] sm:$0xf]
    %v2109 = vld [vmem:[#allocation10 + $0x90] sm:$0xff]
    %v2110 = vld [vmem:[#allocation10 + $0x98] sm:$0xf]
    %v2111 = vld [vmem:[#allocation10 + $0x9c] sm:$0xff]
    %v2112 = vld [vmem:[#allocation10 + $0xa4] sm:$0xf]
    %v2113 = vld [vmem:[#allocation10 + $0xa8] sm:$0xff]
    %v2114 = vld [vmem:[#allocation10 + $0xb0] sm:$0xf]
    %v2115 = vld [vmem:[#allocation10 + $0xb4] sm:$0xff]
    %v2116 = vld [vmem:[#allocation10 + $0xbc] sm:$0xf]
    %v2149 = vunpack.c.l.b16 %v2085
    %v2150 = vunpack.c.h.b16 %v2085
    %v2151 = vunpack.c.l.b16 %v2086
    %v2152 = vunpack.c.l.b16 %v2087
    %v2153 = vunpack.c.h.b16 %v2087
    %v2154 = vunpack.c.l.b16 %v2088
    %v2155 = vunpack.c.l.b16 %v2089
    %v2156 = vunpack.c.h.b16 %v2089
    %v2157 = vunpack.c.l.b16 %v2090
    %v2158 = vunpack.c.l.b16 %v2091
    %v2159 = vunpack.c.h.b16 %v2091
    %v2160 = vunpack.c.l.b16 %v2092
    %v2161 = vunpack.c.l.b16 %v2093
    %v2162 = vunpack.c.h.b16 %v2093
    %v2163 = vunpack.c.l.b16 %v2094
    %v2164 = vunpack.c.l.b16 %v2095
    %v2165 = vunpack.c.h.b16 %v2095
    %v2166 = vunpack.c.l.b16 %v2096
    %v2167 = vunpack.c.l.b16 %v2097
    %v2168 = vunpack.c.h.b16 %v2097
    %v2169 = vunpack.c.l.b16 %v2098
    %v2170 = vunpack.c.l.b16 %v2099
    %v2171 = vunpack.c.h.b16 %v2099
    %v2172 = vunpack.c.l.b16 %v2100
    %v2173 = vunpack.c.l.b16 %v2101
    %v2174 = vunpack.c.h.b16 %v2101
    %v2175 = vunpack.c.l.b16 %v2102
    %v2176 = vunpack.c.l.b16 %v2103
    %v2177 = vunpack.c.h.b16 %v2103
    %v2178 = vunpack.c.l.b16 %v2104
    %v2179 = vunpack.c.l.b16 %v2105
    %v2180 = vunpack.c.h.b16 %v2105
    %v2181 = vunpack.c.l.b16 %v2106
    %v2182 = vunpack.c.l.b16 %v2107
    %v2183 = vunpack.c.h.b16 %v2107
    %v2184 = vunpack.c.l.b16 %v2108
    %v2185 = vunpack.c.l.b16 %v2109
    %v2186 = vunpack.c.h.b16 %v2109
    %v2187 = vunpack.c.l.b16 %v2110
    %v2188 = vunpack.c.l.b16 %v2111
    %v2189 = vunpack.c.h.b16 %v2111
    %v2190 = vunpack.c.l.b16 %v2112
    %v2191 = vunpack.c.l.b16 %v2113
    %v2192 = vunpack.c.h.b16 %v2113
    %v2193 = vunpack.c.l.b16 %v2114
    %v2194 = vunpack.c.l.b16 %v2115
    %v2195 = vunpack.c.h.b16 %v2115
    %v2196 = vunpack.c.l.b16 %v2116
    %v2197 = vpack.c.b16 %v2152, %v2149
    %v2198 = vpack.c.b16 %v2153, %v2150
    %v2199 = vpack.c.b16 %v2154, %v2151
    %v2200 = vpack.c.b16 %v2158, %v2155
    %v2201 = vpack.c.b16 %v2159, %v2156
    %v2202 = vpack.c.b16 %v2160, %v2157
    %v2203 = vpack.c.b16 %v2164, %v2161
    %v2204 = vpack.c.b16 %v2165, %v2162
    %v2205 = vpack.c.b16 %v2166, %v2163
    %v2206 = vpack.c.b16 %v2170, %v2167
    %v2207 = vpack.c.b16 %v2171, %v2168
    %v2208 = vpack.c.b16 %v2172, %v2169
    %v2209 = vpack.c.b16 %v2176, %v2173
    %v2210 = vpack.c.b16 %v2177, %v2174
    %v2211 = vpack.c.b16 %v2178, %v2175
    %v2212 = vpack.c.b16 %v2182, %v2179
    %v2213 = vpack.c.b16 %v2183, %v2180
    %v2214 = vpack.c.b16 %v2184, %v2181
    %v2215 = vpack.c.b16 %v2188, %v2185
    %v2216 = vpack.c.b16 %v2189, %v2186
    %v2217 = vpack.c.b16 %v2190, %v2187
    %v2218 = vpack.c.b16 %v2194, %v2191
    %v2219 = vpack.c.b16 %v2195, %v2192
    %v2220 = vpack.c.b16 %v2196, %v2193
    %2245 = vmatpush.bf16.msra.mxu0 %v2218
    %2246 = vmatpush.bf16.msra.mxu0 %v2215
    %2247 = vmatpush.bf16.msra.mxu0 %v2212
    %2248 = vmatpush.bf16.msra.mxu0 %v2209
    %2249 = vmatpush.bf16.msra.mxu0 %v2206
    %2250 = vmatpush.bf16.msra.mxu0 %v2203
    %2251 = vmatpush.bf16.msra.mxu0 %v2200
    %2252 = vmatpush.bf16.msra.mxu0 %v2197
    %2253 = vmatmul.bf16.gmra.mxu0 %v2076
    %v2254 = vpop.f32.mrf.mxu0
    %v2255 = vadd.f32 0.0, %v2254
    %v2256 = vpop.f32.mrf.mxu0
    %2257 = vdwg.mxu0
    %2258 = vmatpush.bf16.msra.mxu0 %v2219
    %2259 = vmatpush.bf16.msra.mxu0 %v2216
    %2260 = vmatpush.bf16.msra.mxu0 %v2213
    %2261 = vmatpush.bf16.msra.mxu0 %v2210
    %2262 = vmatpush.bf16.msra.mxu0 %v2207
    %2263 = vmatpush.bf16.msra.mxu0 %v2204
    %2264 = vmatpush.bf16.msra.mxu0 %v2201
    %2265 = vmatpush.bf16.msra.mxu0 %v2198
    %2266 = vmatmul.bf16.gmra.mxu0 %v2076
    %v2267 = vpop.f32.mrf.mxu0
    %v2268 = vadd.f32 0.0, %v2267
    %v2269 = vpop.f32.mrf.mxu0
    %2270 = vdwg.mxu0
    %2271 = vmatpush.bf16.msra.mxu0 %v2220
    %2272 = vmatpush.bf16.msra.mxu0 %v2217
    %2273 = vmatpush.bf16.msra.mxu0 %v2214
    %2274 = vmatpush.bf16.msra.mxu0 %v2211
    %2275 = vmatpush.bf16.msra.mxu0 %v2208
    %2276 = vmatpush.bf16.msra.mxu0 %v2205
    %2277 = vmatpush.bf16.msra.mxu0 %v2202
    %2278 = vmatpush.bf16.msra.mxu0 %v2199
    %2279 = vmatmul.bf16.gmra.mxu0 %v2076
    %v2280 = vpop.f32.mrf.mxu0
    %v2281 = vadd.f32 0.0, %v2280
    %v2282 = vpop.f32.mrf.mxu0
    %2283 = vdwg.mxu0
    %v2284 = vadd.f32 %v2082, %v2255
    %v2285 = vxor.u32 %v2284, 2147483648
    %v2286 = vmul.f32 %v2285, 1.442695
    %v2287 = vpow.pop %v2286
    %v2288 = vadd.f32 %v2287, 1.0
    %v2289 = vrcp.pop %v2288
    %v2290 = vmul.f32 %v2288, %v2289
    %v2291 = vsub.f32 1.0, %v2290
    %v2292 = vmul.f32 %v2289, %v2291
    %v2293 = vadd.f32 %v2289, %v2292
    %vm2294 = vweird.f32 %v2288
    %vm2295 = vweird.f32 %v2289
    %vm2296 = vmor %vm2294, %vm2295
    %v2297 = vsel %vm2296, %v2289, %v2293
    %v2298 = vand.u32 2147483647, %v2288
    %vm2299 = vcmp.eq.f32.partialorder %v2298, 8.507059e+37
    %v2300 = vand.u32 %v2288, 2147483648
    %v2301 = vor.u32 1.1754944e-38, %v2300
    %v2302 = vsel %vm2299, %v2301, %v2297
    %v2303 = vmul.f32 1.0, %v2302
    %v2304 = vadd.f32 %v2083, %v2268
    %v2305 = vxor.u32 %v2304, 2147483648
    %v2306 = vmul.f32 %v2305, 1.442695
    %v2307 = vpow.pop %v2306
    %v2308 = vadd.f32 %v2307, 1.0
    %v2309 = vrcp.pop %v2308
    %v2310 = vmul.f32 %v2308, %v2309
    %v2311 = vsub.f32 1.0, %v2310
    %v2312 = vmul.f32 %v2309, %v2311
    %v2313 = vadd.f32 %v2309, %v2312
    %vm2314 = vweird.f32 %v2308
    %vm2315 = vweird.f32 %v2309
    %vm2316 = vmor %vm2314, %vm2315
    %v2317 = vsel %vm2316, %v2309, %v2313
    %v2318 = vand.u32 2147483647, %v2308
    %vm2319 = vcmp.eq.f32.partialorder %v2318, 8.507059e+37
    %v2320 = vand.u32 %v2308, 2147483648
    %v2321 = vor.u32 1.1754944e-38, %v2320
    %v2322 = vsel %vm2319, %v2321, %v2317
    %v2323 = vmul.f32 1.0, %v2322
    %v2324 = vld [vmem:[%s6] sm:$0x1]
    %v2326 = vperm.slane %v2324, 0
    %v2328 = vadd.f32 %v2281, %v2326
    %v2329 = vmul.f32 %v2303, %v2328
    %v2330 = vadd.f32 %v2084, %v2329
    %v2331 = vtanh.pop %v2330
    %v2332 = vsub.f32 1.0, %v2323
    %v2333 = vmul.f32 %v2332, %v2331
    %v2334 = vmul.f32 %v2323, %v2075
    %v2335 = vadd.f32 %v2333, %v2334
    %s2336 = sadd.s32 %s146, 6
    %v2337 = vstv %s2336
    %vm2338 = vcmp.lt.s32.totalorder %v2337, %v145
    %v2339 = vsel %vm2338, 1, 0
    %2340 = vset.pattern.permute.xlu0 0
    %2341 = vperm.xlu0 %2340, %v2339
    %v2342 = vpop.permute.xlu0 %2341
    %vm2343 = vcmp.eq.s32.totalorder %v2342, 1
    %v2344 = vsel %vm2343, %v2335, %v2075
    %v2345 = vpack.c.bf16 %v2344, %v2344
    %s2346 = scalar_lea.vmem [#allocation3], 24
    %2347 = vst [vmem:[%s2346] sm:$0xf] %v2345
    %s2348 = scalar_lea.vmem [#allocation2], 84
    %v2349 = vld [vmem:[%s2348] sm:$0xff]
    %v2350 = vld [vmem:[%s2348 + $0x8] sm:$0xf]
    %v2351 = vunpack.c.l.bf16 %v2349
    %v2352 = vunpack.c.h.bf16 %v2349
    %v2353 = vunpack.c.l.bf16 %v2350
    %v2354 = vld [vmem:[#allocation10] sm:$0xff]
    %v2355 = vld [vmem:[#allocation10 + $0x8] sm:$0xf]
    %v2356 = vld [vmem:[#allocation10 + $0xc] sm:$0xff]
    %v2357 = vld [vmem:[#allocation10 + $0x14] sm:$0xf]
    %v2358 = vld [vmem:[#allocation10 + $0x18] sm:$0xff]
    %v2359 = vld [vmem:[#allocation10 + $0x20] sm:$0xf]
    %v2360 = vld [vmem:[#allocation10 + $0x24] sm:$0xff]
    %v2361 = vld [vmem:[#allocation10 + $0x2c] sm:$0xf]
    %v2362 = vld [vmem:[#allocation10 + $0x30] sm:$0xff]
    %v2363 = vld [vmem:[#allocation10 + $0x38] sm:$0xf]
    %v2364 = vld [vmem:[#allocation10 + $0x3c] sm:$0xff]
    %v2365 = vld [vmem:[#allocation10 + $0x44] sm:$0xf]
    %v2366 = vld [vmem:[#allocation10 + $0x48] sm:$0xff]
    %v2367 = vld [vmem:[#allocation10 + $0x50] sm:$0xf]
    %v2368 = vld [vmem:[#allocation10 + $0x54] sm:$0xff]
    %v2369 = vld [vmem:[#allocation10 + $0x5c] sm:$0xf]
    %v2370 = vld [vmem:[#allocation10 + $0x60] sm:$0xff]
    %v2371 = vld [vmem:[#allocation10 + $0x68] sm:$0xf]
    %v2372 = vld [vmem:[#allocation10 + $0x6c] sm:$0xff]
    %v2373 = vld [vmem:[#allocation10 + $0x74] sm:$0xf]
    %v2374 = vld [vmem:[#allocation10 + $0x78] sm:$0xff]
    %v2375 = vld [vmem:[#allocation10 + $0x80] sm:$0xf]
    %v2376 = vld [vmem:[#allocation10 + $0x84] sm:$0xff]
    %v2377 = vld [vmem:[#allocation10 + $0x8c] sm:$0xf]
    %v2378 = vld [vmem:[#allocation10 + $0x90] sm:$0xff]
    %v2379 = vld [vmem:[#allocation10 + $0x98] sm:$0xf]
    %v2380 = vld [vmem:[#allocation10 + $0x9c] sm:$0xff]
    %v2381 = vld [vmem:[#allocation10 + $0xa4] sm:$0xf]
    %v2382 = vld [vmem:[#allocation10 + $0xa8] sm:$0xff]
    %v2383 = vld [vmem:[#allocation10 + $0xb0] sm:$0xf]
    %v2384 = vld [vmem:[#allocation10 + $0xb4] sm:$0xff]
    %v2385 = vld [vmem:[#allocation10 + $0xbc] sm:$0xf]
    %v2418 = vunpack.c.l.b16 %v2354
    %v2419 = vunpack.c.h.b16 %v2354
    %v2420 = vunpack.c.l.b16 %v2355
    %v2421 = vunpack.c.l.b16 %v2356
    %v2422 = vunpack.c.h.b16 %v2356
    %v2423 = vunpack.c.l.b16 %v2357
    %v2424 = vunpack.c.l.b16 %v2358
    %v2425 = vunpack.c.h.b16 %v2358
    %v2426 = vunpack.c.l.b16 %v2359
    %v2427 = vunpack.c.l.b16 %v2360
    %v2428 = vunpack.c.h.b16 %v2360
    %v2429 = vunpack.c.l.b16 %v2361
    %v2430 = vunpack.c.l.b16 %v2362
    %v2431 = vunpack.c.h.b16 %v2362
    %v2432 = vunpack.c.l.b16 %v2363
    %v2433 = vunpack.c.l.b16 %v2364
    %v2434 = vunpack.c.h.b16 %v2364
    %v2435 = vunpack.c.l.b16 %v2365
    %v2436 = vunpack.c.l.b16 %v2366
    %v2437 = vunpack.c.h.b16 %v2366
    %v2438 = vunpack.c.l.b16 %v2367
    %v2439 = vunpack.c.l.b16 %v2368
    %v2440 = vunpack.c.h.b16 %v2368
    %v2441 = vunpack.c.l.b16 %v2369
    %v2442 = vunpack.c.l.b16 %v2370
    %v2443 = vunpack.c.h.b16 %v2370
    %v2444 = vunpack.c.l.b16 %v2371
    %v2445 = vunpack.c.l.b16 %v2372
    %v2446 = vunpack.c.h.b16 %v2372
    %v2447 = vunpack.c.l.b16 %v2373
    %v2448 = vunpack.c.l.b16 %v2374
    %v2449 = vunpack.c.h.b16 %v2374
    %v2450 = vunpack.c.l.b16 %v2375
    %v2451 = vunpack.c.l.b16 %v2376
    %v2452 = vunpack.c.h.b16 %v2376
    %v2453 = vunpack.c.l.b16 %v2377
    %v2454 = vunpack.c.l.b16 %v2378
    %v2455 = vunpack.c.h.b16 %v2378
    %v2456 = vunpack.c.l.b16 %v2379
    %v2457 = vunpack.c.l.b16 %v2380
    %v2458 = vunpack.c.h.b16 %v2380
    %v2459 = vunpack.c.l.b16 %v2381
    %v2460 = vunpack.c.l.b16 %v2382
    %v2461 = vunpack.c.h.b16 %v2382
    %v2462 = vunpack.c.l.b16 %v2383
    %v2463 = vunpack.c.l.b16 %v2384
    %v2464 = vunpack.c.h.b16 %v2384
    %v2465 = vunpack.c.l.b16 %v2385
    %v2466 = vpack.c.b16 %v2421, %v2418
    %v2467 = vpack.c.b16 %v2422, %v2419
    %v2468 = vpack.c.b16 %v2423, %v2420
    %v2469 = vpack.c.b16 %v2427, %v2424
    %v2470 = vpack.c.b16 %v2428, %v2425
    %v2471 = vpack.c.b16 %v2429, %v2426
    %v2472 = vpack.c.b16 %v2433, %v2430
    %v2473 = vpack.c.b16 %v2434, %v2431
    %v2474 = vpack.c.b16 %v2435, %v2432
    %v2475 = vpack.c.b16 %v2439, %v2436
    %v2476 = vpack.c.b16 %v2440, %v2437
    %v2477 = vpack.c.b16 %v2441, %v2438
    %v2478 = vpack.c.b16 %v2445, %v2442
    %v2479 = vpack.c.b16 %v2446, %v2443
    %v2480 = vpack.c.b16 %v2447, %v2444
    %v2481 = vpack.c.b16 %v2451, %v2448
    %v2482 = vpack.c.b16 %v2452, %v2449
    %v2483 = vpack.c.b16 %v2453, %v2450
    %v2484 = vpack.c.b16 %v2457, %v2454
    %v2485 = vpack.c.b16 %v2458, %v2455
    %v2486 = vpack.c.b16 %v2459, %v2456
    %v2487 = vpack.c.b16 %v2463, %v2460
    %v2488 = vpack.c.b16 %v2464, %v2461
    %v2489 = vpack.c.b16 %v2465, %v2462
    %2514 = vmatpush.bf16.msra.mxu0 %v2487
    %2515 = vmatpush.bf16.msra.mxu0 %v2484
    %2516 = vmatpush.bf16.msra.mxu0 %v2481
    %2517 = vmatpush.bf16.msra.mxu0 %v2478
    %2518 = vmatpush.bf16.msra.mxu0 %v2475
    %2519 = vmatpush.bf16.msra.mxu0 %v2472
    %2520 = vmatpush.bf16.msra.mxu0 %v2469
    %2521 = vmatpush.bf16.msra.mxu0 %v2466
    %2522 = vmatmul.bf16.gmra.mxu0 %v2345
    %v2523 = vpop.f32.mrf.mxu0
    %v2524 = vadd.f32 0.0, %v2523
    %v2525 = vpop.f32.mrf.mxu0
    %2526 = vdwg.mxu0
    %2527 = vmatpush.bf16.msra.mxu0 %v2488
    %2528 = vmatpush.bf16.msra.mxu0 %v2485
    %2529 = vmatpush.bf16.msra.mxu0 %v2482
    %2530 = vmatpush.bf16.msra.mxu0 %v2479
    %2531 = vmatpush.bf16.msra.mxu0 %v2476
    %2532 = vmatpush.bf16.msra.mxu0 %v2473
    %2533 = vmatpush.bf16.msra.mxu0 %v2470
    %2534 = vmatpush.bf16.msra.mxu0 %v2467
    %2535 = vmatmul.bf16.gmra.mxu0 %v2345
    %v2536 = vpop.f32.mrf.mxu0
    %v2537 = vadd.f32 0.0, %v2536
    %v2538 = vpop.f32.mrf.mxu0
    %2539 = vdwg.mxu0
    %2540 = vmatpush.bf16.msra.mxu0 %v2489
    %2541 = vmatpush.bf16.msra.mxu0 %v2486
    %2542 = vmatpush.bf16.msra.mxu0 %v2483
    %2543 = vmatpush.bf16.msra.mxu0 %v2480
    %2544 = vmatpush.bf16.msra.mxu0 %v2477
    %2545 = vmatpush.bf16.msra.mxu0 %v2474
    %2546 = vmatpush.bf16.msra.mxu0 %v2471
    %2547 = vmatpush.bf16.msra.mxu0 %v2468
    %2548 = vmatmul.bf16.gmra.mxu0 %v2345
    %v2549 = vpop.f32.mrf.mxu0
    %v2550 = vadd.f32 0.0, %v2549
    %v2551 = vpop.f32.mrf.mxu0
    %2552 = vdwg.mxu0
    %v2553 = vadd.f32 %v2351, %v2524
    %v2554 = vxor.u32 %v2553, 2147483648
    %v2555 = vmul.f32 %v2554, 1.442695
    %v2556 = vpow.pop %v2555
    %v2557 = vadd.f32 %v2556, 1.0
    %v2558 = vrcp.pop %v2557
    %v2559 = vmul.f32 %v2557, %v2558
    %v2560 = vsub.f32 1.0, %v2559
    %v2561 = vmul.f32 %v2558, %v2560
    %v2562 = vadd.f32 %v2558, %v2561
    %vm2563 = vweird.f32 %v2557
    %vm2564 = vweird.f32 %v2558
    %vm2565 = vmor %vm2563, %vm2564
    %v2566 = vsel %vm2565, %v2558, %v2562
    %v2567 = vand.u32 2147483647, %v2557
    %vm2568 = vcmp.eq.f32.partialorder %v2567, 8.507059e+37
    %v2569 = vand.u32 %v2557, 2147483648
    %v2570 = vor.u32 1.1754944e-38, %v2569
    %v2571 = vsel %vm2568, %v2570, %v2566
    %v2572 = vmul.f32 1.0, %v2571
    %v2573 = vadd.f32 %v2352, %v2537
    %v2574 = vxor.u32 %v2573, 2147483648
    %v2575 = vmul.f32 %v2574, 1.442695
    %v2576 = vpow.pop %v2575
    %v2577 = vadd.f32 %v2576, 1.0
    %v2578 = vrcp.pop %v2577
    %v2579 = vmul.f32 %v2577, %v2578
    %v2580 = vsub.f32 1.0, %v2579
    %v2581 = vmul.f32 %v2578, %v2580
    %v2582 = vadd.f32 %v2578, %v2581
    %vm2583 = vweird.f32 %v2577
    %vm2584 = vweird.f32 %v2578
    %vm2585 = vmor %vm2583, %vm2584
    %v2586 = vsel %vm2585, %v2578, %v2582
    %v2587 = vand.u32 2147483647, %v2577
    %vm2588 = vcmp.eq.f32.partialorder %v2587, 8.507059e+37
    %v2589 = vand.u32 %v2577, 2147483648
    %v2590 = vor.u32 1.1754944e-38, %v2589
    %v2591 = vsel %vm2588, %v2590, %v2586
    %v2592 = vmul.f32 1.0, %v2591
    %v2593 = vld [vmem:[%s6] sm:$0x1]
    %v2595 = vperm.slane %v2593, 0
    %v2597 = vadd.f32 %v2550, %v2595
    %v2598 = vmul.f32 %v2572, %v2597
    %v2599 = vadd.f32 %v2353, %v2598
    %v2600 = vtanh.pop %v2599
    %v2601 = vsub.f32 1.0, %v2592
    %v2602 = vmul.f32 %v2601, %v2600
    %v2603 = vmul.f32 %v2592, %v2344
    %v2604 = vadd.f32 %v2602, %v2603
    %s2605 = sadd.s32 %s146, 7
    %v2606 = vstv %s2605
    %vm2607 = vcmp.lt.s32.totalorder %v2606, %v145
    %v2608 = vsel %vm2607, 1, 0
    %2609 = vset.pattern.permute.xlu0 0
    %2610 = vperm.xlu0 %2609, %v2608
    %v2611 = vpop.permute.xlu0 %2610
    %vm2612 = vcmp.eq.s32.totalorder %v2611, 1
    %v2613 = vsel %vm2612, %v2604, %v2344
    %v2614 = vpack.c.bf16 %v2613, %v2613
    %s2615 = scalar_lea.vmem [#allocation3], 28
    %2616 = vst [vmem:[%s2615] sm:$0xf] %v2614
    %2617 = vst [vmem:[#allocation4] sm:$0xff] %v2613
    %v2618 = vld [vmem:[#allocation3] sm:$0xf]
    %v2619 = vld [vmem:[#allocation3 + $0x4] sm:$0xf]
    %v2620 = vld [vmem:[#allocation3 + $0x8] sm:$0xf]
    %v2621 = vld [vmem:[#allocation3 + $0xc] sm:$0xf]
    %v2622 = vld [vmem:[#allocation3 + $0x10] sm:$0xf]
    %v2623 = vld [vmem:[#allocation3 + $0x14] sm:$0xf]
    %v2624 = vld [vmem:[#allocation3 + $0x18] sm:$0xf]
    %v2625 = vld [vmem:[#allocation3 + $0x1c] sm:$0xf]
    %v2626 = vld [vmem:[#allocation11] sm:$0xff]
    %v2627 = vld [vmem:[#allocation11 + $0x8] sm:$0xf]
    %v2628 = vld [vmem:[#allocation11 + $0xc] sm:$0xff]
    %v2629 = vld [vmem:[#allocation11 + $0x14] sm:$0xf]
    %v2630 = vld [vmem:[#allocation11 + $0x18] sm:$0xff]
    %v2631 = vld [vmem:[#allocation11 + $0x20] sm:$0xf]
    %v2632 = vld [vmem:[#allocation11 + $0x24] sm:$0xff]
    %v2633 = vld [vmem:[#allocation11 + $0x2c] sm:$0xf]
    %v2634 = vld [vmem:[#allocation11 + $0x30] sm:$0xff]
    %v2635 = vld [vmem:[#allocation11 + $0x38] sm:$0xf]
    %v2636 = vld [vmem:[#allocation11 + $0x3c] sm:$0xff]
    %v2637 = vld [vmem:[#allocation11 + $0x44] sm:$0xf]
    %v2638 = vld [vmem:[#allocation11 + $0x48] sm:$0xff]
    %v2639 = vld [vmem:[#allocation11 + $0x50] sm:$0xf]
    %v2640 = vld [vmem:[#allocation11 + $0x54] sm:$0xff]
    %v2641 = vld [vmem:[#allocation11 + $0x5c] sm:$0xf]
    %v2642 = vld [vmem:[#allocation11 + $0x60] sm:$0xff]
    %v2643 = vld [vmem:[#allocation11 + $0x68] sm:$0xf]
    %v2644 = vld [vmem:[#allocation11 + $0x6c] sm:$0xff]
    %v2645 = vld [vmem:[#allocation11 + $0x74] sm:$0xf]
    %v2646 = vld [vmem:[#allocation11 + $0x78] sm:$0xff]
    %v2647 = vld [vmem:[#allocation11 + $0x80] sm:$0xf]
    %v2648 = vld [vmem:[#allocation11 + $0x84] sm:$0xff]
    %v2649 = vld [vmem:[#allocation11 + $0x8c] sm:$0xf]
    %v2650 = vld [vmem:[#allocation11 + $0x90] sm:$0xff]
    %v2651 = vld [vmem:[#allocation11 + $0x98] sm:$0xf]
    %v2652 = vld [vmem:[#allocation11 + $0x9c] sm:$0xff]
    %v2653 = vld [vmem:[#allocation11 + $0xa4] sm:$0xf]
    %v2654 = vld [vmem:[#allocation11 + $0xa8] sm:$0xff]
    %v2655 = vld [vmem:[#allocation11 + $0xb0] sm:$0xf]
    %v2656 = vld [vmem:[#allocation11 + $0xb4] sm:$0xff]
    %v2657 = vld [vmem:[#allocation11 + $0xbc] sm:$0xf]
    %v2658 = vld [vmem:[%s9] sm:$0x7]
    %v2660 = vperm.slane %v2658, 0
    %v2661 = vperm.slane %v2658, 1
    %v2662 = vperm.slane %v2658, 2
    %v2674 = vunpack.c.l.b16 %v2618
    %v2675 = vunpack.c.l.b16 %v2619
    %v2676 = vunpack.c.l.b16 %v2620
    %v2677 = vunpack.c.l.b16 %v2621
    %v2678 = vunpack.c.l.b16 %v2622
    %v2679 = vunpack.c.l.b16 %v2623
    %v2680 = vunpack.c.l.b16 %v2624
    %v2681 = vunpack.c.l.b16 %v2625
    %v2682 = vpack.c.b16 %v2675, %v2674
    %v2683 = vpack.c.b16 %v2677, %v2676
    %v2684 = vpack.c.b16 %v2679, %v2678
    %v2685 = vpack.c.b16 %v2681, %v2680
    %v2722 = vunpack.c.l.b16 %v2626
    %v2723 = vunpack.c.h.b16 %v2626
    %v2724 = vunpack.c.l.b16 %v2627
    %v2725 = vunpack.c.l.b16 %v2628
    %v2726 = vunpack.c.h.b16 %v2628
    %v2727 = vunpack.c.l.b16 %v2629
    %v2728 = vunpack.c.l.b16 %v2630
    %v2729 = vunpack.c.h.b16 %v2630
    %v2730 = vunpack.c.l.b16 %v2631
    %v2731 = vunpack.c.l.b16 %v2632
    %v2732 = vunpack.c.h.b16 %v2632
    %v2733 = vunpack.c.l.b16 %v2633
    %v2734 = vunpack.c.l.b16 %v2634
    %v2735 = vunpack.c.h.b16 %v2634
    %v2736 = vunpack.c.l.b16 %v2635
    %v2737 = vunpack.c.l.b16 %v2636
    %v2738 = vunpack.c.h.b16 %v2636
    %v2739 = vunpack.c.l.b16 %v2637
    %v2740 = vunpack.c.l.b16 %v2638
    %v2741 = vunpack.c.h.b16 %v2638
    %v2742 = vunpack.c.l.b16 %v2639
    %v2743 = vunpack.c.l.b16 %v2640
    %v2744 = vunpack.c.h.b16 %v2640
    %v2745 = vunpack.c.l.b16 %v2641
    %v2746 = vunpack.c.l.b16 %v2642
    %v2747 = vunpack.c.h.b16 %v2642
    %v2748 = vunpack.c.l.b16 %v2643
    %v2749 = vunpack.c.l.b16 %v2644
    %v2750 = vunpack.c.h.b16 %v2644
    %v2751 = vunpack.c.l.b16 %v2645
    %v2752 = vunpack.c.l.b16 %v2646
    %v2753 = vunpack.c.h.b16 %v2646
    %v2754 = vunpack.c.l.b16 %v2647
    %v2755 = vunpack.c.l.b16 %v2648
    %v2756 = vunpack.c.h.b16 %v2648
    %v2757 = vunpack.c.l.b16 %v2649
    %v2758 = vunpack.c.l.b16 %v2650
    %v2759 = vunpack.c.h.b16 %v2650
    %v2760 = vunpack.c.l.b16 %v2651
    %v2761 = vunpack.c.l.b16 %v2652
    %v2762 = vunpack.c.h.b16 %v2652
    %v2763 = vunpack.c.l.b16 %v2653
    %v2764 = vunpack.c.l.b16 %v2654
    %v2765 = vunpack.c.h.b16 %v2654
    %v2766 = vunpack.c.l.b16 %v2655
    %v2767 = vunpack.c.l.b16 %v2656
    %v2768 = vunpack.c.h.b16 %v2656
    %v2769 = vunpack.c.l.b16 %v2657
    %v2770 = vpack.c.b16 %v2725, %v2722
    %v2771 = vpack.c.b16 %v2726, %v2723
    %v2772 = vpack.c.b16 %v2727, %v2724
    %v2773 = vpack.c.b16 %v2731, %v2728
    %v2774 = vpack.c.b16 %v2732, %v2729
    %v2775 = vpack.c.b16 %v2733, %v2730
    %v2776 = vpack.c.b16 %v2737, %v2734
    %v2777 = vpack.c.b16 %v2738, %v2735
    %v2778 = vpack.c.b16 %v2739, %v2736
    %v2779 = vpack.c.b16 %v2743, %v2740
    %v2780 = vpack.c.b16 %v2744, %v2741
    %v2781 = vpack.c.b16 %v2745, %v2742
    %v2782 = vpack.c.b16 %v2749, %v2746
    %v2783 = vpack.c.b16 %v2750, %v2747
    %v2784 = vpack.c.b16 %v2751, %v2748
    %v2785 = vpack.c.b16 %v2755, %v2752
    %v2786 = vpack.c.b16 %v2756, %v2753
    %v2787 = vpack.c.b16 %v2757, %v2754
    %v2788 = vpack.c.b16 %v2761, %v2758
    %v2789 = vpack.c.b16 %v2762, %v2759
    %v2790 = vpack.c.b16 %v2763, %v2760
    %v2791 = vpack.c.b16 %v2767, %v2764
    %v2792 = vpack.c.b16 %v2768, %v2765
    %v2793 = vpack.c.b16 %v2769, %v2766
    %2818 = vmatpush.bf16.msra.mxu0 %v2791
    %2819 = vmatpush.bf16.msra.mxu0 %v2788
    %2820 = vmatpush.bf16.msra.mxu0 %v2785
    %2821 = vmatpush.bf16.msra.mxu0 %v2782
    %2822 = vmatpush.bf16.msra.mxu0 %v2779
    %2823 = vmatpush.bf16.msra.mxu0 %v2776
    %2824 = vmatpush.bf16.msra.mxu0 %v2773
    %2825 = vmatpush.bf16.msra.mxu0 %v2770
    %2826 = vmatmul.bf16.gmra.mxu0 %v2682
    %v2827 = vpop.f32.mrf.mxu0
    %v2828 = vadd.f32 %v2660, %v2827
    %v2829 = vpop.f32.mrf.mxu0
    %v2830 = vadd.f32 %v2660, %v2829
    %2831 = vmatmul.bf16.gmra.mxu0 %v2683
    %v2832 = vpop.f32.mrf.mxu0
    %v2833 = vadd.f32 %v2660, %v2832
    %v2834 = vpop.f32.mrf.mxu0
    %v2835 = vadd.f32 %v2660, %v2834
    %2836 = vmatmul.bf16.gmra.mxu0 %v2684
    %v2837 = vpop.f32.mrf.mxu0
    %v2838 = vadd.f32 %v2660, %v2837
    %v2839 = vpop.f32.mrf.mxu0
    %v2840 = vadd.f32 %v2660, %v2839
    %2841 = vmatmul.bf16.gmra.mxu0 %v2685
    %v2842 = vpop.f32.mrf.mxu0
    %v2843 = vadd.f32 %v2660, %v2842
    %v2844 = vpop.f32.mrf.mxu0
    %v2845 = vadd.f32 %v2660, %v2844
    %2846 = vdwg.mxu0
    %2847 = vmatpush.bf16.msra.mxu0 %v2792
    %2848 = vmatpush.bf16.msra.mxu0 %v2789
    %2849 = vmatpush.bf16.msra.mxu0 %v2786
    %2850 = vmatpush.bf16.msra.mxu0 %v2783
    %2851 = vmatpush.bf16.msra.mxu0 %v2780
    %2852 = vmatpush.bf16.msra.mxu0 %v2777
    %2853 = vmatpush.bf16.msra.mxu0 %v2774
    %2854 = vmatpush.bf16.msra.mxu0 %v2771
    %2855 = vmatmul.bf16.gmra.mxu0 %v2682
    %v2856 = vpop.f32.mrf.mxu0
    %v2857 = vadd.f32 %v2661, %v2856
    %v2858 = vpop.f32.mrf.mxu0
    %v2859 = vadd.f32 %v2661, %v2858
    %2860 = vmatmul.bf16.gmra.mxu0 %v2683
    %v2861 = vpop.f32.mrf.mxu0
    %v2862 = vadd.f32 %v2661, %v2861
    %v2863 = vpop.f32.mrf.mxu0
    %v2864 = vadd.f32 %v2661, %v2863
    %2865 = vmatmul.bf16.gmra.mxu0 %v2684
    %v2866 = vpop.f32.mrf.mxu0
    %v2867 = vadd.f32 %v2661, %v2866
    %v2868 = vpop.f32.mrf.mxu0
    %v2869 = vadd.f32 %v2661, %v2868
    %2870 = vmatmul.bf16.gmra.mxu0 %v2685
    %v2871 = vpop.f32.mrf.mxu0
    %v2872 = vadd.f32 %v2661, %v2871
    %v2873 = vpop.f32.mrf.mxu0
    %v2874 = vadd.f32 %v2661, %v2873
    %2875 = vdwg.mxu0
    %2876 = vmatpush.bf16.msra.mxu0 %v2793
    %2877 = vmatpush.bf16.msra.mxu0 %v2790
    %2878 = vmatpush.bf16.msra.mxu0 %v2787
    %2879 = vmatpush.bf16.msra.mxu0 %v2784
    %2880 = vmatpush.bf16.msra.mxu0 %v2781
    %2881 = vmatpush.bf16.msra.mxu0 %v2778
    %2882 = vmatpush.bf16.msra.mxu0 %v2775
    %2883 = vmatpush.bf16.msra.mxu0 %v2772
    %2884 = vmatmul.bf16.gmra.mxu0 %v2682
    %v2885 = vpop.f32.mrf.mxu0
    %v2886 = vadd.f32 %v2662, %v2885
    %v2887 = vpop.f32.mrf.mxu0
    %v2888 = vadd.f32 %v2662, %v2887
    %2889 = vmatmul.bf16.gmra.mxu0 %v2683
    %v2890 = vpop.f32.mrf.mxu0
    %v2891 = vadd.f32 %v2662, %v2890
    %v2892 = vpop.f32.mrf.mxu0
    %v2893 = vadd.f32 %v2662, %v2892
    %2894 = vmatmul.bf16.gmra.mxu0 %v2684
    %v2895 = vpop.f32.mrf.mxu0
    %v2896 = vadd.f32 %v2662, %v2895
    %v2897 = vpop.f32.mrf.mxu0
    %v2898 = vadd.f32 %v2662, %v2897
    %2899 = vmatmul.bf16.gmra.mxu0 %v2685
    %v2900 = vpop.f32.mrf.mxu0
    %v2901 = vadd.f32 %v2662, %v2900
    %v2902 = vpop.f32.mrf.mxu0
    %v2903 = vadd.f32 %v2662, %v2902
    %2904 = vdwg.mxu0
    %v2905 = vpack.c.bf16 %v2857, %v2828
    %v2906 = vpack.c.bf16 %v2886, %v2886
    %v2907 = vpack.c.bf16 %v2859, %v2830
    %v2908 = vpack.c.bf16 %v2888, %v2888
    %v2909 = vpack.c.bf16 %v2862, %v2833
    %v2910 = vpack.c.bf16 %v2891, %v2891
    %v2911 = vpack.c.bf16 %v2864, %v2835
    %v2912 = vpack.c.bf16 %v2893, %v2893
    %v2913 = vpack.c.bf16 %v2867, %v2838
    %v2914 = vpack.c.bf16 %v2896, %v2896
    %v2915 = vpack.c.bf16 %v2869, %v2840
    %v2916 = vpack.c.bf16 %v2898, %v2898
    %v2917 = vpack.c.bf16 %v2872, %v2843
    %v2918 = vpack.c.bf16 %v2901, %v2901
    %v2919 = vpack.c.bf16 %v2874, %v2845
    %v2920 = vpack.c.bf16 %v2903, %v2903
    %2921 = vst [vmem:[#allocation2] sm:$0xff] %v2905
    %2922 = vst [vmem:[#allocation2 + $0x8] sm:$0xf] %v2906
    %2923 = vst [vmem:[#allocation2 + $0xc] sm:$0xff] %v2907
    %2924 = vst [vmem:[#allocation2 + $0x14] sm:$0xf] %v2908
    %2925 = vst [vmem:[#allocation2 + $0x18] sm:$0xff] %v2909
    %2926 = vst [vmem:[#allocation2 + $0x20] sm:$0xf] %v2910
    %2927 = vst [vmem:[#allocation2 + $0x24] sm:$0xff] %v2911
    %2928 = vst [vmem:[#allocation2 + $0x2c] sm:$0xf] %v2912
    %2929 = vst [vmem:[#allocation2 + $0x30] sm:$0xff] %v2913
    %2930 = vst [vmem:[#allocation2 + $0x38] sm:$0xf] %v2914
    %2931 = vst [vmem:[#allocation2 + $0x3c] sm:$0xff] %v2915
    %2932 = vst [vmem:[#allocation2 + $0x44] sm:$0xf] %v2916
    %2933 = vst [vmem:[#allocation2 + $0x48] sm:$0xff] %v2917
    %2934 = vst [vmem:[#allocation2 + $0x50] sm:$0xf] %v2918
    %2935 = vst [vmem:[#allocation2 + $0x54] sm:$0xff] %v2919
    %2936 = vst [vmem:[#allocation2 + $0x5c] sm:$0xf] %v2920
    %s2937 = scalar_lea.vmem [#allocation4], 8
    %v2938 = vld [vmem:[%s2937] sm:$0xff]
    %v2939 = vld [vmem:[#allocation2] sm:$0xff]
    %v2940 = vld [vmem:[#allocation2 + $0x8] sm:$0xf]
    %v2941 = vunpack.c.l.bf16 %v2939
    %v2942 = vunpack.c.h.bf16 %v2939
    %v2943 = vunpack.c.l.bf16 %v2940
    %v2944 = vpack.c.bf16 %v2938, %v2938
    %v2945 = vld [vmem:[#allocation13] sm:$0xff]
    %v2946 = vld [vmem:[#allocation13 + $0x8] sm:$0xf]
    %v2947 = vld [vmem:[#allocation13 + $0xc] sm:$0xff]
    %v2948 = vld [vmem:[#allocation13 + $0x14] sm:$0xf]
    %v2949 = vld [vmem:[#allocation13 + $0x18] sm:$0xff]
    %v2950 = vld [vmem:[#allocation13 + $0x20] sm:$0xf]
    %v2951 = vld [vmem:[#allocation13 + $0x24] sm:$0xff]
    %v2952 = vld [vmem:[#allocation13 + $0x2c] sm:$0xf]
    %v2953 = vld [vmem:[#allocation13 + $0x30] sm:$0xff]
    %v2954 = vld [vmem:[#allocation13 + $0x38] sm:$0xf]
    %v2955 = vld [vmem:[#allocation13 + $0x3c] sm:$0xff]
    %v2956 = vld [vmem:[#allocation13 + $0x44] sm:$0xf]
    %v2957 = vld [vmem:[#allocation13 + $0x48] sm:$0xff]
    %v2958 = vld [vmem:[#allocation13 + $0x50] sm:$0xf]
    %v2959 = vld [vmem:[#allocation13 + $0x54] sm:$0xff]
    %v2960 = vld [vmem:[#allocation13 + $0x5c] sm:$0xf]
    %v2961 = vld [vmem:[#allocation13 + $0x60] sm:$0xff]
    %v2962 = vld [vmem:[#allocation13 + $0x68] sm:$0xf]
    %v2963 = vld [vmem:[#allocation13 + $0x6c] sm:$0xff]
    %v2964 = vld [vmem:[#allocation13 + $0x74] sm:$0xf]
    %v2965 = vld [vmem:[#allocation13 + $0x78] sm:$0xff]
    %v2966 = vld [vmem:[#allocation13 + $0x80] sm:$0xf]
    %v2967 = vld [vmem:[#allocation13 + $0x84] sm:$0xff]
    %v2968 = vld [vmem:[#allocation13 + $0x8c] sm:$0xf]
    %v2969 = vld [vmem:[#allocation13 + $0x90] sm:$0xff]
    %v2970 = vld [vmem:[#allocation13 + $0x98] sm:$0xf]
    %v2971 = vld [vmem:[#allocation13 + $0x9c] sm:$0xff]
    %v2972 = vld [vmem:[#allocation13 + $0xa4] sm:$0xf]
    %v2973 = vld [vmem:[#allocation13 + $0xa8] sm:$0xff]
    %v2974 = vld [vmem:[#allocation13 + $0xb0] sm:$0xf]
    %v2975 = vld [vmem:[#allocation13 + $0xb4] sm:$0xff]
    %v2976 = vld [vmem:[#allocation13 + $0xbc] sm:$0xf]
    %v3009 = vunpack.c.l.b16 %v2945
    %v3010 = vunpack.c.h.b16 %v2945
    %v3011 = vunpack.c.l.b16 %v2946
    %v3012 = vunpack.c.l.b16 %v2947
    %v3013 = vunpack.c.h.b16 %v2947
    %v3014 = vunpack.c.l.b16 %v2948
    %v3015 = vunpack.c.l.b16 %v2949
    %v3016 = vunpack.c.h.b16 %v2949
    %v3017 = vunpack.c.l.b16 %v2950
    %v3018 = vunpack.c.l.b16 %v2951
    %v3019 = vunpack.c.h.b16 %v2951
    %v3020 = vunpack.c.l.b16 %v2952
    %v3021 = vunpack.c.l.b16 %v2953
    %v3022 = vunpack.c.h.b16 %v2953
    %v3023 = vunpack.c.l.b16 %v2954
    %v3024 = vunpack.c.l.b16 %v2955
    %v3025 = vunpack.c.h.b16 %v2955
    %v3026 = vunpack.c.l.b16 %v2956
    %v3027 = vunpack.c.l.b16 %v2957
    %v3028 = vunpack.c.h.b16 %v2957
    %v3029 = vunpack.c.l.b16 %v2958
    %v3030 = vunpack.c.l.b16 %v2959
    %v3031 = vunpack.c.h.b16 %v2959
    %v3032 = vunpack.c.l.b16 %v2960
    %v3033 = vunpack.c.l.b16 %v2961
    %v3034 = vunpack.c.h.b16 %v2961
    %v3035 = vunpack.c.l.b16 %v2962
    %v3036 = vunpack.c.l.b16 %v2963
    %v3037 = vunpack.c.h.b16 %v2963
    %v3038 = vunpack.c.l.b16 %v2964
    %v3039 = vunpack.c.l.b16 %v2965
    %v3040 = vunpack.c.h.b16 %v2965
    %v3041 = vunpack.c.l.b16 %v2966
    %v3042 = vunpack.c.l.b16 %v2967
    %v3043 = vunpack.c.h.b16 %v2967
    %v3044 = vunpack.c.l.b16 %v2968
    %v3045 = vunpack.c.l.b16 %v2969
    %v3046 = vunpack.c.h.b16 %v2969
    %v3047 = vunpack.c.l.b16 %v2970
    %v3048 = vunpack.c.l.b16 %v2971
    %v3049 = vunpack.c.h.b16 %v2971
    %v3050 = vunpack.c.l.b16 %v2972
    %v3051 = vunpack.c.l.b16 %v2973
    %v3052 = vunpack.c.h.b16 %v2973
    %v3053 = vunpack.c.l.b16 %v2974
    %v3054 = vunpack.c.l.b16 %v2975
    %v3055 = vunpack.c.h.b16 %v2975
    %v3056 = vunpack.c.l.b16 %v2976
    %v3057 = vpack.c.b16 %v3012, %v3009
    %v3058 = vpack.c.b16 %v3013, %v3010
    %v3059 = vpack.c.b16 %v3014, %v3011
    %v3060 = vpack.c.b16 %v3018, %v3015
    %v3061 = vpack.c.b16 %v3019, %v3016
    %v3062 = vpack.c.b16 %v3020, %v3017
    %v3063 = vpack.c.b16 %v3024, %v3021
    %v3064 = vpack.c.b16 %v3025, %v3022
    %v3065 = vpack.c.b16 %v3026, %v3023
    %v3066 = vpack.c.b16 %v3030, %v3027
    %v3067 = vpack.c.b16 %v3031, %v3028
    %v3068 = vpack.c.b16 %v3032, %v3029
    %v3069 = vpack.c.b16 %v3036, %v3033
    %v3070 = vpack.c.b16 %v3037, %v3034
    %v3071 = vpack.c.b16 %v3038, %v3035
    %v3072 = vpack.c.b16 %v3042, %v3039
    %v3073 = vpack.c.b16 %v3043, %v3040
    %v3074 = vpack.c.b16 %v3044, %v3041
    %v3075 = vpack.c.b16 %v3048, %v3045
    %v3076 = vpack.c.b16 %v3049, %v3046
    %v3077 = vpack.c.b16 %v3050, %v3047
    %v3078 = vpack.c.b16 %v3054, %v3051
    %v3079 = vpack.c.b16 %v3055, %v3052
    %v3080 = vpack.c.b16 %v3056, %v3053
    %3105 = vmatpush.bf16.msra.mxu0 %v3078
    %3106 = vmatpush.bf16.msra.mxu0 %v3075
    %3107 = vmatpush.bf16.msra.mxu0 %v3072
    %3108 = vmatpush.bf16.msra.mxu0 %v3069
    %3109 = vmatpush.bf16.msra.mxu0 %v3066
    %3110 = vmatpush.bf16.msra.mxu0 %v3063
    %3111 = vmatpush.bf16.msra.mxu0 %v3060
    %3112 = vmatpush.bf16.msra.mxu0 %v3057
    %3113 = vmatmul.bf16.gmra.mxu0 %v2944
    %v3114 = vpop.f32.mrf.mxu0
    %v3115 = vadd.f32 0.0, %v3114
    %v3116 = vpop.f32.mrf.mxu0
    %3117 = vdwg.mxu0
    %3118 = vmatpush.bf16.msra.mxu0 %v3079
    %3119 = vmatpush.bf16.msra.mxu0 %v3076
    %3120 = vmatpush.bf16.msra.mxu0 %v3073
    %3121 = vmatpush.bf16.msra.mxu0 %v3070
    %3122 = vmatpush.bf16.msra.mxu0 %v3067
    %3123 = vmatpush.bf16.msra.mxu0 %v3064
    %3124 = vmatpush.bf16.msra.mxu0 %v3061
    %3125 = vmatpush.bf16.msra.mxu0 %v3058
    %3126 = vmatmul.bf16.gmra.mxu0 %v2944
    %v3127 = vpop.f32.mrf.mxu0
    %v3128 = vadd.f32 0.0, %v3127
    %v3129 = vpop.f32.mrf.mxu0
    %3130 = vdwg.mxu0
    %3131 = vmatpush.bf16.msra.mxu0 %v3080
    %3132 = vmatpush.bf16.msra.mxu0 %v3077
    %3133 = vmatpush.bf16.msra.mxu0 %v3074
    %3134 = vmatpush.bf16.msra.mxu0 %v3071
    %3135 = vmatpush.bf16.msra.mxu0 %v3068
    %3136 = vmatpush.bf16.msra.mxu0 %v3065
    %3137 = vmatpush.bf16.msra.mxu0 %v3062
    %3138 = vmatpush.bf16.msra.mxu0 %v3059
    %3139 = vmatmul.bf16.gmra.mxu0 %v2944
    %v3140 = vpop.f32.mrf.mxu0
    %v3141 = vadd.f32 0.0, %v3140
    %v3142 = vpop.f32.mrf.mxu0
    %3143 = vdwg.mxu0
    %v3144 = vadd.f32 %v2941, %v3115
    %v3145 = vxor.u32 %v3144, 2147483648
    %v3146 = vmul.f32 %v3145, 1.442695
    %v3147 = vpow.pop %v3146
    %v3148 = vadd.f32 %v3147, 1.0
    %v3149 = vrcp.pop %v3148
    %v3150 = vmul.f32 %v3148, %v3149
    %v3151 = vsub.f32 1.0, %v3150
    %v3152 = vmul.f32 %v3149, %v3151
    %v3153 = vadd.f32 %v3149, %v3152
    %vm3154 = vweird.f32 %v3148
    %vm3155 = vweird.f32 %v3149
    %vm3156 = vmor %vm3154, %vm3155
    %v3157 = vsel %vm3156, %v3149, %v3153
    %v3158 = vand.u32 2147483647, %v3148
    %vm3159 = vcmp.eq.f32.partialorder %v3158, 8.507059e+37
    %v3160 = vand.u32 %v3148, 2147483648
    %v3161 = vor.u32 1.1754944e-38, %v3160
    %v3162 = vsel %vm3159, %v3161, %v3157
    %v3163 = vmul.f32 1.0, %v3162
    %v3164 = vadd.f32 %v2942, %v3128
    %v3165 = vxor.u32 %v3164, 2147483648
    %v3166 = vmul.f32 %v3165, 1.442695
    %v3167 = vpow.pop %v3166
    %v3168 = vadd.f32 %v3167, 1.0
    %v3169 = vrcp.pop %v3168
    %v3170 = vmul.f32 %v3168, %v3169
    %v3171 = vsub.f32 1.0, %v3170
    %v3172 = vmul.f32 %v3169, %v3171
    %v3173 = vadd.f32 %v3169, %v3172
    %vm3174 = vweird.f32 %v3168
    %vm3175 = vweird.f32 %v3169
    %vm3176 = vmor %vm3174, %vm3175
    %v3177 = vsel %vm3176, %v3169, %v3173
    %v3178 = vand.u32 2147483647, %v3168
    %vm3179 = vcmp.eq.f32.partialorder %v3178, 8.507059e+37
    %v3180 = vand.u32 %v3168, 2147483648
    %v3181 = vor.u32 1.1754944e-38, %v3180
    %v3182 = vsel %vm3179, %v3181, %v3177
    %v3183 = vmul.f32 1.0, %v3182
    %v3184 = vld [vmem:[%s10] sm:$0x1]
    %v3186 = vperm.slane %v3184, 0
    %v3188 = vadd.f32 %v3141, %v3186
    %v3189 = vmul.f32 %v3163, %v3188
    %v3190 = vadd.f32 %v2943, %v3189
    %v3191 = vtanh.pop %v3190
    %v3192 = vsub.f32 1.0, %v3183
    %v3193 = vmul.f32 %v3192, %v3191
    %v3194 = vmul.f32 %v3183, %v2938
    %v3195 = vadd.f32 %v3193, %v3194
    %v3196 = vsel %vm730, %v3195, %v2938
    %v3197 = vld [vmem:[%s734] sm:$0xff]
    %v3198 = vld [vmem:[%s734 + $0x8] sm:$0xf]
    %v3199 = vunpack.c.l.bf16 %v3197
    %v3200 = vunpack.c.h.bf16 %v3197
    %v3201 = vunpack.c.l.bf16 %v3198
    %v3202 = vpack.c.bf16 %v3196, %v3196
    %3203 = vmatpush.bf16.msra.mxu0 %v3078
    %3204 = vmatpush.bf16.msra.mxu0 %v3075
    %3205 = vmatpush.bf16.msra.mxu0 %v3072
    %3206 = vmatpush.bf16.msra.mxu0 %v3069
    %3207 = vmatpush.bf16.msra.mxu0 %v3066
    %3208 = vmatpush.bf16.msra.mxu0 %v3063
    %3209 = vmatpush.bf16.msra.mxu0 %v3060
    %3210 = vmatpush.bf16.msra.mxu0 %v3057
    %3211 = vmatmul.bf16.gmra.mxu0 %v3202
    %v3212 = vpop.f32.mrf.mxu0
    %v3213 = vadd.f32 0.0, %v3212
    %v3214 = vpop.f32.mrf.mxu0
    %3215 = vdwg.mxu0
    %3216 = vmatpush.bf16.msra.mxu0 %v3079
    %3217 = vmatpush.bf16.msra.mxu0 %v3076
    %3218 = vmatpush.bf16.msra.mxu0 %v3073
    %3219 = vmatpush.bf16.msra.mxu0 %v3070
    %3220 = vmatpush.bf16.msra.mxu0 %v3067
    %3221 = vmatpush.bf16.msra.mxu0 %v3064
    %3222 = vmatpush.bf16.msra.mxu0 %v3061
    %3223 = vmatpush.bf16.msra.mxu0 %v3058
    %3224 = vmatmul.bf16.gmra.mxu0 %v3202
    %v3225 = vpop.f32.mrf.mxu0
    %v3226 = vadd.f32 0.0, %v3225
    %v3227 = vpop.f32.mrf.mxu0
    %3228 = vdwg.mxu0
    %3229 = vmatpush.bf16.msra.mxu0 %v3080
    %3230 = vmatpush.bf16.msra.mxu0 %v3077
    %3231 = vmatpush.bf16.msra.mxu0 %v3074
    %3232 = vmatpush.bf16.msra.mxu0 %v3071
    %3233 = vmatpush.bf16.msra.mxu0 %v3068
    %3234 = vmatpush.bf16.msra.mxu0 %v3065
    %3235 = vmatpush.bf16.msra.mxu0 %v3062
    %3236 = vmatpush.bf16.msra.mxu0 %v3059
    %3237 = vmatmul.bf16.gmra.mxu0 %v3202
    %v3238 = vpop.f32.mrf.mxu0
    %v3239 = vadd.f32 0.0, %v3238
    %v3240 = vpop.f32.mrf.mxu0
    %3241 = vdwg.mxu0
    %v3242 = vadd.f32 %v3199, %v3213
    %v3243 = vxor.u32 %v3242, 2147483648
    %v3244 = vmul.f32 %v3243, 1.442695
    %v3245 = vpow.pop %v3244
    %v3246 = vadd.f32 %v3245, 1.0
    %v3247 = vrcp.pop %v3246
    %v3248 = vmul.f32 %v3246, %v3247
    %v3249 = vsub.f32 1.0, %v3248
    %v3250 = vmul.f32 %v3247, %v3249
    %v3251 = vadd.f32 %v3247, %v3250
    %vm3252 = vweird.f32 %v3246
    %vm3253 = vweird.f32 %v3247
    %vm3254 = vmor %vm3252, %vm3253
    %v3255 = vsel %vm3254, %v3247, %v3251
    %v3256 = vand.u32 2147483647, %v3246
    %vm3257 = vcmp.eq.f32.partialorder %v3256, 8.507059e+37
    %v3258 = vand.u32 %v3246, 2147483648
    %v3259 = vor.u32 1.1754944e-38, %v3258
    %v3260 = vsel %vm3257, %v3259, %v3255
    %v3261 = vmul.f32 1.0, %v3260
    %v3262 = vadd.f32 %v3200, %v3226
    %v3263 = vxor.u32 %v3262, 2147483648
    %v3264 = vmul.f32 %v3263, 1.442695
    %v3265 = vpow.pop %v3264
    %v3266 = vadd.f32 %v3265, 1.0
    %v3267 = vrcp.pop %v3266
    %v3268 = vmul.f32 %v3266, %v3267
    %v3269 = vsub.f32 1.0, %v3268
    %v3270 = vmul.f32 %v3267, %v3269
    %v3271 = vadd.f32 %v3267, %v3270
    %vm3272 = vweird.f32 %v3266
    %vm3273 = vweird.f32 %v3267
    %vm3274 = vmor %vm3272, %vm3273
    %v3275 = vsel %vm3274, %v3267, %v3271
    %v3276 = vand.u32 2147483647, %v3266
    %vm3277 = vcmp.eq.f32.partialorder %v3276, 8.507059e+37
    %v3278 = vand.u32 %v3266, 2147483648
    %v3279 = vor.u32 1.1754944e-38, %v3278
    %v3280 = vsel %vm3277, %v3279, %v3275
    %v3281 = vmul.f32 1.0, %v3280
    %v3282 = vadd.f32 %v3239, %v3186
    %v3283 = vmul.f32 %v3261, %v3282
    %v3284 = vadd.f32 %v3201, %v3283
    %v3285 = vtanh.pop %v3284
    %v3286 = vsub.f32 1.0, %v3281
    %v3287 = vmul.f32 %v3286, %v3285
    %v3288 = vmul.f32 %v3281, %v3196
    %v3289 = vadd.f32 %v3287, %v3288
    %v3290 = vsel %vm998, %v3289, %v3196
    %v3291 = vld [vmem:[%s1003] sm:$0xff]
    %v3292 = vld [vmem:[%s1003 + $0x8] sm:$0xf]
    %v3293 = vunpack.c.l.bf16 %v3291
    %v3294 = vunpack.c.h.bf16 %v3291
    %v3295 = vunpack.c.l.bf16 %v3292
    %v3296 = vpack.c.bf16 %v3290, %v3290
    %3297 = vmatpush.bf16.msra.mxu0 %v3078
    %3298 = vmatpush.bf16.msra.mxu0 %v3075
    %3299 = vmatpush.bf16.msra.mxu0 %v3072
    %3300 = vmatpush.bf16.msra.mxu0 %v3069
    %3301 = vmatpush.bf16.msra.mxu0 %v3066
    %3302 = vmatpush.bf16.msra.mxu0 %v3063
    %3303 = vmatpush.bf16.msra.mxu0 %v3060
    %3304 = vmatpush.bf16.msra.mxu0 %v3057
    %3305 = vmatmul.bf16.gmra.mxu0 %v3296
    %v3306 = vpop.f32.mrf.mxu0
    %v3307 = vadd.f32 0.0, %v3306
    %v3308 = vpop.f32.mrf.mxu0
    %3309 = vdwg.mxu0
    %3310 = vmatpush.bf16.msra.mxu0 %v3079
    %3311 = vmatpush.bf16.msra.mxu0 %v3076
    %3312 = vmatpush.bf16.msra.mxu0 %v3073
    %3313 = vmatpush.bf16.msra.mxu0 %v3070
    %3314 = vmatpush.bf16.msra.mxu0 %v3067
    %3315 = vmatpush.bf16.msra.mxu0 %v3064
    %3316 = vmatpush.bf16.msra.mxu0 %v3061
    %3317 = vmatpush.bf16.msra.mxu0 %v3058
    %3318 = vmatmul.bf16.gmra.mxu0 %v3296
    %v3319 = vpop.f32.mrf.mxu0
    %v3320 = vadd.f32 0.0, %v3319
    %v3321 = vpop.f32.mrf.mxu0
    %3322 = vdwg.mxu0
    %3323 = vmatpush.bf16.msra.mxu0 %v3080
    %3324 = vmatpush.bf16.msra.mxu0 %v3077
    %3325 = vmatpush.bf16.msra.mxu0 %v3074
    %3326 = vmatpush.bf16.msra.mxu0 %v3071
    %3327 = vmatpush.bf16.msra.mxu0 %v3068
    %3328 = vmatpush.bf16.msra.mxu0 %v3065
    %3329 = vmatpush.bf16.msra.mxu0 %v3062
    %3330 = vmatpush.bf16.msra.mxu0 %v3059
    %3331 = vmatmul.bf16.gmra.mxu0 %v3296
    %v3332 = vpop.f32.mrf.mxu0
    %v3333 = vadd.f32 0.0, %v3332
    %v3334 = vpop.f32.mrf.mxu0
    %3335 = vdwg.mxu0
    %v3336 = vadd.f32 %v3293, %v3307
    %v3337 = vxor.u32 %v3336, 2147483648
    %v3338 = vmul.f32 %v3337, 1.442695
    %v3339 = vpow.pop %v3338
    %v3340 = vadd.f32 %v3339, 1.0
    %v3341 = vrcp.pop %v3340
    %v3342 = vmul.f32 %v3340, %v3341
    %v3343 = vsub.f32 1.0, %v3342
    %v3344 = vmul.f32 %v3341, %v3343
    %v3345 = vadd.f32 %v3341, %v3344
    %vm3346 = vweird.f32 %v3340
    %vm3347 = vweird.f32 %v3341
    %vm3348 = vmor %vm3346, %vm3347
    %v3349 = vsel %vm3348, %v3341, %v3345
    %v3350 = vand.u32 2147483647, %v3340
    %vm3351 = vcmp.eq.f32.partialorder %v3350, 8.507059e+37
    %v3352 = vand.u32 %v3340, 2147483648
    %v3353 = vor.u32 1.1754944e-38, %v3352
    %v3354 = vsel %vm3351, %v3353, %v3349
    %v3355 = vmul.f32 1.0, %v3354
    %v3356 = vadd.f32 %v3294, %v3320
    %v3357 = vxor.u32 %v3356, 2147483648
    %v3358 = vmul.f32 %v3357, 1.442695
    %v3359 = vpow.pop %v3358
    %v3360 = vadd.f32 %v3359, 1.0
    %v3361 = vrcp.pop %v3360
    %v3362 = vmul.f32 %v3360, %v3361
    %v3363 = vsub.f32 1.0, %v3362
    %v3364 = vmul.f32 %v3361, %v3363
    %v3365 = vadd.f32 %v3361, %v3364
    %vm3366 = vweird.f32 %v3360
    %vm3367 = vweird.f32 %v3361
    %vm3368 = vmor %vm3366, %vm3367
    %v3369 = vsel %vm3368, %v3361, %v3365
    %v3370 = vand.u32 2147483647, %v3360
    %vm3371 = vcmp.eq.f32.partialorder %v3370, 8.507059e+37
    %v3372 = vand.u32 %v3360, 2147483648
    %v3373 = vor.u32 1.1754944e-38, %v3372
    %v3374 = vsel %vm3371, %v3373, %v3369
    %v3375 = vmul.f32 1.0, %v3374
    %v3376 = vadd.f32 %v3333, %v3186
    %v3377 = vmul.f32 %v3355, %v3376
    %v3378 = vadd.f32 %v3295, %v3377
    %v3379 = vtanh.pop %v3378
    %v3380 = vsub.f32 1.0, %v3375
    %v3381 = vmul.f32 %v3380, %v3379
    %v3382 = vmul.f32 %v3375, %v3290
    %v3383 = vadd.f32 %v3381, %v3382
    %v3384 = vsel %vm1267, %v3383, %v3290
    %v3385 = vld [vmem:[%s1272] sm:$0xff]
    %v3386 = vld [vmem:[%s1272 + $0x8] sm:$0xf]
    %v3387 = vunpack.c.l.bf16 %v3385
    %v3388 = vunpack.c.h.bf16 %v3385
    %v3389 = vunpack.c.l.bf16 %v3386
    %v3390 = vpack.c.bf16 %v3384, %v3384
    %3391 = vmatpush.bf16.msra.mxu0 %v3078
    %3392 = vmatpush.bf16.msra.mxu0 %v3075
    %3393 = vmatpush.bf16.msra.mxu0 %v3072
    %3394 = vmatpush.bf16.msra.mxu0 %v3069
    %3395 = vmatpush.bf16.msra.mxu0 %v3066
    %3396 = vmatpush.bf16.msra.mxu0 %v3063
    %3397 = vmatpush.bf16.msra.mxu0 %v3060
    %3398 = vmatpush.bf16.msra.mxu0 %v3057
    %3399 = vmatmul.bf16.gmra.mxu0 %v3390
    %v3400 = vpop.f32.mrf.mxu0
    %v3401 = vadd.f32 0.0, %v3400
    %v3402 = vpop.f32.mrf.mxu0
    %3403 = vdwg.mxu0
    %3404 = vmatpush.bf16.msra.mxu0 %v3079
    %3405 = vmatpush.bf16.msra.mxu0 %v3076
    %3406 = vmatpush.bf16.msra.mxu0 %v3073
    %3407 = vmatpush.bf16.msra.mxu0 %v3070
    %3408 = vmatpush.bf16.msra.mxu0 %v3067
    %3409 = vmatpush.bf16.msra.mxu0 %v3064
    %3410 = vmatpush.bf16.msra.mxu0 %v3061
    %3411 = vmatpush.bf16.msra.mxu0 %v3058
    %3412 = vmatmul.bf16.gmra.mxu0 %v3390
    %v3413 = vpop.f32.mrf.mxu0
    %v3414 = vadd.f32 0.0, %v3413
    %v3415 = vpop.f32.mrf.mxu0
    %3416 = vdwg.mxu0
    %3417 = vmatpush.bf16.msra.mxu0 %v3080
    %3418 = vmatpush.bf16.msra.mxu0 %v3077
    %3419 = vmatpush.bf16.msra.mxu0 %v3074
    %3420 = vmatpush.bf16.msra.mxu0 %v3071
    %3421 = vmatpush.bf16.msra.mxu0 %v3068
    %3422 = vmatpush.bf16.msra.mxu0 %v3065
    %3423 = vmatpush.bf16.msra.mxu0 %v3062
    %3424 = vmatpush.bf16.msra.mxu0 %v3059
    %3425 = vmatmul.bf16.gmra.mxu0 %v3390
    %v3426 = vpop.f32.mrf.mxu0
    %v3427 = vadd.f32 0.0, %v3426
    %v3428 = vpop.f32.mrf.mxu0
    %3429 = vdwg.mxu0
    %v3430 = vadd.f32 %v3387, %v3401
    %v3431 = vxor.u32 %v3430, 2147483648
    %v3432 = vmul.f32 %v3431, 1.442695
    %v3433 = vpow.pop %v3432
    %v3434 = vadd.f32 %v3433, 1.0
    %v3435 = vrcp.pop %v3434
    %v3436 = vmul.f32 %v3434, %v3435
    %v3437 = vsub.f32 1.0, %v3436
    %v3438 = vmul.f32 %v3435, %v3437
    %v3439 = vadd.f32 %v3435, %v3438
    %vm3440 = vweird.f32 %v3434
    %vm3441 = vweird.f32 %v3435
    %vm3442 = vmor %vm3440, %vm3441
    %v3443 = vsel %vm3442, %v3435, %v3439
    %v3444 = vand.u32 2147483647, %v3434
    %vm3445 = vcmp.eq.f32.partialorder %v3444, 8.507059e+37
    %v3446 = vand.u32 %v3434, 2147483648
    %v3447 = vor.u32 1.1754944e-38, %v3446
    %v3448 = vsel %vm3445, %v3447, %v3443
    %v3449 = vmul.f32 1.0, %v3448
    %v3450 = vadd.f32 %v3388, %v3414
    %v3451 = vxor.u32 %v3450, 2147483648
    %v3452 = vmul.f32 %v3451, 1.442695
    %v3453 = vpow.pop %v3452
    %v3454 = vadd.f32 %v3453, 1.0
    %v3455 = vrcp.pop %v3454
    %v3456 = vmul.f32 %v3454, %v3455
    %v3457 = vsub.f32 1.0, %v3456
    %v3458 = vmul.f32 %v3455, %v3457
    %v3459 = vadd.f32 %v3455, %v3458
    %vm3460 = vweird.f32 %v3454
    %vm3461 = vweird.f32 %v3455
    %vm3462 = vmor %vm3460, %vm3461
    %v3463 = vsel %vm3462, %v3455, %v3459
    %v3464 = vand.u32 2147483647, %v3454
    %vm3465 = vcmp.eq.f32.partialorder %v3464, 8.507059e+37
    %v3466 = vand.u32 %v3454, 2147483648
    %v3467 = vor.u32 1.1754944e-38, %v3466
    %v3468 = vsel %vm3465, %v3467, %v3463
    %v3469 = vmul.f32 1.0, %v3468
    %v3470 = vadd.f32 %v3427, %v3186
    %v3471 = vmul.f32 %v3449, %v3470
    %v3472 = vadd.f32 %v3389, %v3471
    %v3473 = vtanh.pop %v3472
    %v3474 = vsub.f32 1.0, %v3469
    %v3475 = vmul.f32 %v3474, %v3473
    %v3476 = vmul.f32 %v3469, %v3384
    %v3477 = vadd.f32 %v3475, %v3476
    %v3478 = vsel %vm1536, %v3477, %v3384
    %v3479 = vld [vmem:[%s1541] sm:$0xff]
    %v3480 = vld [vmem:[%s1541 + $0x8] sm:$0xf]
    %v3481 = vunpack.c.l.bf16 %v3479
    %v3482 = vunpack.c.h.bf16 %v3479
    %v3483 = vunpack.c.l.bf16 %v3480
    %v3484 = vpack.c.bf16 %v3478, %v3478
    %3485 = vmatpush.bf16.msra.mxu0 %v3078
    %3486 = vmatpush.bf16.msra.mxu0 %v3075
    %3487 = vmatpush.bf16.msra.mxu0 %v3072
    %3488 = vmatpush.bf16.msra.mxu0 %v3069
    %3489 = vmatpush.bf16.msra.mxu0 %v3066
    %3490 = vmatpush.bf16.msra.mxu0 %v3063
    %3491 = vmatpush.bf16.msra.mxu0 %v3060
    %3492 = vmatpush.bf16.msra.mxu0 %v3057
    %3493 = vmatmul.bf16.gmra.mxu0 %v3484
    %v3494 = vpop.f32.mrf.mxu0
    %v3495 = vadd.f32 0.0, %v3494
    %v3496 = vpop.f32.mrf.mxu0
    %3497 = vdwg.mxu0
    %3498 = vmatpush.bf16.msra.mxu0 %v3079
    %3499 = vmatpush.bf16.msra.mxu0 %v3076
    %3500 = vmatpush.bf16.msra.mxu0 %v3073
    %3501 = vmatpush.bf16.msra.mxu0 %v3070
    %3502 = vmatpush.bf16.msra.mxu0 %v3067
    %3503 = vmatpush.bf16.msra.mxu0 %v3064
    %3504 = vmatpush.bf16.msra.mxu0 %v3061
    %3505 = vmatpush.bf16.msra.mxu0 %v3058
    %3506 = vmatmul.bf16.gmra.mxu0 %v3484
    %v3507 = vpop.f32.mrf.mxu0
    %v3508 = vadd.f32 0.0, %v3507
    %v3509 = vpop.f32.mrf.mxu0
    %3510 = vdwg.mxu0
    %3511 = vmatpush.bf16.msra.mxu0 %v3080
    %3512 = vmatpush.bf16.msra.mxu0 %v3077
    %3513 = vmatpush.bf16.msra.mxu0 %v3074
    %3514 = vmatpush.bf16.msra.mxu0 %v3071
    %3515 = vmatpush.bf16.msra.mxu0 %v3068
    %3516 = vmatpush.bf16.msra.mxu0 %v3065
    %3517 = vmatpush.bf16.msra.mxu0 %v3062
    %3518 = vmatpush.bf16.msra.mxu0 %v3059
    %3519 = vmatmul.bf16.gmra.mxu0 %v3484
    %v3520 = vpop.f32.mrf.mxu0
    %v3521 = vadd.f32 0.0, %v3520
    %v3522 = vpop.f32.mrf.mxu0
    %3523 = vdwg.mxu0
    %v3524 = vadd.f32 %v3481, %v3495
    %v3525 = vxor.u32 %v3524, 2147483648
    %v3526 = vmul.f32 %v3525, 1.442695
    %v3527 = vpow.pop %v3526
    %v3528 = vadd.f32 %v3527, 1.0
    %v3529 = vrcp.pop %v3528
    %v3530 = vmul.f32 %v3528, %v3529
    %v3531 = vsub.f32 1.0, %v3530
    %v3532 = vmul.f32 %v3529, %v3531
    %v3533 = vadd.f32 %v3529, %v3532
    %vm3534 = vweird.f32 %v3528
    %vm3535 = vweird.f32 %v3529
    %vm3536 = vmor %vm3534, %vm3535
    %v3537 = vsel %vm3536, %v3529, %v3533
    %v3538 = vand.u32 2147483647, %v3528
    %vm3539 = vcmp.eq.f32.partialorder %v3538, 8.507059e+37
    %v3540 = vand.u32 %v3528, 2147483648
    %v3541 = vor.u32 1.1754944e-38, %v3540
    %v3542 = vsel %vm3539, %v3541, %v3537
    %v3543 = vmul.f32 1.0, %v3542
    %v3544 = vadd.f32 %v3482, %v3508
    %v3545 = vxor.u32 %v3544, 2147483648
    %v3546 = vmul.f32 %v3545, 1.442695
    %v3547 = vpow.pop %v3546
    %v3548 = vadd.f32 %v3547, 1.0
    %v3549 = vrcp.pop %v3548
    %v3550 = vmul.f32 %v3548, %v3549
    %v3551 = vsub.f32 1.0, %v3550
    %v3552 = vmul.f32 %v3549, %v3551
    %v3553 = vadd.f32 %v3549, %v3552
    %vm3554 = vweird.f32 %v3548
    %vm3555 = vweird.f32 %v3549
    %vm3556 = vmor %vm3554, %vm3555
    %v3557 = vsel %vm3556, %v3549, %v3553
    %v3558 = vand.u32 2147483647, %v3548
    %vm3559 = vcmp.eq.f32.partialorder %v3558, 8.507059e+37
    %v3560 = vand.u32 %v3548, 2147483648
    %v3561 = vor.u32 1.1754944e-38, %v3560
    %v3562 = vsel %vm3559, %v3561, %v3557
    %v3563 = vmul.f32 1.0, %v3562
    %v3564 = vadd.f32 %v3521, %v3186
    %v3565 = vmul.f32 %v3543, %v3564
    %v3566 = vadd.f32 %v3483, %v3565
    %v3567 = vtanh.pop %v3566
    %v3568 = vsub.f32 1.0, %v3563
    %v3569 = vmul.f32 %v3568, %v3567
    %v3570 = vmul.f32 %v3563, %v3478
    %v3571 = vadd.f32 %v3569, %v3570
    %v3572 = vsel %vm1805, %v3571, %v3478
    %v3573 = vld [vmem:[%s1810] sm:$0xff]
    %v3574 = vld [vmem:[%s1810 + $0x8] sm:$0xf]
    %v3575 = vunpack.c.l.bf16 %v3573
    %v3576 = vunpack.c.h.bf16 %v3573
    %v3577 = vunpack.c.l.bf16 %v3574
    %v3578 = vpack.c.bf16 %v3572, %v3572
    %3579 = vmatpush.bf16.msra.mxu0 %v3078
    %3580 = vmatpush.bf16.msra.mxu0 %v3075
    %3581 = vmatpush.bf16.msra.mxu0 %v3072
    %3582 = vmatpush.bf16.msra.mxu0 %v3069
    %3583 = vmatpush.bf16.msra.mxu0 %v3066
    %3584 = vmatpush.bf16.msra.mxu0 %v3063
    %3585 = vmatpush.bf16.msra.mxu0 %v3060
    %3586 = vmatpush.bf16.msra.mxu0 %v3057
    %3587 = vmatmul.bf16.gmra.mxu0 %v3578
    %v3588 = vpop.f32.mrf.mxu0
    %v3589 = vadd.f32 0.0, %v3588
    %v3590 = vpop.f32.mrf.mxu0
    %3591 = vdwg.mxu0
    %3592 = vmatpush.bf16.msra.mxu0 %v3079
    %3593 = vmatpush.bf16.msra.mxu0 %v3076
    %3594 = vmatpush.bf16.msra.mxu0 %v3073
    %3595 = vmatpush.bf16.msra.mxu0 %v3070
    %3596 = vmatpush.bf16.msra.mxu0 %v3067
    %3597 = vmatpush.bf16.msra.mxu0 %v3064
    %3598 = vmatpush.bf16.msra.mxu0 %v3061
    %3599 = vmatpush.bf16.msra.mxu0 %v3058
    %3600 = vmatmul.bf16.gmra.mxu0 %v3578
    %v3601 = vpop.f32.mrf.mxu0
    %v3602 = vadd.f32 0.0, %v3601
    %v3603 = vpop.f32.mrf.mxu0
    %3604 = vdwg.mxu0
    %3605 = vmatpush.bf16.msra.mxu0 %v3080
    %3606 = vmatpush.bf16.msra.mxu0 %v3077
    %3607 = vmatpush.bf16.msra.mxu0 %v3074
    %3608 = vmatpush.bf16.msra.mxu0 %v3071
    %3609 = vmatpush.bf16.msra.mxu0 %v3068
    %3610 = vmatpush.bf16.msra.mxu0 %v3065
    %3611 = vmatpush.bf16.msra.mxu0 %v3062
    %3612 = vmatpush.bf16.msra.mxu0 %v3059
    %3613 = vmatmul.bf16.gmra.mxu0 %v3578
    %v3614 = vpop.f32.mrf.mxu0
    %v3615 = vadd.f32 0.0, %v3614
    %v3616 = vpop.f32.mrf.mxu0
    %3617 = vdwg.mxu0
    %v3618 = vadd.f32 %v3575, %v3589
    %v3619 = vxor.u32 %v3618, 2147483648
    %v3620 = vmul.f32 %v3619, 1.442695
    %v3621 = vpow.pop %v3620
    %v3622 = vadd.f32 %v3621, 1.0
    %v3623 = vrcp.pop %v3622
    %v3624 = vmul.f32 %v3622, %v3623
    %v3625 = vsub.f32 1.0, %v3624
    %v3626 = vmul.f32 %v3623, %v3625
    %v3627 = vadd.f32 %v3623, %v3626
    %vm3628 = vweird.f32 %v3622
    %vm3629 = vweird.f32 %v3623
    %vm3630 = vmor %vm3628, %vm3629
    %v3631 = vsel %vm3630, %v3623, %v3627
    %v3632 = vand.u32 2147483647, %v3622
    %vm3633 = vcmp.eq.f32.partialorder %v3632, 8.507059e+37
    %v3634 = vand.u32 %v3622, 2147483648
    %v3635 = vor.u32 1.1754944e-38, %v3634
    %v3636 = vsel %vm3633, %v3635, %v3631
    %v3637 = vmul.f32 1.0, %v3636
    %v3638 = vadd.f32 %v3576, %v3602
    %v3639 = vxor.u32 %v3638, 2147483648
    %v3640 = vmul.f32 %v3639, 1.442695
    %v3641 = vpow.pop %v3640
    %v3642 = vadd.f32 %v3641, 1.0
    %v3643 = vrcp.pop %v3642
    %v3644 = vmul.f32 %v3642, %v3643
    %v3645 = vsub.f32 1.0, %v3644
    %v3646 = vmul.f32 %v3643, %v3645
    %v3647 = vadd.f32 %v3643, %v3646
    %vm3648 = vweird.f32 %v3642
    %vm3649 = vweird.f32 %v3643
    %vm3650 = vmor %vm3648, %vm3649
    %v3651 = vsel %vm3650, %v3643, %v3647
    %v3652 = vand.u32 2147483647, %v3642
    %vm3653 = vcmp.eq.f32.partialorder %v3652, 8.507059e+37
    %v3654 = vand.u32 %v3642, 2147483648
    %v3655 = vor.u32 1.1754944e-38, %v3654
    %v3656 = vsel %vm3653, %v3655, %v3651
    %v3657 = vmul.f32 1.0, %v3656
    %v3658 = vadd.f32 %v3615, %v3186
    %v3659 = vmul.f32 %v3637, %v3658
    %v3660 = vadd.f32 %v3577, %v3659
    %v3661 = vtanh.pop %v3660
    %v3662 = vsub.f32 1.0, %v3657
    %v3663 = vmul.f32 %v3662, %v3661
    %v3664 = vmul.f32 %v3657, %v3572
    %v3665 = vadd.f32 %v3663, %v3664
    %v3666 = vsel %vm2074, %v3665, %v3572
    %v3667 = vld [vmem:[%s2079] sm:$0xff]
    %v3668 = vld [vmem:[%s2079 + $0x8] sm:$0xf]
    %v3669 = vunpack.c.l.bf16 %v3667
    %v3670 = vunpack.c.h.bf16 %v3667
    %v3671 = vunpack.c.l.bf16 %v3668
    %v3672 = vpack.c.bf16 %v3666, %v3666
    %3673 = vmatpush.bf16.msra.mxu0 %v3078
    %3674 = vmatpush.bf16.msra.mxu0 %v3075
    %3675 = vmatpush.bf16.msra.mxu0 %v3072
    %3676 = vmatpush.bf16.msra.mxu0 %v3069
    %3677 = vmatpush.bf16.msra.mxu0 %v3066
    %3678 = vmatpush.bf16.msra.mxu0 %v3063
    %3679 = vmatpush.bf16.msra.mxu0 %v3060
    %3680 = vmatpush.bf16.msra.mxu0 %v3057
    %3681 = vmatmul.bf16.gmra.mxu0 %v3672
    %v3682 = vpop.f32.mrf.mxu0
    %v3683 = vadd.f32 0.0, %v3682
    %v3684 = vpop.f32.mrf.mxu0
    %3685 = vdwg.mxu0
    %3686 = vmatpush.bf16.msra.mxu0 %v3079
    %3687 = vmatpush.bf16.msra.mxu0 %v3076
    %3688 = vmatpush.bf16.msra.mxu0 %v3073
    %3689 = vmatpush.bf16.msra.mxu0 %v3070
    %3690 = vmatpush.bf16.msra.mxu0 %v3067
    %3691 = vmatpush.bf16.msra.mxu0 %v3064
    %3692 = vmatpush.bf16.msra.mxu0 %v3061
    %3693 = vmatpush.bf16.msra.mxu0 %v3058
    %3694 = vmatmul.bf16.gmra.mxu0 %v3672
    %v3695 = vpop.f32.mrf.mxu0
    %v3696 = vadd.f32 0.0, %v3695
    %v3697 = vpop.f32.mrf.mxu0
    %3698 = vdwg.mxu0
    %3699 = vmatpush.bf16.msra.mxu0 %v3080
    %3700 = vmatpush.bf16.msra.mxu0 %v3077
    %3701 = vmatpush.bf16.msra.mxu0 %v3074
    %3702 = vmatpush.bf16.msra.mxu0 %v3071
    %3703 = vmatpush.bf16.msra.mxu0 %v3068
    %3704 = vmatpush.bf16.msra.mxu0 %v3065
    %3705 = vmatpush.bf16.msra.mxu0 %v3062
    %3706 = vmatpush.bf16.msra.mxu0 %v3059
    %3707 = vmatmul.bf16.gmra.mxu0 %v3672
    %v3708 = vpop.f32.mrf.mxu0
    %v3709 = vadd.f32 0.0, %v3708
    %v3710 = vpop.f32.mrf.mxu0
    %3711 = vdwg.mxu0
    %v3712 = vadd.f32 %v3669, %v3683
    %v3713 = vxor.u32 %v3712, 2147483648
    %v3714 = vmul.f32 %v3713, 1.442695
    %v3715 = vpow.pop %v3714
    %v3716 = vadd.f32 %v3715, 1.0
    %v3717 = vrcp.pop %v3716
    %v3718 = vmul.f32 %v3716, %v3717
    %v3719 = vsub.f32 1.0, %v3718
    %v3720 = vmul.f32 %v3717, %v3719
    %v3721 = vadd.f32 %v3717, %v3720
    %vm3722 = vweird.f32 %v3716
    %vm3723 = vweird.f32 %v3717
    %vm3724 = vmor %vm3722, %vm3723
    %v3725 = vsel %vm3724, %v3717, %v3721
    %v3726 = vand.u32 2147483647, %v3716
    %vm3727 = vcmp.eq.f32.partialorder %v3726, 8.507059e+37
    %v3728 = vand.u32 %v3716, 2147483648
    %v3729 = vor.u32 1.1754944e-38, %v3728
    %v3730 = vsel %vm3727, %v3729, %v3725
    %v3731 = vmul.f32 1.0, %v3730
    %v3732 = vadd.f32 %v3670, %v3696
    %v3733 = vxor.u32 %v3732, 2147483648
    %v3734 = vmul.f32 %v3733, 1.442695
    %v3735 = vpow.pop %v3734
    %v3736 = vadd.f32 %v3735, 1.0
    %v3737 = vrcp.pop %v3736
    %v3738 = vmul.f32 %v3736, %v3737
    %v3739 = vsub.f32 1.0, %v3738
    %v3740 = vmul.f32 %v3737, %v3739
    %v3741 = vadd.f32 %v3737, %v3740
    %vm3742 = vweird.f32 %v3736
    %vm3743 = vweird.f32 %v3737
    %vm3744 = vmor %vm3742, %vm3743
    %v3745 = vsel %vm3744, %v3737, %v3741
    %v3746 = vand.u32 2147483647, %v3736
    %vm3747 = vcmp.eq.f32.partialorder %v3746, 8.507059e+37
    %v3748 = vand.u32 %v3736, 2147483648
    %v3749 = vor.u32 1.1754944e-38, %v3748
    %v3750 = vsel %vm3747, %v3749, %v3745
    %v3751 = vmul.f32 1.0, %v3750
    %v3752 = vadd.f32 %v3709, %v3186
    %v3753 = vmul.f32 %v3731, %v3752
    %v3754 = vadd.f32 %v3671, %v3753
    %v3755 = vtanh.pop %v3754
    %v3756 = vsub.f32 1.0, %v3751
    %v3757 = vmul.f32 %v3756, %v3755
    %v3758 = vmul.f32 %v3751, %v3666
    %v3759 = vadd.f32 %v3757, %v3758
    %v3760 = vsel %vm2343, %v3759, %v3666
    %v3761 = vld [vmem:[%s2348] sm:$0xff]
    %v3762 = vld [vmem:[%s2348 + $0x8] sm:$0xf]
    %v3763 = vunpack.c.l.bf16 %v3761
    %v3764 = vunpack.c.h.bf16 %v3761
    %v3765 = vunpack.c.l.bf16 %v3762
    %v3766 = vpack.c.bf16 %v3760, %v3760
    %3767 = vmatpush.bf16.msra.mxu0 %v3078
    %3768 = vmatpush.bf16.msra.mxu0 %v3075
    %3769 = vmatpush.bf16.msra.mxu0 %v3072
    %3770 = vmatpush.bf16.msra.mxu0 %v3069
    %3771 = vmatpush.bf16.msra.mxu0 %v3066
    %3772 = vmatpush.bf16.msra.mxu0 %v3063
    %3773 = vmatpush.bf16.msra.mxu0 %v3060
    %3774 = vmatpush.bf16.msra.mxu0 %v3057
    %3775 = vmatmul.bf16.gmra.mxu0 %v3766
    %v3776 = vpop.f32.mrf.mxu0
    %v3777 = vadd.f32 0.0, %v3776
    %v3778 = vpop.f32.mrf.mxu0
    %3779 = vdwg.mxu0
    %3780 = vmatpush.bf16.msra.mxu0 %v3079
    %3781 = vmatpush.bf16.msra.mxu0 %v3076
    %3782 = vmatpush.bf16.msra.mxu0 %v3073
    %3783 = vmatpush.bf16.msra.mxu0 %v3070
    %3784 = vmatpush.bf16.msra.mxu0 %v3067
    %3785 = vmatpush.bf16.msra.mxu0 %v3064
    %3786 = vmatpush.bf16.msra.mxu0 %v3061
    %3787 = vmatpush.bf16.msra.mxu0 %v3058
    %3788 = vmatmul.bf16.gmra.mxu0 %v3766
    %v3789 = vpop.f32.mrf.mxu0
    %v3790 = vadd.f32 0.0, %v3789
    %v3791 = vpop.f32.mrf.mxu0
    %3792 = vdwg.mxu0
    %3793 = vmatpush.bf16.msra.mxu0 %v3080
    %3794 = vmatpush.bf16.msra.mxu0 %v3077
    %3795 = vmatpush.bf16.msra.mxu0 %v3074
    %3796 = vmatpush.bf16.msra.mxu0 %v3071
    %3797 = vmatpush.bf16.msra.mxu0 %v3068
    %3798 = vmatpush.bf16.msra.mxu0 %v3065
    %3799 = vmatpush.bf16.msra.mxu0 %v3062
    %3800 = vmatpush.bf16.msra.mxu0 %v3059
    %3801 = vmatmul.bf16.gmra.mxu0 %v3766
    %v3802 = vpop.f32.mrf.mxu0
    %v3803 = vadd.f32 0.0, %v3802
    %v3804 = vpop.f32.mrf.mxu0
    %3805 = vdwg.mxu0
    %v3806 = vadd.f32 %v3763, %v3777
    %v3807 = vxor.u32 %v3806, 2147483648
    %v3808 = vmul.f32 %v3807, 1.442695
    %v3809 = vpow.pop %v3808
    %v3810 = vadd.f32 %v3809, 1.0
    %v3811 = vrcp.pop %v3810
    %v3812 = vmul.f32 %v3810, %v3811
    %v3813 = vsub.f32 1.0, %v3812
    %v3814 = vmul.f32 %v3811, %v3813
    %v3815 = vadd.f32 %v3811, %v3814
    %vm3816 = vweird.f32 %v3810
    %vm3817 = vweird.f32 %v3811
    %vm3818 = vmor %vm3816, %vm3817
    %v3819 = vsel %vm3818, %v3811, %v3815
    %v3820 = vand.u32 2147483647, %v3810
    %vm3821 = vcmp.eq.f32.partialorder %v3820, 8.507059e+37
    %v3822 = vand.u32 %v3810, 2147483648
    %v3823 = vor.u32 1.1754944e-38, %v3822
    %v3824 = vsel %vm3821, %v3823, %v3819
    %v3825 = vmul.f32 1.0, %v3824
    %v3826 = vadd.f32 %v3764, %v3790
    %v3827 = vxor.u32 %v3826, 2147483648
    %v3828 = vmul.f32 %v3827, 1.442695
    %v3829 = vpow.pop %v3828
    %v3830 = vadd.f32 %v3829, 1.0
    %v3831 = vrcp.pop %v3830
    %v3832 = vmul.f32 %v3830, %v3831
    %v3833 = vsub.f32 1.0, %v3832
    %v3834 = vmul.f32 %v3831, %v3833
    %v3835 = vadd.f32 %v3831, %v3834
    %vm3836 = vweird.f32 %v3830
    %vm3837 = vweird.f32 %v3831
    %vm3838 = vmor %vm3836, %vm3837
    %v3839 = vsel %vm3838, %v3831, %v3835
    %v3840 = vand.u32 2147483647, %v3830
    %vm3841 = vcmp.eq.f32.partialorder %v3840, 8.507059e+37
    %v3842 = vand.u32 %v3830, 2147483648
    %v3843 = vor.u32 1.1754944e-38, %v3842
    %v3844 = vsel %vm3841, %v3843, %v3839
    %v3845 = vmul.f32 1.0, %v3844
    %v3846 = vadd.f32 %v3803, %v3186
    %v3847 = vmul.f32 %v3825, %v3846
    %v3848 = vadd.f32 %v3765, %v3847
    %v3849 = vtanh.pop %v3848
    %v3850 = vsub.f32 1.0, %v3845
    %v3851 = vmul.f32 %v3850, %v3849
    %v3852 = vmul.f32 %v3845, %v3760
    %v3853 = vadd.f32 %v3851, %v3852
    %v3854 = vsel %vm2612, %v3853, %v3760
    %3855 = vst [vmem:[%s2937] sm:$0xff] %v3854
    // Predicated region
    $region82: #{tpu_custom_call.1} parent=1 // pred_check
      %p3856 = pneg %p139
    $region83: #{tpu_custom_call.1} parent=1 // pred_check_branch
      %3858 = sbr.rel (%p3856) target = $region85
    $region84: #{tpu_custom_call.1} parent=1 // pred_region
      %v3859 = vld [vmem:[%s2937] sm:$0xff]
      %v3860 = vld [vmem:[%s2] sm:$0xff]
      %3862 = vset.pattern.permute.xlu0 0
      %3863 = vperm.xlu0 %3862, %v3860
      %v3864 = vpop.permute.xlu0 %3863
      %v3866 = vmul.f32 %v3859, %v3864
      %v3867 = vpack.c.bf16 %v3866, %v3866
      %v3868 = vld [vmem:[#allocation14] sm:$0xf]
      %v3869 = vld [vmem:[#allocation14 + $0x4] sm:$0xf]
      %v3870 = vld [vmem:[#allocation14 + $0x8] sm:$0xf]
      %v3871 = vld [vmem:[#allocation14 + $0xc] sm:$0xf]
      %v3872 = vld [vmem:[#allocation14 + $0x10] sm:$0xf]
      %v3873 = vld [vmem:[#allocation14 + $0x14] sm:$0xf]
      %v3874 = vld [vmem:[#allocation14 + $0x18] sm:$0xf]
      %v3875 = vld [vmem:[#allocation14 + $0x1c] sm:$0xf]
      %v3876 = vld [vmem:[#allocation14 + $0x20] sm:$0xf]
      %v3877 = vld [vmem:[#allocation14 + $0x24] sm:$0xf]
      %v3878 = vld [vmem:[#allocation14 + $0x28] sm:$0xf]
      %v3879 = vld [vmem:[#allocation14 + $0x2c] sm:$0xf]
      %v3880 = vld [vmem:[#allocation14 + $0x30] sm:$0xf]
      %v3881 = vld [vmem:[#allocation14 + $0x34] sm:$0xf]
      %v3882 = vld [vmem:[#allocation14 + $0x38] sm:$0xf]
      %v3883 = vld [vmem:[#allocation14 + $0x3c] sm:$0xf]
      %v3884 = vld [vmem:[%s12] sm:$0x1]
      %v3886 = vperm.slane %v3884, 0
      %v3904 = vunpack.c.l.b16 %v3868
      %v3905 = vunpack.c.l.b16 %v3869
      %v3906 = vunpack.c.l.b16 %v3870
      %v3907 = vunpack.c.l.b16 %v3871
      %v3908 = vunpack.c.l.b16 %v3872
      %v3909 = vunpack.c.l.b16 %v3873
      %v3910 = vunpack.c.l.b16 %v3874
      %v3911 = vunpack.c.l.b16 %v3875
      %v3912 = vunpack.c.l.b16 %v3876
      %v3913 = vunpack.c.l.b16 %v3877
      %v3914 = vunpack.c.l.b16 %v3878
      %v3915 = vunpack.c.l.b16 %v3879
      %v3916 = vunpack.c.l.b16 %v3880
      %v3917 = vunpack.c.l.b16 %v3881
      %v3918 = vunpack.c.l.b16 %v3882
      %v3919 = vunpack.c.l.b16 %v3883
      %v3920 = vpack.c.b16 %v3905, %v3904
      %v3921 = vpack.c.b16 %v3907, %v3906
      %v3922 = vpack.c.b16 %v3909, %v3908
      %v3923 = vpack.c.b16 %v3911, %v3910
      %v3924 = vpack.c.b16 %v3913, %v3912
      %v3925 = vpack.c.b16 %v3915, %v3914
      %v3926 = vpack.c.b16 %v3917, %v3916
      %v3927 = vpack.c.b16 %v3919, %v3918
      %3936 = vmatpush.bf16.msra.mxu0 %v3927
      %3937 = vmatpush.bf16.msra.mxu0 %v3926
      %3938 = vmatpush.bf16.msra.mxu0 %v3925
      %3939 = vmatpush.bf16.msra.mxu0 %v3924
      %3940 = vmatpush.bf16.msra.mxu0 %v3923
      %3941 = vmatpush.bf16.msra.mxu0 %v3922
      %3942 = vmatpush.bf16.msra.mxu0 %v3921
      %3943 = vmatpush.bf16.msra.mxu0 %v3920
      %3944 = vmatmul.bf16.gmra.mxu0 %v3867
      %v3945 = vpop.f32.mrf.mxu0
      %v3946 = vadd.f32 %v3886, %v3945
      %v3947 = vpop.f32.mrf.mxu0
      %3948 = vdwg.mxu0
      %3949 = vst [vmem:[#allocation16] sm:$0xff] %v3946
    $region85: #{tpu_custom_call.1} parent=1 // pred_fallthru
      _
    // Predicated region
    $region86: #{tpu_custom_call.1} parent=1 // pred_check
      _
    $region87: #{tpu_custom_call.1} parent=1 // pred_check_branch
      %3951 = sbr.rel (0) target = $region89
    $region88: #{tpu_custom_call.1} parent=1 // pred_region
      %3953 = vsyncadd [#allocation7], 0
      %s3955 = sshll.u32 [#allocation16], 4
      %s3956 = int_to_ptr.vmem [resolvable:$true] %s3955
      %s3957 = sshll.u32 %s13, 4
      %s3958 = int_to_ptr.hbm [resolvable:$true] %s3957
      %3960 = dma.vmem_to_hbm [thread:$0]  %s3956, 128, %s3958, [#allocation7]
    $region89: #{tpu_custom_call.1} parent=1 // pred_fallthru
      _
    // Predicated region
    $region90: #{tpu_custom_call.1} parent=1 // pred_check
      _
    $region91: #{tpu_custom_call.1} parent=1 // pred_check_branch
      %3962 = sbr.rel (0) target = $region93
    $region92: #{tpu_custom_call.1} parent=1 // pred_region
      %3964 = dma.done [#allocation7], 128
    $region93: #{tpu_custom_call.1} parent=1 // pred_fallthru
      _
    %3965 = vsyncpa [#allocation6], 1
    %3966 = vsyncpa [#allocation9], 1
    %3967 = vsyncpa [#allocation12], 1
    %3968 = vsyncpa [#allocation15], 1
    %3969 = vsyncpa [#allocation7], 1

</llo_original>
